<compile_context>
chip_gen: v7x
topology: tpu7x:2x2x1
jax: 0.10.0
libtpu: 0.0.40
codegen_flags: <defaults>
</compile_context>

<pallas_src>
import numpy as np

import jax
import jax.numpy as jnp
from jax import lax
from jax.experimental import pallas as pl
from jax.experimental.pallas import tpu as pltpu

_VMEM_LIMIT = 32 * 1024 * 1024  # safe on v5e/v6e (128 MiB) and v7x (64 MiB)


# ---------------------------------------------------------------------------
# Fused forward kernel (one image per grid step)
# ---------------------------------------------------------------------------
def _net_s_kernel(x_ref, w1b_ref, b1t_ref, w2b_ref, b2t_ref,
                  w3p_ref, b3_ref, w4p_ref, b4_ref, o_ref):
    f32 = jnp.float32
    bf16 = jnp.bfloat16

    # ---------------- conv1 (1->20, 5x5) + ReLU + 2x2 max-pool ----------------
    # x_ref: (1, 2, 14, 28) bf16; phase p holds input rows h = 2r + p.
    # slab[a,par][i, j*20+oc] = conv1(row 2i+a, col 2j+par, oc),  i,j in 0..11
    w1s = [[w1b_ref[par, di] for di in range(5)] for par in range(2)]  # (28,240)
    slabs = []
    for a in range(2):                       # pooled-row phase: conv1 row = 2i+a
        xs = []
        for di in range(5):
            t = a + di
            xs.append(x_ref[0, t % 2, t // 2: t // 2 + 12, :])        # (12, 28)
        for par in range(2):                 # pooled-col phase: conv1 col = 2j+par
            s = b1t_ref[...]                                           # (1, 240) f32
            for di in range(5):
                s = s + jnp.dot(xs[di], w1s[par][di],
                                preferred_element_type=f32)
            slabs.append(s)                                            # (12, 240) f32
    pool1 = jnp.maximum(jnp.maximum(slabs[0], slabs[1]),
                        jnp.maximum(slabs[2], slabs[3]))
    pool1 = jnp.maximum(pool1, 0.0).astype(bf16)   # (12, 240): rows=H, cols=(W=12, C=20)

    # ---------------- conv2 (20->50, 5x5) + ReLU + 2x2 max-pool ----------------
    # v[par][h, j*50+oc] = conv2(row h, col 2j+par, oc),  h in 0..7, j in 0..3
    vs = []
    for par in range(2):
        v = b2t_ref[...]                                               # (1, 200) f32
        for di in range(5):
            v = v + jnp.dot(pool1[di:di + 8, :], w2b_ref[par, di],
                            preferred_element_type=f32)
        vs.append(v)                                                   # (8, 200) f32
    v = jnp.maximum(jnp.maximum(vs[0], vs[1]), 0.0)    # relu + W-pool -> (8, 200)

    # ---------- H-pool folded into fc1 (4*4*50 -> 500) + ReLU ----------
    h = b3_ref[...]                                                    # (1, 500) f32
    for i in range(4):
        p2 = jnp.maximum(v[2 * i: 2 * i + 1, :],
                         v[2 * i + 1: 2 * i + 2, :])                   # (1, 200) = pool2 row i
        h = h + jnp.dot(p2.astype(bf16), w3p_ref[i],
                        preferred_element_type=f32)
    h = jnp.maximum(h, 0.0)

    # ---------------- fc2 (500 -> 10) + log_softmax ----------------
    logits = jnp.dot(h.astype(bf16), w4p_ref[...],
                     preferred_element_type=f32) + b4_ref[...]          # (1, 10) f32
    m = jnp.max(logits, axis=-1, keepdims=True)
    s = logits - m
    lse = jnp.log(jnp.sum(jnp.exp(s), axis=-1, keepdims=True))
    o_ref[0] = s - lse


# ---------------------------------------------------------------------------
# Parameters (torch layout) + one-time layout plumbing on the (tiny) weights
# ---------------------------------------------------------------------------
def init_params(key):
    ks = jax.random.split(key, 8)
    p = {}
    p["w1"] = 0.05 * jax.random.normal(ks[0], (20, 1, 5, 5), jnp.float32)
    p["b1"] = 0.05 * jax.random.normal(ks[1], (20,), jnp.float32)
    p["w2"] = 0.05 * jax.random.normal(ks[2], (50, 20, 5, 5), jnp.float32)
    p["b2"] = 0.05 * jax.random.normal(ks[3], (50,), jnp.float32)
    p["w3"] = 0.05 * jax.random.normal(ks[4], (500, 800), jnp.float32)  # (out, C*H*W)
    p["b3"] = 0.05 * jax.random.normal(ks[5], (500,), jnp.float32)
    p["w4"] = 0.05 * jax.random.normal(ks[6], (10, 500), jnp.float32)
    p["b4"] = 0.05 * jax.random.normal(ks[7], (10,), jnp.float32)
    return p


def prepare_params(p):
    """Build the banded conv matrices / permuted fc weights once (host-side)."""
    w1 = np.asarray(p["w1"], np.float32)   # (20, 1, 5, 5)
    w2 = np.asarray(p["w2"], np.float32)   # (50, 20, 5, 5)
    w3 = np.asarray(p["w3"], np.float32)   # (500, 800) ; 800 = c*16 + h*4 + w (NCHW flatten)
    w4 = np.asarray(p["w4"], np.float32)   # (10, 500)
    b1 = np.asarray(p["b1"], np.float32)
    b2 = np.asarray(p["b2"], np.float32)
    b3 = np.asarray(p["b3"], np.float32)
    b4 = np.asarray(p["b4"], np.float32)

    # conv1 banded weights: w1b[par, di, w_in, j*20+oc] = w1[oc, 0, di, w_in-(2j+par)]
    w1b = np.zeros((2, 5, 28, 12 * 20), np.float32)
    for par in range(2):
        for di in range(5):
            for j in range(12):
                for dj in range(5):
                    w_in = 2 * j + par + dj
                    w1b[par, di, w_in, j * 20:(j + 1) * 20] = w1[:, 0, di, dj]

    # conv2 banded weights: w2b[par, di, w_in*20+c, j*50+oc] = w2[oc, c, di, w_in-(2j+par)]
    w2b = np.zeros((2, 5, 12 * 20, 4 * 50), np.float32)
    for par in range(2):
        for di in range(5):
            for j in range(4):
                for dj in range(5):
                    w_in = 2 * j + par + dj
                    w2b[par, di, w_in * 20:(w_in + 1) * 20,
                        j * 50:(j + 1) * 50] = w2[:, :, di, dj].T  # (c_in=20, oc=50)

    # fc1: w3p[i, j*50+oc, u] = w3[u, oc*16 + i*4 + j]  (maps torch NCHW flatten)
    w3p = np.transpose(w3.reshape(500, 50, 4, 4), (2, 3, 1, 0)).reshape(4, 200, 500)
    w4p = w4.T                                                     # (500, 10)

    return {
        "w1b": jnp.asarray(w1b, jnp.bfloat16),
        "b1t": jnp.asarray(np.tile(b1, 12)[None], jnp.float32),   # (1, 240)
        "w2b": jnp.asarray(w2b, jnp.bfloat16),
        "b2t": jnp.asarray(np.tile(b2, 4)[None], jnp.float32),    # (1, 200)
        "w3p": jnp.asarray(w3p, jnp.bfloat16),
        "b3": jnp.asarray(b3[None], jnp.float32),                 # (1, 500)
        "w4p": jnp.asarray(w4p, jnp.bfloat16),
        "b4": jnp.asarray(b4[None], jnp.float32),                 # (1, 10)
    }


# ---------------------------------------------------------------------------
# Forward
# ---------------------------------------------------------------------------
@jax.jit
def net_s_forward(pp, x_nchw):
    n = x_nchw.shape[0]
    # (N,1,28,28) -> (N,28,28) -> H-phase split (N,2,14,28): phase p = rows 2r+p.
    xp = (x_nchw.reshape(n, 28, 28)
          .reshape(n, 14, 2, 28)
          .transpose(0, 2, 1, 3)
          .astype(jnp.bfloat16))

    flops = n * 2 * (20 * 12 * 28 * 240 + 10 * 8 * 240 * 200
                     + 4 * 200 * 500 + 500 * 10)
    bytes_accessed = (xp.size * 2
                      + (pp["w1b"].size + pp["w2b"].size
                         + pp["w3p"].size + pp["w4p"].size) * 2
                      + (pp["b1t"].size + pp["b2t"].size
                         + pp["b3"].size + pp["b4"].size) * 4
                      + n * 10 * 4)

    out = pl.pallas_call(
        _net_s_kernel,
        out_shape=jax.ShapeDtypeStruct((n, 1, 10), jnp.float32),
        grid=(n,),
        in_specs=[
            pl.BlockSpec((1, 2, 14, 28), lambda i: (i, 0, 0, 0)),    # one image / step
            pl.BlockSpec((2, 5, 28, 240), lambda i: (0, 0, 0, 0)),   # w1b (VMEM-resident)
            pl.BlockSpec((1, 240), lambda i: (0, 0)),                # b1 tiled
            pl.BlockSpec((2, 5, 240, 200), lambda i: (0, 0, 0, 0)),  # w2b
            pl.BlockSpec((1, 200), lambda i: (0, 0)),                # b2 tiled
            pl.BlockSpec((4, 200, 500), lambda i: (0, 0, 0)),        # fc1 weight (permuted)
            pl.BlockSpec((1, 500), lambda i: (0, 0)),                # b3
            pl.BlockSpec((500, 10), lambda i: (0, 0)),               # fc2 weight
            pl.BlockSpec((1, 10), lambda i: (0, 0)),                 # b4
        ],
        out_specs=pl.BlockSpec((1, 1, 10), lambda i: (i, 0, 0)),
        compiler_params=pltpu.CompilerParams(
            dimension_semantics=("parallel",),
            vmem_limit_bytes=_VMEM_LIMIT,
        ),
        cost_estimate=pl.CostEstimate(
            flops=flops, transcendentals=n * 11, bytes_accessed=bytes_accessed),
    )(xp, pp["w1b"], pp["b1t"], pp["w2b"], pp["b2t"],
      pp["w3p"], pp["b3"], pp["w4p"], pp["b4"])
    return out.reshape(n, 10)


# ---------------------------------------------------------------------------
# Pure-JAX f32 reference (torch semantics) for correctness checking
# ---------------------------------------------------------------------------
def reference_forward(p, x):
    dn = ("NCHW", "OIHW", "NCHW")
    y = lax.conv_general_dilated(x, p["w1"], (1, 1), "VALID", dimension_numbers=dn)
    y = jax.nn.relu(y + p["b1"].reshape(1, 20, 1, 1))
    y = lax.reduce_window(y, -jnp.inf, lax.max, (1, 1, 2, 2), (1, 1, 2, 2), "VALID")
    y = lax.conv_general_dilated(y, p["w2"], (1, 1), "VALID", dimension_numbers=dn)
    y = jax.nn.relu(y + p["b2"].reshape(1, 50, 1, 1))
    y = lax.reduce_window(y, -jnp.inf, lax.max, (1, 1, 2, 2), (1, 1, 2, 2), "VALID")
    y = y.reshape(y.shape[0], -1)                     # NCHW flatten == torch .view
    y = jax.nn.relu(y @ p["w3"].T + p["b3"])
    y = y @ p["w4"].T + p["b4"]
    return jax.nn.log_softmax(y, axis=1)


if __name__ == "__main__":
    x = jax.random.normal(jax.random.PRNGKey(0), (2, 1, 28, 28), jnp.float32)
    params = init_params(jax.random.PRNGKey(42))
    pp = prepare_params(params)

    out = jax.block_until_ready(net_s_forward(pp, x))

    assert out.shape == (2, 10)
    # log_softmax rows should sum (in prob space) to ~1
    assert jnp.allclose(jnp.exp(out).sum(axis=1), 1.0, atol=1e-3)
    # match the f32 reference (bf16 MXU operands -> loose tolerance)
    ref = reference_forward(params, x)
    assert jnp.allclose(out, ref, atol=5e-2), (out, ref)
    print("KERNEL_OK")
</pallas_src>

<mosaic_0001>
module attributes {stable_mosaic.version = 11 : i64} {
  func.func @_net_s_kernel(%arg0: i32, %arg1: memref<1x2x14x28xbf16, #tpu.memory_space<vmem>>, %arg2: memref<2x5x28x240xbf16, #tpu.memory_space<vmem>>, %arg3: memref<1x240xf32, #tpu.memory_space<vmem>>, %arg4: memref<2x5x240x200xbf16, #tpu.memory_space<vmem>>, %arg5: memref<1x200xf32, #tpu.memory_space<vmem>>, %arg6: memref<4x200x500xbf16, #tpu.memory_space<vmem>>, %arg7: memref<1x500xf32, #tpu.memory_space<vmem>>, %arg8: memref<500x10xbf16, #tpu.memory_space<vmem>>, %arg9: memref<1x10xf32, #tpu.memory_space<vmem>>, %arg10: memref<1x1x10xf32, #tpu.memory_space<vmem>>) attributes {dimension_semantics = [#tpu.dimension_semantics<parallel>], iteration_bounds = array<i64: 2>, scalar_prefetch = 0 : i64, scratch_operands = 0 : i64, tpu.core_type = #tpu.core_type<tc>, window_params = [{transform_indices = @transform_0, window_bounds = array<i64: 1, 2, 14, 28>}, {pipeline_mode = #tpu.pipeline_mode<synchronous>, transform_indices = @transform_1, window_bounds = array<i64: 2, 5, 28, 240>}, {pipeline_mode = #tpu.pipeline_mode<synchronous>, transform_indices = @transform_2, window_bounds = array<i64: 1, 240>}, {pipeline_mode = #tpu.pipeline_mode<synchronous>, transform_indices = @transform_3, window_bounds = array<i64: 2, 5, 240, 200>}, {pipeline_mode = #tpu.pipeline_mode<synchronous>, transform_indices = @transform_4, window_bounds = array<i64: 1, 200>}, {pipeline_mode = #tpu.pipeline_mode<synchronous>, transform_indices = @transform_5, window_bounds = array<i64: 4, 200, 500>}, {pipeline_mode = #tpu.pipeline_mode<synchronous>, transform_indices = @transform_6, window_bounds = array<i64: 1, 500>}, {pipeline_mode = #tpu.pipeline_mode<synchronous>, transform_indices = @transform_7, window_bounds = array<i64: 500, 10>}, {pipeline_mode = #tpu.pipeline_mode<synchronous>, transform_indices = @transform_8, window_bounds = array<i64: 1, 10>}, {transform_indices = @transform_9, window_bounds = array<i64: 1, 1, 10>}]} {
    %c0 = arith.constant 0 : index
    %c0_0 = arith.constant 0 : index
    %c0_1 = arith.constant 0 : index
    %c0_2 = arith.constant 0 : index
    %0 = vector.load %arg2[%c0, %c0_0, %c0_1, %c0_2] : memref<2x5x28x240xbf16, #tpu.memory_space<vmem>>, vector<1x1x28x240xbf16>
    %1 = vector.shape_cast %0 : vector<1x1x28x240xbf16> to vector<28x240xbf16>
    %c0_3 = arith.constant 0 : index
    %c1 = arith.constant 1 : index
    %c0_4 = arith.constant 0 : index
    %c0_5 = arith.constant 0 : index
    %2 = vector.load %arg2[%c0_3, %c1, %c0_4, %c0_5] : memref<2x5x28x240xbf16, #tpu.memory_space<vmem>>, vector<1x1x28x240xbf16>
    %3 = vector.shape_cast %2 : vector<1x1x28x240xbf16> to vector<28x240xbf16>
    %c0_6 = arith.constant 0 : index
    %c2 = arith.constant 2 : index
    %c0_7 = arith.constant 0 : index
    %c0_8 = arith.constant 0 : index
    %4 = vector.load %arg2[%c0_6, %c2, %c0_7, %c0_8] : memref<2x5x28x240xbf16, #tpu.memory_space<vmem>>, vector<1x1x28x240xbf16>
    %5 = vector.shape_cast %4 : vector<1x1x28x240xbf16> to vector<28x240xbf16>
    %c0_9 = arith.constant 0 : index
    %c3 = arith.constant 3 : index
    %c0_10 = arith.constant 0 : index
    %c0_11 = arith.constant 0 : index
    %6 = vector.load %arg2[%c0_9, %c3, %c0_10, %c0_11] : memref<2x5x28x240xbf16, #tpu.memory_space<vmem>>, vector<1x1x28x240xbf16>
    %7 = vector.shape_cast %6 : vector<1x1x28x240xbf16> to vector<28x240xbf16>
    %c0_12 = arith.constant 0 : index
    %c4 = arith.constant 4 : index
    %c0_13 = arith.constant 0 : index
    %c0_14 = arith.constant 0 : index
    %8 = vector.load %arg2[%c0_12, %c4, %c0_13, %c0_14] : memref<2x5x28x240xbf16, #tpu.memory_space<vmem>>, vector<1x1x28x240xbf16>
    %9 = vector.shape_cast %8 : vector<1x1x28x240xbf16> to vector<28x240xbf16>
    %c1_15 = arith.constant 1 : index
    %c0_16 = arith.constant 0 : index
    %c0_17 = arith.constant 0 : index
    %c0_18 = arith.constant 0 : index
    %10 = vector.load %arg2[%c1_15, %c0_16, %c0_17, %c0_18] : memref<2x5x28x240xbf16, #tpu.memory_space<vmem>>, vector<1x1x28x240xbf16>
    %11 = vector.shape_cast %10 : vector<1x1x28x240xbf16> to vector<28x240xbf16>
    %c1_19 = arith.constant 1 : index
    %c1_20 = arith.constant 1 : index
    %c0_21 = arith.constant 0 : index
    %c0_22 = arith.constant 0 : index
    %12 = vector.load %arg2[%c1_19, %c1_20, %c0_21, %c0_22] : memref<2x5x28x240xbf16, #tpu.memory_space<vmem>>, vector<1x1x28x240xbf16>
    %13 = vector.shape_cast %12 : vector<1x1x28x240xbf16> to vector<28x240xbf16>
    %c1_23 = arith.constant 1 : index
    %c2_24 = arith.constant 2 : index
    %c0_25 = arith.constant 0 : index
    %c0_26 = arith.constant 0 : index
    %14 = vector.load %arg2[%c1_23, %c2_24, %c0_25, %c0_26] : memref<2x5x28x240xbf16, #tpu.memory_space<vmem>>, vector<1x1x28x240xbf16>
    %15 = vector.shape_cast %14 : vector<1x1x28x240xbf16> to vector<28x240xbf16>
    %c1_27 = arith.constant 1 : index
    %c3_28 = arith.constant 3 : index
    %c0_29 = arith.constant 0 : index
    %c0_30 = arith.constant 0 : index
    %16 = vector.load %arg2[%c1_27, %c3_28, %c0_29, %c0_30] : memref<2x5x28x240xbf16, #tpu.memory_space<vmem>>, vector<1x1x28x240xbf16>
    %17 = vector.shape_cast %16 : vector<1x1x28x240xbf16> to vector<28x240xbf16>
    %c1_31 = arith.constant 1 : index
    %c4_32 = arith.constant 4 : index
    %c0_33 = arith.constant 0 : index
    %c0_34 = arith.constant 0 : index
    %18 = vector.load %arg2[%c1_31, %c4_32, %c0_33, %c0_34] : memref<2x5x28x240xbf16, #tpu.memory_space<vmem>>, vector<1x1x28x240xbf16>
    %19 = vector.shape_cast %18 : vector<1x1x28x240xbf16> to vector<28x240xbf16>
    %c0_35 = arith.constant 0 : index
    %c0_36 = arith.constant 0 : index
    %c0_37 = arith.constant 0 : index
    %c0_38 = arith.constant 0 : index
    %20 = vector.load %arg1[%c0_35, %c0_36, %c0_37, %c0_38] : memref<1x2x14x28xbf16, #tpu.memory_space<vmem>>, vector<1x1x12x28xbf16>
    %21 = vector.shape_cast %20 : vector<1x1x12x28xbf16> to vector<12x28xbf16>
    %c0_39 = arith.constant 0 : index
    %c1_40 = arith.constant 1 : index
    %c0_41 = arith.constant 0 : index
    %c0_42 = arith.constant 0 : index
    %22 = vector.load %arg1[%c0_39, %c1_40, %c0_41, %c0_42] : memref<1x2x14x28xbf16, #tpu.memory_space<vmem>>, vector<1x1x12x28xbf16>
    %23 = vector.shape_cast %22 : vector<1x1x12x28xbf16> to vector<12x28xbf16>
    %c0_43 = arith.constant 0 : index
    %c0_44 = arith.constant 0 : index
    %c1_45 = arith.constant 1 : index
    %c0_46 = arith.constant 0 : index
    %24 = vector.load %arg1[%c0_43, %c0_44, %c1_45, %c0_46] : memref<1x2x14x28xbf16, #tpu.memory_space<vmem>>, vector<1x1x12x28xbf16>
    %25 = vector.shape_cast %24 : vector<1x1x12x28xbf16> to vector<12x28xbf16>
    %c0_47 = arith.constant 0 : index
    %c1_48 = arith.constant 1 : index
    %c1_49 = arith.constant 1 : index
    %c0_50 = arith.constant 0 : index
    %26 = vector.load %arg1[%c0_47, %c1_48, %c1_49, %c0_50] : memref<1x2x14x28xbf16, #tpu.memory_space<vmem>>, vector<1x1x12x28xbf16>
    %27 = vector.shape_cast %26 : vector<1x1x12x28xbf16> to vector<12x28xbf16>
    %c0_51 = arith.constant 0 : index
    %c0_52 = arith.constant 0 : index
    %c2_53 = arith.constant 2 : index
    %c0_54 = arith.constant 0 : index
    %28 = vector.load %arg1[%c0_51, %c0_52, %c2_53, %c0_54] : memref<1x2x14x28xbf16, #tpu.memory_space<vmem>>, vector<1x1x12x28xbf16>
    %29 = vector.shape_cast %28 : vector<1x1x12x28xbf16> to vector<12x28xbf16>
    %c0_55 = arith.constant 0 : index
    %c0_56 = arith.constant 0 : index
    %30 = vector.load %arg3[%c0_55, %c0_56] : memref<1x240xf32, #tpu.memory_space<vmem>>, vector<1x240xf32>
    %cst = arith.constant dense<0.000000e+00> : vector<12x240xf32>
    %31 = tpu.matmul %21, %1, %cst {dimension_numbers = #tpu.dot_dimension_numbers<[1], [0], [0], [1], [0, 0, 1, 1], [], []>} : vector<12x28xbf16>, vector<28x240xbf16>, vector<12x240xf32> -> vector<12x240xf32>
    %32 = vector.broadcast %30 : vector<1x240xf32> to vector<12x240xf32>
    %33 = arith.addf %32, %31 : vector<12x240xf32>
    %cst_57 = arith.constant dense<0.000000e+00> : vector<12x240xf32>
    %34 = tpu.matmul %23, %3, %cst_57 {dimension_numbers = #tpu.dot_dimension_numbers<[1], [0], [0], [1], [0, 0, 1, 1], [], []>} : vector<12x28xbf16>, vector<28x240xbf16>, vector<12x240xf32> -> vector<12x240xf32>
    %35 = arith.addf %33, %34 : vector<12x240xf32>
    %cst_58 = arith.constant dense<0.000000e+00> : vector<12x240xf32>
    %36 = tpu.matmul %25, %5, %cst_58 {dimension_numbers = #tpu.dot_dimension_numbers<[1], [0], [0], [1], [0, 0, 1, 1], [], []>} : vector<12x28xbf16>, vector<28x240xbf16>, vector<12x240xf32> -> vector<12x240xf32>
    %37 = arith.addf %35, %36 : vector<12x240xf32>
    %cst_59 = arith.constant dense<0.000000e+00> : vector<12x240xf32>
    %38 = tpu.matmul %27, %7, %cst_59 {dimension_numbers = #tpu.dot_dimension_numbers<[1], [0], [0], [1], [0, 0, 1, 1], [], []>} : vector<12x28xbf16>, vector<28x240xbf16>, vector<12x240xf32> -> vector<12x240xf32>
    %39 = arith.addf %37, %38 : vector<12x240xf32>
    %cst_60 = arith.constant dense<0.000000e+00> : vector<12x240xf32>
    %40 = tpu.matmul %29, %9, %cst_60 {dimension_numbers = #tpu.dot_dimension_numbers<[1], [0], [0], [1], [0, 0, 1, 1], [], []>} : vector<12x28xbf16>, vector<28x240xbf16>, vector<12x240xf32> -> vector<12x240xf32>
    %41 = arith.addf %39, %40 : vector<12x240xf32>
    %c0_61 = arith.constant 0 : index
    %c0_62 = arith.constant 0 : index
    %42 = vector.load %arg3[%c0_61, %c0_62] : memref<1x240xf32, #tpu.memory_space<vmem>>, vector<1x240xf32>
    %cst_63 = arith.constant dense<0.000000e+00> : vector<12x240xf32>
    %43 = tpu.matmul %21, %11, %cst_63 {dimension_numbers = #tpu.dot_dimension_numbers<[1], [0], [0], [1], [0, 0, 1, 1], [], []>} : vector<12x28xbf16>, vector<28x240xbf16>, vector<12x240xf32> -> vector<12x240xf32>
    %44 = vector.broadcast %42 : vector<1x240xf32> to vector<12x240xf32>
    %45 = arith.addf %44, %43 : vector<12x240xf32>
    %cst_64 = arith.constant dense<0.000000e+00> : vector<12x240xf32>
    %46 = tpu.matmul %23, %13, %cst_64 {dimension_numbers = #tpu.dot_dimension_numbers<[1], [0], [0], [1], [0, 0, 1, 1], [], []>} : vector<12x28xbf16>, vector<28x240xbf16>, vector<12x240xf32> -> vector<12x240xf32>
    %47 = arith.addf %45, %46 : vector<12x240xf32>
    %cst_65 = arith.constant dense<0.000000e+00> : vector<12x240xf32>
    %48 = tpu.matmul %25, %15, %cst_65 {dimension_numbers = #tpu.dot_dimension_numbers<[1], [0], [0], [1], [0, 0, 1, 1], [], []>} : vector<12x28xbf16>, vector<28x240xbf16>, vector<12x240xf32> -> vector<12x240xf32>
    %49 = arith.addf %47, %48 : vector<12x240xf32>
    %cst_66 = arith.constant dense<0.000000e+00> : vector<12x240xf32>
    %50 = tpu.matmul %27, %17, %cst_66 {dimension_numbers = #tpu.dot_dimension_numbers<[1], [0], [0], [1], [0, 0, 1, 1], [], []>} : vector<12x28xbf16>, vector<28x240xbf16>, vector<12x240xf32> -> vector<12x240xf32>
    %51 = arith.addf %49, %50 : vector<12x240xf32>
    %cst_67 = arith.constant dense<0.000000e+00> : vector<12x240xf32>
    %52 = tpu.matmul %29, %19, %cst_67 {dimension_numbers = #tpu.dot_dimension_numbers<[1], [0], [0], [1], [0, 0, 1, 1], [], []>} : vector<12x28xbf16>, vector<28x240xbf16>, vector<12x240xf32> -> vector<12x240xf32>
    %53 = arith.addf %51, %52 : vector<12x240xf32>
    %c0_68 = arith.constant 0 : index
    %c1_69 = arith.constant 1 : index
    %c0_70 = arith.constant 0 : index
    %c0_71 = arith.constant 0 : index
    %54 = vector.load %arg1[%c0_68, %c1_69, %c0_70, %c0_71] : memref<1x2x14x28xbf16, #tpu.memory_space<vmem>>, vector<1x1x12x28xbf16>
    %55 = vector.shape_cast %54 : vector<1x1x12x28xbf16> to vector<12x28xbf16>
    %c0_72 = arith.constant 0 : index
    %c0_73 = arith.constant 0 : index
    %c1_74 = arith.constant 1 : index
    %c0_75 = arith.constant 0 : index
    %56 = vector.load %arg1[%c0_72, %c0_73, %c1_74, %c0_75] : memref<1x2x14x28xbf16, #tpu.memory_space<vmem>>, vector<1x1x12x28xbf16>
    %57 = vector.shape_cast %56 : vector<1x1x12x28xbf16> to vector<12x28xbf16>
    %c0_76 = arith.constant 0 : index
    %c1_77 = arith.constant 1 : index
    %c1_78 = arith.constant 1 : index
    %c0_79 = arith.constant 0 : index
    %58 = vector.load %arg1[%c0_76, %c1_77, %c1_78, %c0_79] : memref<1x2x14x28xbf16, #tpu.memory_space<vmem>>, vector<1x1x12x28xbf16>
    %59 = vector.shape_cast %58 : vector<1x1x12x28xbf16> to vector<12x28xbf16>
    %c0_80 = arith.constant 0 : index
    %c0_81 = arith.constant 0 : index
    %c2_82 = arith.constant 2 : index
    %c0_83 = arith.constant 0 : index
    %60 = vector.load %arg1[%c0_80, %c0_81, %c2_82, %c0_83] : memref<1x2x14x28xbf16, #tpu.memory_space<vmem>>, vector<1x1x12x28xbf16>
    %61 = vector.shape_cast %60 : vector<1x1x12x28xbf16> to vector<12x28xbf16>
    %c0_84 = arith.constant 0 : index
    %c1_85 = arith.constant 1 : index
    %c2_86 = arith.constant 2 : index
    %c0_87 = arith.constant 0 : index
    %62 = vector.load %arg1[%c0_84, %c1_85, %c2_86, %c0_87] : memref<1x2x14x28xbf16, #tpu.memory_space<vmem>>, vector<1x1x12x28xbf16>
    %63 = vector.shape_cast %62 : vector<1x1x12x28xbf16> to vector<12x28xbf16>
    %c0_88 = arith.constant 0 : index
    %c0_89 = arith.constant 0 : index
    %64 = vector.load %arg3[%c0_88, %c0_89] : memref<1x240xf32, #tpu.memory_space<vmem>>, vector<1x240xf32>
    %cst_90 = arith.constant dense<0.000000e+00> : vector<12x240xf32>
    %65 = tpu.matmul %55, %1, %cst_90 {dimension_numbers = #tpu.dot_dimension_numbers<[1], [0], [0], [1], [0, 0, 1, 1], [], []>} : vector<12x28xbf16>, vector<28x240xbf16>, vector<12x240xf32> -> vector<12x240xf32>
    %66 = vector.broadcast %64 : vector<1x240xf32> to vector<12x240xf32>
    %67 = arith.addf %66, %65 : vector<12x240xf32>
    %cst_91 = arith.constant dense<0.000000e+00> : vector<12x240xf32>
    %68 = tpu.matmul %57, %3, %cst_91 {dimension_numbers = #tpu.dot_dimension_numbers<[1], [0], [0], [1], [0, 0, 1, 1], [], []>} : vector<12x28xbf16>, vector<28x240xbf16>, vector<12x240xf32> -> vector<12x240xf32>
    %69 = arith.addf %67, %68 : vector<12x240xf32>
    %cst_92 = arith.constant dense<0.000000e+00> : vector<12x240xf32>
    %70 = tpu.matmul %59, %5, %cst_92 {dimension_numbers = #tpu.dot_dimension_numbers<[1], [0], [0], [1], [0, 0, 1, 1], [], []>} : vector<12x28xbf16>, vector<28x240xbf16>, vector<12x240xf32> -> vector<12x240xf32>
    %71 = arith.addf %69, %70 : vector<12x240xf32>
    %cst_93 = arith.constant dense<0.000000e+00> : vector<12x240xf32>
    %72 = tpu.matmul %61, %7, %cst_93 {dimension_numbers = #tpu.dot_dimension_numbers<[1], [0], [0], [1], [0, 0, 1, 1], [], []>} : vector<12x28xbf16>, vector<28x240xbf16>, vector<12x240xf32> -> vector<12x240xf32>
    %73 = arith.addf %71, %72 : vector<12x240xf32>
    %cst_94 = arith.constant dense<0.000000e+00> : vector<12x240xf32>
    %74 = tpu.matmul %63, %9, %cst_94 {dimension_numbers = #tpu.dot_dimension_numbers<[1], [0], [0], [1], [0, 0, 1, 1], [], []>} : vector<12x28xbf16>, vector<28x240xbf16>, vector<12x240xf32> -> vector<12x240xf32>
    %75 = arith.addf %73, %74 : vector<12x240xf32>
    %c0_95 = arith.constant 0 : index
    %c0_96 = arith.constant 0 : index
    %76 = vector.load %arg3[%c0_95, %c0_96] : memref<1x240xf32, #tpu.memory_space<vmem>>, vector<1x240xf32>
    %cst_97 = arith.constant dense<0.000000e+00> : vector<12x240xf32>
    %77 = tpu.matmul %55, %11, %cst_97 {dimension_numbers = #tpu.dot_dimension_numbers<[1], [0], [0], [1], [0, 0, 1, 1], [], []>} : vector<12x28xbf16>, vector<28x240xbf16>, vector<12x240xf32> -> vector<12x240xf32>
    %78 = vector.broadcast %76 : vector<1x240xf32> to vector<12x240xf32>
    %79 = arith.addf %78, %77 : vector<12x240xf32>
    %cst_98 = arith.constant dense<0.000000e+00> : vector<12x240xf32>
    %80 = tpu.matmul %57, %13, %cst_98 {dimension_numbers = #tpu.dot_dimension_numbers<[1], [0], [0], [1], [0, 0, 1, 1], [], []>} : vector<12x28xbf16>, vector<28x240xbf16>, vector<12x240xf32> -> vector<12x240xf32>
    %81 = arith.addf %79, %80 : vector<12x240xf32>
    %cst_99 = arith.constant dense<0.000000e+00> : vector<12x240xf32>
    %82 = tpu.matmul %59, %15, %cst_99 {dimension_numbers = #tpu.dot_dimension_numbers<[1], [0], [0], [1], [0, 0, 1, 1], [], []>} : vector<12x28xbf16>, vector<28x240xbf16>, vector<12x240xf32> -> vector<12x240xf32>
    %83 = arith.addf %81, %82 : vector<12x240xf32>
    %cst_100 = arith.constant dense<0.000000e+00> : vector<12x240xf32>
    %84 = tpu.matmul %61, %17, %cst_100 {dimension_numbers = #tpu.dot_dimension_numbers<[1], [0], [0], [1], [0, 0, 1, 1], [], []>} : vector<12x28xbf16>, vector<28x240xbf16>, vector<12x240xf32> -> vector<12x240xf32>
    %85 = arith.addf %83, %84 : vector<12x240xf32>
    %cst_101 = arith.constant dense<0.000000e+00> : vector<12x240xf32>
    %86 = tpu.matmul %63, %19, %cst_101 {dimension_numbers = #tpu.dot_dimension_numbers<[1], [0], [0], [1], [0, 0, 1, 1], [], []>} : vector<12x28xbf16>, vector<28x240xbf16>, vector<12x240xf32> -> vector<12x240xf32>
    %87 = arith.addf %85, %86 : vector<12x240xf32>
    %88 = arith.maximumf %41, %53 : vector<12x240xf32>
    %89 = arith.maximumf %75, %87 : vector<12x240xf32>
    %90 = arith.maximumf %88, %89 : vector<12x240xf32>
    %cst_102 = arith.constant 0.000000e+00 : f32
    %91 = vector.broadcast %cst_102 : f32 to vector<12x240xf32>
    %92 = arith.maximumf %90, %91 : vector<12x240xf32>
    %93 = arith.truncf %92 : vector<12x240xf32> to vector<12x240xbf16>
    %c0_103 = arith.constant 0 : index
    %c0_104 = arith.constant 0 : index
    %94 = vector.load %arg5[%c0_103, %c0_104] : memref<1x200xf32, #tpu.memory_space<vmem>>, vector<1x200xf32>
    %95 = vector.extract_strided_slice %93 {offsets = [0, 0], sizes = [8, 240], strides = [1, 1]} : vector<12x240xbf16> to vector<8x240xbf16>
    %c0_105 = arith.constant 0 : index
    %c0_106 = arith.constant 0 : index
    %c0_107 = arith.constant 0 : index
    %c0_108 = arith.constant 0 : index
    %96 = vector.load %arg4[%c0_105, %c0_106, %c0_107, %c0_108] : memref<2x5x240x200xbf16, #tpu.memory_space<vmem>>, vector<1x1x240x200xbf16>
    %97 = vector.shape_cast %96 : vector<1x1x240x200xbf16> to vector<240x200xbf16>
    %cst_109 = arith.constant dense<0.000000e+00> : vector<8x200xf32>
    %98 = tpu.matmul %95, %97, %cst_109 {dimension_numbers = #tpu.dot_dimension_numbers<[1], [0], [0], [1], [0, 0, 1, 1], [], []>} : vector<8x240xbf16>, vector<240x200xbf16>, vector<8x200xf32> -> vector<8x200xf32>
    %99 = vector.broadcast %94 : vector<1x200xf32> to vector<8x200xf32>
    %100 = arith.addf %99, %98 : vector<8x200xf32>
    %101 = vector.extract_strided_slice %93 {offsets = [1, 0], sizes = [8, 240], strides = [1, 1]} : vector<12x240xbf16> to vector<8x240xbf16>
    %c0_110 = arith.constant 0 : index
    %c1_111 = arith.constant 1 : index
    %c0_112 = arith.constant 0 : index
    %c0_113 = arith.constant 0 : index
    %102 = vector.load %arg4[%c0_110, %c1_111, %c0_112, %c0_113] : memref<2x5x240x200xbf16, #tpu.memory_space<vmem>>, vector<1x1x240x200xbf16>
    %103 = vector.shape_cast %102 : vector<1x1x240x200xbf16> to vector<240x200xbf16>
    %cst_114 = arith.constant dense<0.000000e+00> : vector<8x200xf32>
    %104 = tpu.matmul %101, %103, %cst_114 {dimension_numbers = #tpu.dot_dimension_numbers<[1], [0], [0], [1], [0, 0, 1, 1], [], []>} : vector<8x240xbf16>, vector<240x200xbf16>, vector<8x200xf32> -> vector<8x200xf32>
    %105 = arith.addf %100, %104 : vector<8x200xf32>
    %106 = vector.extract_strided_slice %93 {offsets = [2, 0], sizes = [8, 240], strides = [1, 1]} : vector<12x240xbf16> to vector<8x240xbf16>
    %c0_115 = arith.constant 0 : index
    %c2_116 = arith.constant 2 : index
    %c0_117 = arith.constant 0 : index
    %c0_118 = arith.constant 0 : index
    %107 = vector.load %arg4[%c0_115, %c2_116, %c0_117, %c0_118] : memref<2x5x240x200xbf16, #tpu.memory_space<vmem>>, vector<1x1x240x200xbf16>
    %108 = vector.shape_cast %107 : vector<1x1x240x200xbf16> to vector<240x200xbf16>
    %cst_119 = arith.constant dense<0.000000e+00> : vector<8x200xf32>
    %109 = tpu.matmul %106, %108, %cst_119 {dimension_numbers = #tpu.dot_dimension_numbers<[1], [0], [0], [1], [0, 0, 1, 1], [], []>} : vector<8x240xbf16>, vector<240x200xbf16>, vector<8x200xf32> -> vector<8x200xf32>
    %110 = arith.addf %105, %109 : vector<8x200xf32>
    %111 = vector.extract_strided_slice %93 {offsets = [3, 0], sizes = [8, 240], strides = [1, 1]} : vector<12x240xbf16> to vector<8x240xbf16>
    %c0_120 = arith.constant 0 : index
    %c3_121 = arith.constant 3 : index
    %c0_122 = arith.constant 0 : index
    %c0_123 = arith.constant 0 : index
    %112 = vector.load %arg4[%c0_120, %c3_121, %c0_122, %c0_123] : memref<2x5x240x200xbf16, #tpu.memory_space<vmem>>, vector<1x1x240x200xbf16>
    %113 = vector.shape_cast %112 : vector<1x1x240x200xbf16> to vector<240x200xbf16>
    %cst_124 = arith.constant dense<0.000000e+00> : vector<8x200xf32>
    %114 = tpu.matmul %111, %113, %cst_124 {dimension_numbers = #tpu.dot_dimension_numbers<[1], [0], [0], [1], [0, 0, 1, 1], [], []>} : vector<8x240xbf16>, vector<240x200xbf16>, vector<8x200xf32> -> vector<8x200xf32>
    %115 = arith.addf %110, %114 : vector<8x200xf32>
    %116 = vector.extract_strided_slice %93 {offsets = [4, 0], sizes = [8, 240], strides = [1, 1]} : vector<12x240xbf16> to vector<8x240xbf16>
    %c0_125 = arith.constant 0 : index
    %c4_126 = arith.constant 4 : index
    %c0_127 = arith.constant 0 : index
    %c0_128 = arith.constant 0 : index
    %117 = vector.load %arg4[%c0_125, %c4_126, %c0_127, %c0_128] : memref<2x5x240x200xbf16, #tpu.memory_space<vmem>>, vector<1x1x240x200xbf16>
    %118 = vector.shape_cast %117 : vector<1x1x240x200xbf16> to vector<240x200xbf16>
    %cst_129 = arith.constant dense<0.000000e+00> : vector<8x200xf32>
    %119 = tpu.matmul %116, %118, %cst_129 {dimension_numbers = #tpu.dot_dimension_numbers<[1], [0], [0], [1], [0, 0, 1, 1], [], []>} : vector<8x240xbf16>, vector<240x200xbf16>, vector<8x200xf32> -> vector<8x200xf32>
    %120 = arith.addf %115, %119 : vector<8x200xf32>
    %c0_130 = arith.constant 0 : index
    %c0_131 = arith.constant 0 : index
    %121 = vector.load %arg5[%c0_130, %c0_131] : memref<1x200xf32, #tpu.memory_space<vmem>>, vector<1x200xf32>
    %122 = vector.extract_strided_slice %93 {offsets = [0, 0], sizes = [8, 240], strides = [1, 1]} : vector<12x240xbf16> to vector<8x240xbf16>
    %c1_132 = arith.constant 1 : index
    %c0_133 = arith.constant 0 : index
    %c0_134 = arith.constant 0 : index
    %c0_135 = arith.constant 0 : index
    %123 = vector.load %arg4[%c1_132, %c0_133, %c0_134, %c0_135] : memref<2x5x240x200xbf16, #tpu.memory_space<vmem>>, vector<1x1x240x200xbf16>
    %124 = vector.shape_cast %123 : vector<1x1x240x200xbf16> to vector<240x200xbf16>
    %cst_136 = arith.constant dense<0.000000e+00> : vector<8x200xf32>
    %125 = tpu.matmul %122, %124, %cst_136 {dimension_numbers = #tpu.dot_dimension_numbers<[1], [0], [0], [1], [0, 0, 1, 1], [], []>} : vector<8x240xbf16>, vector<240x200xbf16>, vector<8x200xf32> -> vector<8x200xf32>
    %126 = vector.broadcast %121 : vector<1x200xf32> to vector<8x200xf32>
    %127 = arith.addf %126, %125 : vector<8x200xf32>
    %128 = vector.extract_strided_slice %93 {offsets = [1, 0], sizes = [8, 240], strides = [1, 1]} : vector<12x240xbf16> to vector<8x240xbf16>
    %c1_137 = arith.constant 1 : index
    %c1_138 = arith.constant 1 : index
    %c0_139 = arith.constant 0 : index
    %c0_140 = arith.constant 0 : index
    %129 = vector.load %arg4[%c1_137, %c1_138, %c0_139, %c0_140] : memref<2x5x240x200xbf16, #tpu.memory_space<vmem>>, vector<1x1x240x200xbf16>
    %130 = vector.shape_cast %129 : vector<1x1x240x200xbf16> to vector<240x200xbf16>
    %cst_141 = arith.constant dense<0.000000e+00> : vector<8x200xf32>
    %131 = tpu.matmul %128, %130, %cst_141 {dimension_numbers = #tpu.dot_dimension_numbers<[1], [0], [0], [1], [0, 0, 1, 1], [], []>} : vector<8x240xbf16>, vector<240x200xbf16>, vector<8x200xf32> -> vector<8x200xf32>
    %132 = arith.addf %127, %131 : vector<8x200xf32>
    %133 = vector.extract_strided_slice %93 {offsets = [2, 0], sizes = [8, 240], strides = [1, 1]} : vector<12x240xbf16> to vector<8x240xbf16>
    %c1_142 = arith.constant 1 : index
    %c2_143 = arith.constant 2 : index
    %c0_144 = arith.constant 0 : index
    %c0_145 = arith.constant 0 : index
    %134 = vector.load %arg4[%c1_142, %c2_143, %c0_144, %c0_145] : memref<2x5x240x200xbf16, #tpu.memory_space<vmem>>, vector<1x1x240x200xbf16>
    %135 = vector.shape_cast %134 : vector<1x1x240x200xbf16> to vector<240x200xbf16>
    %cst_146 = arith.constant dense<0.000000e+00> : vector<8x200xf32>
    %136 = tpu.matmul %133, %135, %cst_146 {dimension_numbers = #tpu.dot_dimension_numbers<[1], [0], [0], [1], [0, 0, 1, 1], [], []>} : vector<8x240xbf16>, vector<240x200xbf16>, vector<8x200xf32> -> vector<8x200xf32>
    %137 = arith.addf %132, %136 : vector<8x200xf32>
    %138 = vector.extract_strided_slice %93 {offsets = [3, 0], sizes = [8, 240], strides = [1, 1]} : vector<12x240xbf16> to vector<8x240xbf16>
    %c1_147 = arith.constant 1 : index
    %c3_148 = arith.constant 3 : index
    %c0_149 = arith.constant 0 : index
    %c0_150 = arith.constant 0 : index
    %139 = vector.load %arg4[%c1_147, %c3_148, %c0_149, %c0_150] : memref<2x5x240x200xbf16, #tpu.memory_space<vmem>>, vector<1x1x240x200xbf16>
    %140 = vector.shape_cast %139 : vector<1x1x240x200xbf16> to vector<240x200xbf16>
    %cst_151 = arith.constant dense<0.000000e+00> : vector<8x200xf32>
    %141 = tpu.matmul %138, %140, %cst_151 {dimension_numbers = #tpu.dot_dimension_numbers<[1], [0], [0], [1], [0, 0, 1, 1], [], []>} : vector<8x240xbf16>, vector<240x200xbf16>, vector<8x200xf32> -> vector<8x200xf32>
    %142 = arith.addf %137, %141 : vector<8x200xf32>
    %143 = vector.extract_strided_slice %93 {offsets = [4, 0], sizes = [8, 240], strides = [1, 1]} : vector<12x240xbf16> to vector<8x240xbf16>
    %c1_152 = arith.constant 1 : index
    %c4_153 = arith.constant 4 : index
    %c0_154 = arith.constant 0 : index
    %c0_155 = arith.constant 0 : index
    %144 = vector.load %arg4[%c1_152, %c4_153, %c0_154, %c0_155] : memref<2x5x240x200xbf16, #tpu.memory_space<vmem>>, vector<1x1x240x200xbf16>
    %145 = vector.shape_cast %144 : vector<1x1x240x200xbf16> to vector<240x200xbf16>
    %cst_156 = arith.constant dense<0.000000e+00> : vector<8x200xf32>
    %146 = tpu.matmul %143, %145, %cst_156 {dimension_numbers = #tpu.dot_dimension_numbers<[1], [0], [0], [1], [0, 0, 1, 1], [], []>} : vector<8x240xbf16>, vector<240x200xbf16>, vector<8x200xf32> -> vector<8x200xf32>
    %147 = arith.addf %142, %146 : vector<8x200xf32>
    %148 = arith.maximumf %120, %147 : vector<8x200xf32>
    %cst_157 = arith.constant 0.000000e+00 : f32
    %149 = vector.broadcast %cst_157 : f32 to vector<8x200xf32>
    %150 = arith.maximumf %148, %149 : vector<8x200xf32>
    %c0_158 = arith.constant 0 : index
    %c0_159 = arith.constant 0 : index
    %151 = vector.load %arg7[%c0_158, %c0_159] : memref<1x500xf32, #tpu.memory_space<vmem>>, vector<1x500xf32>
    %152 = vector.extract_strided_slice %150 {offsets = [0, 0], sizes = [1, 200], strides = [1, 1]} : vector<8x200xf32> to vector<1x200xf32>
    %153 = vector.extract_strided_slice %150 {offsets = [1, 0], sizes = [1, 200], strides = [1, 1]} : vector<8x200xf32> to vector<1x200xf32>
    %154 = arith.maximumf %152, %153 : vector<1x200xf32>
    %155 = arith.truncf %154 : vector<1x200xf32> to vector<1x200xbf16>
    %c0_160 = arith.constant 0 : index
    %c0_161 = arith.constant 0 : index
    %c0_162 = arith.constant 0 : index
    %156 = vector.load %arg6[%c0_160, %c0_161, %c0_162] : memref<4x200x500xbf16, #tpu.memory_space<vmem>>, vector<1x200x500xbf16>
    %157 = vector.shape_cast %156 : vector<1x200x500xbf16> to vector<200x500xbf16>
    %cst_163 = arith.constant dense<0.000000e+00> : vector<1x500xf32>
    %158 = tpu.matmul %155, %157, %cst_163 {dimension_numbers = #tpu.dot_dimension_numbers<[1], [0], [0], [1], [0, 0, 1, 1], [], []>} : vector<1x200xbf16>, vector<200x500xbf16>, vector<1x500xf32> -> vector<1x500xf32>
    %159 = arith.addf %151, %158 : vector<1x500xf32>
    %160 = vector.extract_strided_slice %150 {offsets = [2, 0], sizes = [1, 200], strides = [1, 1]} : vector<8x200xf32> to vector<1x200xf32>
    %161 = vector.extract_strided_slice %150 {offsets = [3, 0], sizes = [1, 200], strides = [1, 1]} : vector<8x200xf32> to vector<1x200xf32>
    %162 = arith.maximumf %160, %161 : vector<1x200xf32>
    %163 = arith.truncf %162 : vector<1x200xf32> to vector<1x200xbf16>
    %c1_164 = arith.constant 1 : index
    %c0_165 = arith.constant 0 : index
    %c0_166 = arith.constant 0 : index
    %164 = vector.load %arg6[%c1_164, %c0_165, %c0_166] : memref<4x200x500xbf16, #tpu.memory_space<vmem>>, vector<1x200x500xbf16>
    %165 = vector.shape_cast %164 : vector<1x200x500xbf16> to vector<200x500xbf16>
    %cst_167 = arith.constant dense<0.000000e+00> : vector<1x500xf32>
    %166 = tpu.matmul %163, %165, %cst_167 {dimension_numbers = #tpu.dot_dimension_numbers<[1], [0], [0], [1], [0, 0, 1, 1], [], []>} : vector<1x200xbf16>, vector<200x500xbf16>, vector<1x500xf32> -> vector<1x500xf32>
    %167 = arith.addf %159, %166 : vector<1x500xf32>
    %168 = vector.extract_strided_slice %150 {offsets = [4, 0], sizes = [1, 200], strides = [1, 1]} : vector<8x200xf32> to vector<1x200xf32>
    %169 = vector.extract_strided_slice %150 {offsets = [5, 0], sizes = [1, 200], strides = [1, 1]} : vector<8x200xf32> to vector<1x200xf32>
    %170 = arith.maximumf %168, %169 : vector<1x200xf32>
    %171 = arith.truncf %170 : vector<1x200xf32> to vector<1x200xbf16>
    %c2_168 = arith.constant 2 : index
    %c0_169 = arith.constant 0 : index
    %c0_170 = arith.constant 0 : index
    %172 = vector.load %arg6[%c2_168, %c0_169, %c0_170] : memref<4x200x500xbf16, #tpu.memory_space<vmem>>, vector<1x200x500xbf16>
    %173 = vector.shape_cast %172 : vector<1x200x500xbf16> to vector<200x500xbf16>
    %cst_171 = arith.constant dense<0.000000e+00> : vector<1x500xf32>
    %174 = tpu.matmul %171, %173, %cst_171 {dimension_numbers = #tpu.dot_dimension_numbers<[1], [0], [0], [1], [0, 0, 1, 1], [], []>} : vector<1x200xbf16>, vector<200x500xbf16>, vector<1x500xf32> -> vector<1x500xf32>
    %175 = arith.addf %167, %174 : vector<1x500xf32>
    %176 = vector.extract_strided_slice %150 {offsets = [6, 0], sizes = [1, 200], strides = [1, 1]} : vector<8x200xf32> to vector<1x200xf32>
    %177 = vector.extract_strided_slice %150 {offsets = [7, 0], sizes = [1, 200], strides = [1, 1]} : vector<8x200xf32> to vector<1x200xf32>
    %178 = arith.maximumf %176, %177 : vector<1x200xf32>
    %179 = arith.truncf %178 : vector<1x200xf32> to vector<1x200xbf16>
    %c3_172 = arith.constant 3 : index
    %c0_173 = arith.constant 0 : index
    %c0_174 = arith.constant 0 : index
    %180 = vector.load %arg6[%c3_172, %c0_173, %c0_174] : memref<4x200x500xbf16, #tpu.memory_space<vmem>>, vector<1x200x500xbf16>
    %181 = vector.shape_cast %180 : vector<1x200x500xbf16> to vector<200x500xbf16>
    %cst_175 = arith.constant dense<0.000000e+00> : vector<1x500xf32>
    %182 = tpu.matmul %179, %181, %cst_175 {dimension_numbers = #tpu.dot_dimension_numbers<[1], [0], [0], [1], [0, 0, 1, 1], [], []>} : vector<1x200xbf16>, vector<200x500xbf16>, vector<1x500xf32> -> vector<1x500xf32>
    %183 = arith.addf %175, %182 : vector<1x500xf32>
    %cst_176 = arith.constant 0.000000e+00 : f32
    %184 = vector.broadcast %cst_176 : f32 to vector<1x500xf32>
    %185 = arith.maximumf %183, %184 : vector<1x500xf32>
    %186 = arith.truncf %185 : vector<1x500xf32> to vector<1x500xbf16>
    %c0_177 = arith.constant 0 : index
    %c0_178 = arith.constant 0 : index
    %187 = vector.load %arg8[%c0_177, %c0_178] : memref<500x10xbf16, #tpu.memory_space<vmem>>, vector<500x10xbf16>
    %cst_179 = arith.constant dense<0.000000e+00> : vector<1x10xf32>
    %188 = tpu.matmul %186, %187, %cst_179 {dimension_numbers = #tpu.dot_dimension_numbers<[1], [0], [0], [1], [0, 0, 1, 1], [], []>} : vector<1x500xbf16>, vector<500x10xbf16>, vector<1x10xf32> -> vector<1x10xf32>
    %c0_180 = arith.constant 0 : index
    %c0_181 = arith.constant 0 : index
    %189 = vector.load %arg9[%c0_180, %c0_181] : memref<1x10xf32, #tpu.memory_space<vmem>>, vector<1x10xf32>
    %190 = arith.addf %188, %189 : vector<1x10xf32>
    %cst_182 = arith.constant dense<0xFF800000> : vector<1xf32>
    %191 = vector.multi_reduction <maximumf>, %190, %cst_182 [1] : vector<1x10xf32> to vector<1xf32>
    %192 = vector.shape_cast %191 : vector<1xf32> to vector<1x1xf32>
    %193 = vector.broadcast %192 : vector<1x1xf32> to vector<1x10xf32>
    %194 = arith.subf %190, %193 : vector<1x10xf32>
    %195 = math.exp %194 : vector<1x10xf32>
    %cst_183 = arith.constant dense<0.000000e+00> : vector<1xf32>
    %196 = vector.multi_reduction <add>, %195, %cst_183 [1] : vector<1x10xf32> to vector<1xf32>
    %197 = vector.shape_cast %196 : vector<1xf32> to vector<1x1xf32>
    %198 = math.log %197 : vector<1x1xf32>
    %199 = vector.broadcast %198 : vector<1x1xf32> to vector<1x10xf32>
    %200 = arith.subf %194, %199 : vector<1x10xf32>
    %c0_184 = arith.constant 0 : index
    %c0_185 = arith.constant 0 : index
    %c0_186 = arith.constant 0 : index
    %201 = vector.load %arg10[%c0_184, %c0_185, %c0_186] : memref<1x1x10xf32, #tpu.memory_space<vmem>>, vector<1x1x10xf32>
    %202 = vector.shape_cast %201 : vector<1x1x10xf32> to vector<1x10xf32>
    %203 = vector.shape_cast %200 : vector<1x10xf32> to vector<1x1x10xf32>
    tpu.vector_store %arg10[%c0_184, %c0_185, %c0_186], %203 {strides = array<i32>} : memref<1x1x10xf32, #tpu.memory_space<vmem>>, vector<1x1x10xf32>,
    return
  }
  func.func @transform_0(%arg0: i32) -> (i32, i32, i32, i32) {
    %c0_i32 = arith.constant 0 : i32
    %c0_i32_0 = arith.constant 0 : i32
    %c0_i32_1 = arith.constant 0 : i32
    %c0_i32_2 = arith.constant 0 : i32
    return %arg0, %c0_i32, %c0_i32_0, %c0_i32_1 : i32, i32, i32, i32
  }
  func.func @transform_1(%arg0: i32) -> (i32, i32, i32, i32) {
    %c0_i32 = arith.constant 0 : i32
    %c0_i32_0 = arith.constant 0 : i32
    %c0_i32_1 = arith.constant 0 : i32
    %c0_i32_2 = arith.constant 0 : i32
    %c0_i32_3 = arith.constant 0 : i32
    return %c0_i32, %c0_i32_0, %c0_i32_1, %c0_i32_2 : i32, i32, i32, i32
  }
  func.func @transform_2(%arg0: i32) -> (i32, i32) {
    %c0_i32 = arith.constant 0 : i32
    %c0_i32_0 = arith.constant 0 : i32
    %c0_i32_1 = arith.constant 0 : i32
    return %c0_i32, %c0_i32_0 : i32, i32
  }
  func.func @transform_3(%arg0: i32) -> (i32, i32, i32, i32) {
    %c0_i32 = arith.constant 0 : i32
    %c0_i32_0 = arith.constant 0 : i32
    %c0_i32_1 = arith.constant 0 : i32
    %c0_i32_2 = arith.constant 0 : i32
    %c0_i32_3 = arith.constant 0 : i32
    return %c0_i32, %c0_i32_0, %c0_i32_1, %c0_i32_2 : i32, i32, i32, i32
  }
  func.func @transform_4(%arg0: i32) -> (i32, i32) {
    %c0_i32 = arith.constant 0 : i32
    %c0_i32_0 = arith.constant 0 : i32
    %c0_i32_1 = arith.constant 0 : i32
    return %c0_i32, %c0_i32_0 : i32, i32
  }
  func.func @transform_5(%arg0: i32) -> (i32, i32, i32) {
    %c0_i32 = arith.constant 0 : i32
    %c0_i32_0 = arith.constant 0 : i32
    %c0_i32_1 = arith.constant 0 : i32
    %c0_i32_2 = arith.constant 0 : i32
    return %c0_i32, %c0_i32_0, %c0_i32_1 : i32, i32, i32
  }
  func.func @transform_6(%arg0: i32) -> (i32, i32) {
    %c0_i32 = arith.constant 0 : i32
    %c0_i32_0 = arith.constant 0 : i32
    %c0_i32_1 = arith.constant 0 : i32
    return %c0_i32, %c0_i32_0 : i32, i32
  }
  func.func @transform_7(%arg0: i32) -> (i32, i32) {
    %c0_i32 = arith.constant 0 : i32
    %c0_i32_0 = arith.constant 0 : i32
    %c0_i32_1 = arith.constant 0 : i32
    return %c0_i32, %c0_i32_0 : i32, i32
  }
  func.func @transform_8(%arg0: i32) -> (i32, i32) {
    %c0_i32 = arith.constant 0 : i32
    %c0_i32_0 = arith.constant 0 : i32
    %c0_i32_1 = arith.constant 0 : i32
    return %c0_i32, %c0_i32_0 : i32, i32
  }
  func.func @transform_9(%arg0: i32) -> (i32, i32, i32) {
    %c0_i32 = arith.constant 0 : i32
    %c0_i32_0 = arith.constant 0 : i32
    %c0_i32_1 = arith.constant 0 : i32
    return %arg0, %c0_i32, %c0_i32_0 : i32, i32, i32
  }
}

</mosaic_0001>

<llo_original>
// kernel: net_s_forward.1
$region0: #{net_s_forward.1}
  #allocation0 [shape = 'u32[]', space=smem, size = 0x4, offset = 0x4, fixed_abs, tag = 'smem constant byte address 0x4 - core index']
  #allocation1 [shape = 'u32[144,128]{1,0:T(1,128)}', space=vmem, size = 0x12000, scoped, tag = 'internal scratch']
  %s0 = inlined_call_operand.vmem [shape: bf16[2,2,14,28], index: 0, kind: input, shape index: {}]
  %s1 = inlined_call_operand.vmem [shape: bf16[2,5,28,240], index: 1, kind: input, shape index: {}]
  %s2 = inlined_call_operand.vmem [shape: f32[1,240], index: 2, kind: input, shape index: {}]
  %s3 = inlined_call_operand.vmem [shape: bf16[2,5,240,200], index: 3, kind: input, shape index: {}]
  %s4 = inlined_call_operand.vmem [shape: f32[1,200], index: 4, kind: input, shape index: {}]
  %s5 = inlined_call_operand.vmem [shape: bf16[4,200,500], index: 5, kind: input, shape index: {}]
  %s6 = inlined_call_operand.vmem [shape: f32[1,500], index: 6, kind: input, shape index: {}]
  %s7 = inlined_call_operand.vmem [shape: bf16[500,10], index: 7, kind: input, shape index: {}]
  %s8 = inlined_call_operand.vmem [shape: f32[1,10], index: 8, kind: input, shape index: {}]
  %s9 = inlined_call_operand.hbm [shape: f32[2,1,10], index: 9, kind: output, shape index: {}]
  %s10 = sld [smem:[#allocation0]]
  $region69: #{net_s_forward.1} parent=0
    _
  %s12 = ssub.s32 1, %s10
  %s13 = scalar_select 0, %s12, %s10
  $region1: #{net_s_forward.1} parent=0
    #allocation2 [shape = 'u8[1024]{0}', space=vmem, size = 0x400, scoped, tag = 'output window, operand 0']
    #allocation3 [shape = 's32[2]{0}', space=sflag, size = 0x8, scoped, tag = 'scoped memory for net_s_forward.1']
    %14 = vsyncpa [#allocation3], 0
    %s15 = scalar_lea.sflag [#allocation3], 1
    %16 = vsyncpa %s15, 0
    loop: start=0, step=1, limit=4
    $region2: #{net_s_forward.1} parent=1 // loop_pre_header
      _
    $region3: #{net_s_forward.1} parent=1 // loop_header
      %s18 = sphi 0, %s22
      %p19 = scmp.ge.s32.totalorder %s18, 4
      %s28 = sphi 0, %s30
      %s31 = sphi 0, %s28
      %s32 = sphi 0, %s31
      %s48 = sphi 0, %s32
      %s52 = sphi 0, %s52
      %s54 = sphi 0, %s52
      %s55 = sphi 0, %s54
      %s69 = sphi 0, %s55
      %s73 = sphi 0, %s73
      %s75 = sphi 0, %s73
      %s76 = sphi 0, %s75
      %s90 = sphi 0, %s76
      %s94 = sphi 0, %s94
      %s96 = sphi 0, %s94
      %s97 = sphi 0, %s96
      %s111 = sphi 0, %s97
      %s115 = sphi 0, %s115
      %s117 = sphi 0, %s115
      %s118 = sphi 0, %s117
      %s132 = sphi 0, %s118
      %s136 = sphi 0, %s136
      %s138 = sphi 0, %s136
      %s139 = sphi 0, %s138
      %s153 = sphi 0, %s139
      %s157 = sphi 0, %s157
      %s159 = sphi 0, %s157
      %s160 = sphi 0, %s159
      %s174 = sphi 0, %s160
      %s178 = sphi 0, %s178
      %s180 = sphi 0, %s178
      %s181 = sphi 0, %s180
      %s195 = sphi 0, %s181
      %s199 = sphi 0, %s199
      %s201 = sphi 0, %s199
      %s202 = sphi 0, %s201
      %s216 = sphi 0, %s202
      %s222 = sphi 0, %s224
      %s225 = sphi 0, %s222
      %s226 = sphi 0, %s225
      %s242 = sphi 0, %s226
    $region4: #{net_s_forward.1} parent=1 // loop_header_branch
      %21 = sbr.rel (%p19) target = $region8
    $region5: #{net_s_forward.1} parent=1 // loop_body
      %s23 = ssub.s32 %s18, 1
      %s24 = ssub.s32 %s18, 2
      %s25 = sadd.s32 %s18, 1
      %s26 = ssub.s32 %s18, %s25
      %p27 = scmp.eq.s32.totalorder %s26, 0
      %s29 = sadd.s32 %s28, 1
      %s30 = scalar_select %p27, %s28, %s29
      %p33 = pneg %p27
      %p34 = scmp.eq.s32.totalorder %s18, 1
      %p35 = por %p33, %p34
      %p36 = scmp.ne.s32.totalorder %s28, %s31
      %p37 = scmp.eq.s32.totalorder %s18, 0
      %p38 = por %p36, %p37
      %p39 = scmp.ne.s32.totalorder %s28, %s31
      %p40 = scmp.eq.s32.totalorder %s23, 1
      %p41 = por %p39, %p40
      %p42 = scmp.ne.s32.totalorder %s31, %s32
      %p43 = scmp.eq.s32.totalorder %s23, 0
      %p44 = por %p42, %p43
      %p45 = scmp.ne.s32.totalorder %s31, %s32
      %p46 = scmp.eq.s32.totalorder %s24, 1
      %p47 = por %p45, %p46
      %p49 = scmp.ne.s32.totalorder %s32, %s48
      %p50 = scmp.eq.s32.totalorder %s24, 0
      %p51 = por %p49, %p50
      %s53 = sadd.s32 %s52, 1
      %p56 = scmp.eq.s32.totalorder %s18, 1
      %p57 = scmp.ne.s32.totalorder %s52, %s54
      %p58 = scmp.eq.s32.totalorder %s18, 0
      %p59 = por %p57, %p58
      %p60 = scmp.ne.s32.totalorder %s52, %s54
      %p61 = scmp.eq.s32.totalorder %s23, 1
      %p62 = por %p60, %p61
      %p63 = scmp.ne.s32.totalorder %s54, %s55
      %p64 = scmp.eq.s32.totalorder %s23, 0
      %p65 = por %p63, %p64
      %p66 = scmp.ne.s32.totalorder %s54, %s55
      %p67 = scmp.eq.s32.totalorder %s24, 1
      %p68 = por %p66, %p67
      %p70 = scmp.ne.s32.totalorder %s55, %s69
      %p71 = scmp.eq.s32.totalorder %s24, 0
      %p72 = por %p70, %p71
      %s74 = sadd.s32 %s73, 1
      %p77 = scmp.eq.s32.totalorder %s18, 1
      %p78 = scmp.ne.s32.totalorder %s73, %s75
      %p79 = scmp.eq.s32.totalorder %s18, 0
      %p80 = por %p78, %p79
      %p81 = scmp.ne.s32.totalorder %s73, %s75
      %p82 = scmp.eq.s32.totalorder %s23, 1
      %p83 = por %p81, %p82
      %p84 = scmp.ne.s32.totalorder %s75, %s76
      %p85 = scmp.eq.s32.totalorder %s23, 0
      %p86 = por %p84, %p85
      %p87 = scmp.ne.s32.totalorder %s75, %s76
      %p88 = scmp.eq.s32.totalorder %s24, 1
      %p89 = por %p87, %p88
      %p91 = scmp.ne.s32.totalorder %s76, %s90
      %p92 = scmp.eq.s32.totalorder %s24, 0
      %p93 = por %p91, %p92
      %s95 = sadd.s32 %s94, 1
      %p98 = scmp.eq.s32.totalorder %s18, 1
      %p99 = scmp.ne.s32.totalorder %s94, %s96
      %p100 = scmp.eq.s32.totalorder %s18, 0
      %p101 = por %p99, %p100
      %p102 = scmp.ne.s32.totalorder %s94, %s96
      %p103 = scmp.eq.s32.totalorder %s23, 1
      %p104 = por %p102, %p103
      %p105 = scmp.ne.s32.totalorder %s96, %s97
      %p106 = scmp.eq.s32.totalorder %s23, 0
      %p107 = por %p105, %p106
      %p108 = scmp.ne.s32.totalorder %s96, %s97
      %p109 = scmp.eq.s32.totalorder %s24, 1
      %p110 = por %p108, %p109
      %p112 = scmp.ne.s32.totalorder %s97, %s111
      %p113 = scmp.eq.s32.totalorder %s24, 0
      %p114 = por %p112, %p113
      %s116 = sadd.s32 %s115, 1
      %p119 = scmp.eq.s32.totalorder %s18, 1
      %p120 = scmp.ne.s32.totalorder %s115, %s117
      %p121 = scmp.eq.s32.totalorder %s18, 0
      %p122 = por %p120, %p121
      %p123 = scmp.ne.s32.totalorder %s115, %s117
      %p124 = scmp.eq.s32.totalorder %s23, 1
      %p125 = por %p123, %p124
      %p126 = scmp.ne.s32.totalorder %s117, %s118
      %p127 = scmp.eq.s32.totalorder %s23, 0
      %p128 = por %p126, %p127
      %p129 = scmp.ne.s32.totalorder %s117, %s118
      %p130 = scmp.eq.s32.totalorder %s24, 1
      %p131 = por %p129, %p130
      %p133 = scmp.ne.s32.totalorder %s118, %s132
      %p134 = scmp.eq.s32.totalorder %s24, 0
      %p135 = por %p133, %p134
      %s137 = sadd.s32 %s136, 1
      %p140 = scmp.eq.s32.totalorder %s18, 1
      %p141 = scmp.ne.s32.totalorder %s136, %s138
      %p142 = scmp.eq.s32.totalorder %s18, 0
      %p143 = por %p141, %p142
      %p144 = scmp.ne.s32.totalorder %s136, %s138
      %p145 = scmp.eq.s32.totalorder %s23, 1
      %p146 = por %p144, %p145
      %p147 = scmp.ne.s32.totalorder %s138, %s139
      %p148 = scmp.eq.s32.totalorder %s23, 0
      %p149 = por %p147, %p148
      %p150 = scmp.ne.s32.totalorder %s138, %s139
      %p151 = scmp.eq.s32.totalorder %s24, 1
      %p152 = por %p150, %p151
      %p154 = scmp.ne.s32.totalorder %s139, %s153
      %p155 = scmp.eq.s32.totalorder %s24, 0
      %p156 = por %p154, %p155
      %s158 = sadd.s32 %s157, 1
      %p161 = scmp.eq.s32.totalorder %s18, 1
      %p162 = scmp.ne.s32.totalorder %s157, %s159
      %p163 = scmp.eq.s32.totalorder %s18, 0
      %p164 = por %p162, %p163
      %p165 = scmp.ne.s32.totalorder %s157, %s159
      %p166 = scmp.eq.s32.totalorder %s23, 1
      %p167 = por %p165, %p166
      %p168 = scmp.ne.s32.totalorder %s159, %s160
      %p169 = scmp.eq.s32.totalorder %s23, 0
      %p170 = por %p168, %p169
      %p171 = scmp.ne.s32.totalorder %s159, %s160
      %p172 = scmp.eq.s32.totalorder %s24, 1
      %p173 = por %p171, %p172
      %p175 = scmp.ne.s32.totalorder %s160, %s174
      %p176 = scmp.eq.s32.totalorder %s24, 0
      %p177 = por %p175, %p176
      %s179 = sadd.s32 %s178, 1
      %p182 = scmp.eq.s32.totalorder %s18, 1
      %p183 = scmp.ne.s32.totalorder %s178, %s180
      %p184 = scmp.eq.s32.totalorder %s18, 0
      %p185 = por %p183, %p184
      %p186 = scmp.ne.s32.totalorder %s178, %s180
      %p187 = scmp.eq.s32.totalorder %s23, 1
      %p188 = por %p186, %p187
      %p189 = scmp.ne.s32.totalorder %s180, %s181
      %p190 = scmp.eq.s32.totalorder %s23, 0
      %p191 = por %p189, %p190
      %p192 = scmp.ne.s32.totalorder %s180, %s181
      %p193 = scmp.eq.s32.totalorder %s24, 1
      %p194 = por %p192, %p193
      %p196 = scmp.ne.s32.totalorder %s181, %s195
      %p197 = scmp.eq.s32.totalorder %s24, 0
      %p198 = por %p196, %p197
      %s200 = sadd.s32 %s199, 1
      %p203 = scmp.eq.s32.totalorder %s18, 1
      %p204 = scmp.ne.s32.totalorder %s199, %s201
      %p205 = scmp.eq.s32.totalorder %s18, 0
      %p206 = por %p204, %p205
      %p207 = scmp.ne.s32.totalorder %s199, %s201
      %p208 = scmp.eq.s32.totalorder %s23, 1
      %p209 = por %p207, %p208
      %p210 = scmp.ne.s32.totalorder %s201, %s202
      %p211 = scmp.eq.s32.totalorder %s23, 0
      %p212 = por %p210, %p211
      %p213 = scmp.ne.s32.totalorder %s201, %s202
      %p214 = scmp.eq.s32.totalorder %s24, 1
      %p215 = por %p213, %p214
      %p217 = scmp.ne.s32.totalorder %s202, %s216
      %p218 = scmp.eq.s32.totalorder %s24, 0
      %p219 = por %p217, %p218
      %s220 = ssub.s32 %s18, %s25
      %p221 = scmp.eq.s32.totalorder %s220, 0
      %s223 = sadd.s32 %s222, 1
      %s224 = scalar_select %p221, %s222, %s223
      %p227 = pneg %p221
      %p228 = scmp.eq.s32.totalorder %s18, 1
      %p229 = por %p227, %p228
      %p230 = scmp.ne.s32.totalorder %s222, %s225
      %p231 = scmp.eq.s32.totalorder %s18, 0
      %p232 = por %p230, %p231
      %p233 = scmp.ne.s32.totalorder %s222, %s225
      %p234 = scmp.eq.s32.totalorder %s23, 1
      %p235 = por %p233, %p234
      %p236 = scmp.ne.s32.totalorder %s225, %s226
      %p237 = scmp.eq.s32.totalorder %s23, 0
      %p238 = por %p236, %p237
      %p239 = scmp.ne.s32.totalorder %s225, %s226
      %p240 = scmp.eq.s32.totalorder %s24, 1
      %p241 = por %p239, %p240
      %p243 = scmp.ne.s32.totalorder %s226, %s242
      %p244 = scmp.eq.s32.totalorder %s24, 0
      %p245 = por %p243, %p244
      %p246 = scmp.le.s32.totalorder 1, %s18
      %p247 = scmp.lt.s32.totalorder %s18, 3
      %p248 = pnand %p246, %p247
      %p249 = pneg %p248
      // Predicated region
      $region9: #{net_s_forward.1} parent=5 // pred_check
        _
      $region10: #{net_s_forward.1} parent=5 // pred_check_branch
        %251 = sbr.rel (%p248) target = $region12
      $region11: #{net_s_forward.1} parent=5 // pred_region
        %s252 = ssub.s32 %s18, 1
        // Predicated region
        $region13: #{net_s_forward.1} parent=11 // pred_check
          %p253 = pneg %p65
        $region14: #{net_s_forward.1} parent=11 // pred_check_branch
          %255 = sbr.rel (%p253) target = $region16
        $region15: #{net_s_forward.1} parent=11 // pred_region
          _
        $region16: #{net_s_forward.1} parent=11 // pred_fallthru
          _
        // Predicated region
        $region17: #{net_s_forward.1} parent=11 // pred_check
          %p256 = pneg %p86
        $region18: #{net_s_forward.1} parent=11 // pred_check_branch
          %258 = sbr.rel (%p256) target = $region20
        $region19: #{net_s_forward.1} parent=11 // pred_region
          _
        $region20: #{net_s_forward.1} parent=11 // pred_fallthru
          _
        // Predicated region
        $region21: #{net_s_forward.1} parent=11 // pred_check
          %p259 = pneg %p107
        $region22: #{net_s_forward.1} parent=11 // pred_check_branch
          %261 = sbr.rel (%p259) target = $region24
        $region23: #{net_s_forward.1} parent=11 // pred_region
          _
        $region24: #{net_s_forward.1} parent=11 // pred_fallthru
          _
        // Predicated region
        $region25: #{net_s_forward.1} parent=11 // pred_check
          %p262 = pneg %p128
        $region26: #{net_s_forward.1} parent=11 // pred_check_branch
          %264 = sbr.rel (%p262) target = $region28
        $region27: #{net_s_forward.1} parent=11 // pred_region
          _
        $region28: #{net_s_forward.1} parent=11 // pred_fallthru
          _
        // Predicated region
        $region29: #{net_s_forward.1} parent=11 // pred_check
          %p265 = pneg %p149
        $region30: #{net_s_forward.1} parent=11 // pred_check_branch
          %267 = sbr.rel (%p265) target = $region32
        $region31: #{net_s_forward.1} parent=11 // pred_region
          _
        $region32: #{net_s_forward.1} parent=11 // pred_fallthru
          _
        // Predicated region
        $region33: #{net_s_forward.1} parent=11 // pred_check
          %p268 = pneg %p170
        $region34: #{net_s_forward.1} parent=11 // pred_check_branch
          %270 = sbr.rel (%p268) target = $region36
        $region35: #{net_s_forward.1} parent=11 // pred_region
          _
        $region36: #{net_s_forward.1} parent=11 // pred_fallthru
          _
        // Predicated region
        $region37: #{net_s_forward.1} parent=11 // pred_check
          %p271 = pneg %p191
        $region38: #{net_s_forward.1} parent=11 // pred_check_branch
          %273 = sbr.rel (%p271) target = $region40
        $region39: #{net_s_forward.1} parent=11 // pred_region
          _
        $region40: #{net_s_forward.1} parent=11 // pred_fallthru
          _
        // Predicated region
        $region41: #{net_s_forward.1} parent=11 // pred_check
          %p274 = pneg %p212
        $region42: #{net_s_forward.1} parent=11 // pred_check_branch
          %276 = sbr.rel (%p274) target = $region44
        $region43: #{net_s_forward.1} parent=11 // pred_region
          _
        $region44: #{net_s_forward.1} parent=11 // pred_fallthru
          _
      $region12: #{net_s_forward.1} parent=5 // pred_fallthru
        _
      %p277 = scmp.lt.s32.totalorder %s18, 2
      // Predicated region
      $region45: #{net_s_forward.1} parent=5 // pred_check
        %p278 = pneg %p277
      $region46: #{net_s_forward.1} parent=5 // pred_check_branch
        %280 = sbr.rel (%p278) target = $region48
      $region47: #{net_s_forward.1} parent=5 // pred_region
        // Predicated region
        $region49: #{net_s_forward.1} parent=47 // pred_check
          %p281 = pneg %p38
        $region50: #{net_s_forward.1} parent=47 // pred_check_branch
          %283 = sbr.rel (%p281) target = $region52
        $region51: #{net_s_forward.1} parent=47 // pred_region
          %p284 = scmp.lt.s32.totalorder %s18, 1
          %s285 = scalar_select %p284, %s18, 1
          %s286 = smul.addr %s285, 4
          %s287 = smul.addr %s286, 4
          %s288 = scalar_lea.vmem %s0, %s287
        $region52: #{net_s_forward.1} parent=47 // pred_fallthru
          _
      $region48: #{net_s_forward.1} parent=5 // pred_fallthru
        _
      %p289 = scmp.le.s32.totalorder 1, %s18
      %p290 = scmp.lt.s32.totalorder %s18, 3
      %p291 = pnand %p289, %p290
      %p292 = pneg %p291
      // Predicated region
      $region53: #{net_s_forward.1} parent=5 // pred_check
        _
      $region54: #{net_s_forward.1} parent=5 // pred_check_branch
        %294 = sbr.rel (%p291) target = $region56
      $region55: #{net_s_forward.1} parent=5 // pred_region
        %s295 = ssub.s32 %s18, 1
        %p296 = scmp.lt.s32.totalorder %s23, 1
        %s297 = scalar_select %p296, %s23, 1
        %s298 = smul.addr %s297, 4
        %s299 = smul.addr %s298, 4
        %s300 = scalar_lea.vmem %s0, %s299
        %p301 = pneg %p44
        %p302 = pneg %p41
        %p303 = pneg %p65
        %p304 = pneg %p62
        %p305 = pneg %p86
        %p306 = pneg %p83
        %p307 = pneg %p107
        %p308 = pneg %p104
        %p309 = pneg %p128
        %p310 = pneg %p125
        %p311 = pneg %p149
        %p312 = pneg %p146
        %p313 = pneg %p170
        %p314 = pneg %p167
        %p315 = pneg %p191
        %p316 = pneg %p188
        %p317 = pneg %p212
        %p318 = pneg %p209
        %p319 = pneg %p238
        %p320 = pneg %p235
        %s321 = sand.u32 %s225, 1
        %s322 = scalar_lea.sflag [#allocation3], %s321
        %s323 = sand.u32 %s225, 1
        %s324 = scalar_lea.vmem [#allocation2], %s323
        %p325 = scmp.lt.s32.totalorder %s23, 1
        %s326 = scalar_select %p325, %s23, 1
        %s327 = smul.addr %s326, 4
        %s328 = smul.addr %s327, 4
        %s329 = scalar_lea.vmem %s0, %s328
        %v331 = vld [vmem:[%s1] sm:$0xff]
        %v332 = vld [vmem:[%s1 + $0x8] sm:$0xff]
        %v333 = vld [vmem:[%s1 + $0x10] sm:$0xff]
        %v334 = vld [vmem:[%s1 + $0x18] sm:$0x33]
        %s335 = scalar_lea.vmem %s1, 32
        %v336 = vld [vmem:[%s335] sm:$0xff]
        %v337 = vld [vmem:[%s335 + $0x8] sm:$0xff]
        %v338 = vld [vmem:[%s335 + $0x10] sm:$0xff]
        %v339 = vld [vmem:[%s335 + $0x18] sm:$0x33]
        %s340 = scalar_lea.vmem %s1, 64
        %v341 = vld [vmem:[%s340] sm:$0xff]
        %v342 = vld [vmem:[%s340 + $0x8] sm:$0xff]
        %v343 = vld [vmem:[%s340 + $0x10] sm:$0xff]
        %v344 = vld [vmem:[%s340 + $0x18] sm:$0x33]
        %s345 = scalar_lea.vmem %s1, 96
        %v346 = vld [vmem:[%s345] sm:$0xff]
        %v347 = vld [vmem:[%s345 + $0x8] sm:$0xff]
        %v348 = vld [vmem:[%s345 + $0x10] sm:$0xff]
        %v349 = vld [vmem:[%s345 + $0x18] sm:$0x33]
        %s350 = scalar_lea.vmem %s1, 128
        %v351 = vld [vmem:[%s350] sm:$0xff]
        %v352 = vld [vmem:[%s350 + $0x8] sm:$0xff]
        %v353 = vld [vmem:[%s350 + $0x10] sm:$0xff]
        %v354 = vld [vmem:[%s350 + $0x18] sm:$0x33]
        %s355 = scalar_lea.vmem %s1, 160
        %v356 = vld [vmem:[%s355] sm:$0xff]
        %v357 = vld [vmem:[%s355 + $0x8] sm:$0xff]
        %v358 = vld [vmem:[%s355 + $0x10] sm:$0xff]
        %v359 = vld [vmem:[%s355 + $0x18] sm:$0x33]
        %s360 = scalar_lea.vmem %s1, 192
        %v361 = vld [vmem:[%s360] sm:$0xff]
        %v362 = vld [vmem:[%s360 + $0x8] sm:$0xff]
        %v363 = vld [vmem:[%s360 + $0x10] sm:$0xff]
        %v364 = vld [vmem:[%s360 + $0x18] sm:$0x33]
        %s365 = scalar_lea.vmem %s1, 224
        %v366 = vld [vmem:[%s365] sm:$0xff]
        %v367 = vld [vmem:[%s365 + $0x8] sm:$0xff]
        %v368 = vld [vmem:[%s365 + $0x10] sm:$0xff]
        %v369 = vld [vmem:[%s365 + $0x18] sm:$0x33]
        %s370 = scalar_lea.vmem %s1, 256
        %v371 = vld [vmem:[%s370] sm:$0xff]
        %v372 = vld [vmem:[%s370 + $0x8] sm:$0xff]
        %v373 = vld [vmem:[%s370 + $0x10] sm:$0xff]
        %v374 = vld [vmem:[%s370 + $0x18] sm:$0x33]
        %s375 = scalar_lea.vmem %s1, 288
        %v376 = vld [vmem:[%s375] sm:$0xff]
        %v377 = vld [vmem:[%s375 + $0x8] sm:$0xff]
        %v378 = vld [vmem:[%s375 + $0x10] sm:$0xff]
        %v379 = vld [vmem:[%s375 + $0x18] sm:$0x33]
        %v380 = vld [vmem:[%s329] sm:$0xf]
        %v381 = vld [vmem:[%s329 + $0x4] sm:$0x3]
        %s382 = scalar_lea.vmem %s329, 8
        %v383 = vld [vmem:[%s382] sm:$0xf]
        %v384 = vld [vmem:[%s382 + $0x4] sm:$0x3]
        %v385 = vld [vmem:[%s329 + $0x4] sm:$0x7]
        %v386 = vld [vmem:[%s382 + $0x4] sm:$0x7]
        %v387 = vld [vmem:[%s329] sm:$0xe]
        %v388 = vld [vmem:[%s2] sm:$0x3]
        %v391 = vunpack.c.l.b16 %v380
        %v392 = vunpack.c.l.b16 %v381
        %v393 = vpack.c.b16 %v392, %v391
        %v398 = vunpack.c.l.b16 %v331
        %v399 = vunpack.c.h.b16 %v331
        %v400 = vunpack.c.l.b16 %v332
        %v401 = vunpack.c.h.b16 %v332
        %v402 = vunpack.c.l.b16 %v333
        %v403 = vunpack.c.h.b16 %v333
        %v404 = vunpack.c.l.b16 %v334
        %v405 = vunpack.c.h.b16 %v334
        %v406 = vpack.c.b16 %v400, %v398
        %v407 = vpack.c.b16 %v401, %v399
        %v408 = vpack.c.b16 %v404, %v402
        %v409 = vpack.c.b16 %v405, %v403
        %vm412 = vcmask 228352
        %v414 = vsel %vm412, %v393, 0
        %vm416 = vcmask 1045504
        %v418 = vsel %vm416, %v408, 0
        %v421 = vsel %vm416, %v409, 0
        %423 = vmatprep.subr.bf16.mxu0 %v407
        %424 = vmatpush1.bf16.msra.mxu0 %v406
        %425 = vmatprep.subr.bf16.mxu0 %v421
        %426 = vmatpush1.bf16.msra.mxu0 %v418
        %427 = vmatprep.subr.bf16.mxu0 0
        %428 = vmatpush1.bf16.msra.mxu0 0
        %429 = vmatprep.subr.bf16.mxu0 0
        %430 = vmatpush1.bf16.msra.mxu0 0
        %431 = vmatprep.subr.bf16.mxu0 0
        %432 = vmatpush1.bf16.msra.mxu0 0
        %433 = vmatprep.subr.bf16.mxu0 0
        %434 = vmatpush1.bf16.msra.mxu0 0
        %435 = vmatprep.subr.bf16.mxu0 0
        %436 = vmatpush1.bf16.msra.mxu0 0
        %437 = vmatprep.subr.bf16.mxu0 0
        %438 = vmatpush1.bf16.msra.mxu0 0
        %439 = vmatprep.subr.bf16.mxu0 0
        %440 = vmatpush1.bf16.msra.mxu0 0
        %441 = vmatprep.subr.bf16.mxu0 0
        %442 = vmatpush1.bf16.msra.mxu0 0
        %443 = vmatprep.subr.bf16.mxu0 0
        %444 = vmatpush1.bf16.msra.mxu0 0
        %445 = vmatprep.subr.bf16.mxu0 0
        %446 = vmatpush1.bf16.msra.mxu0 0
        %447 = vmatprep.subr.bf16.mxu0 0
        %448 = vmatpush1.bf16.msra.mxu0 0
        %449 = vmatprep.subr.bf16.mxu0 0
        %450 = vmatpush1.bf16.msra.mxu0 0
        %451 = vmatprep.subr.bf16.mxu0 0
        %452 = vmatpush1.bf16.msra.mxu0 0
        %453 = vmatprep.subr.bf16.mxu0 0
        %454 = vmatpush1.bf16.msra.mxu0 0
        %455 = vmatprep.mubr.bf16.mxu0 0
        %456 = vmatmul.mubr.bf16.gmra.mrb[0].mxu0 %v414
        %v457 = vpop.f32.mrb[0].mxu0
        %v458 = vadd.f32 0.0, %v457
        %v459 = vpop.f32.mrb[0].mxu0
        %v460 = vadd.f32 0.0, %v459
        %v461 = vpop.f32.mrb[0].mxu0
        %v462 = vadd.f32 0.0, %v461
        %v463 = vpop.f32.mrb[0].mxu0
        %v464 = vadd.f32 0.0, %v463
        %465 = vdwg.mxu0
        %v467 = vlaneseq
        %v468 = vshrl.u32 %v467, 7
        %v469 = vsub.s32 0, %v468
        %v470 = vrot.slane %v388, %v469
        %v471 = vlaneseq
        %v472 = vshrl.u32 %v471, 7
        %v473 = vsub.s32 1, %v472
        %v474 = vrot.slane %v388, %v473
        %v477 = vadd.f32 %v470, %v458
        %v478 = vadd.f32 %v474, %v460
        %v479 = vadd.f32 %v470, %v462
        %v480 = vadd.f32 %v474, %v464
        %v483 = vunpack.c.l.b16 %v383
        %v484 = vunpack.c.l.b16 %v384
        %v485 = vpack.c.b16 %v484, %v483
        %v490 = vunpack.c.l.b16 %v336
        %v491 = vunpack.c.h.b16 %v336
        %v492 = vunpack.c.l.b16 %v337
        %v493 = vunpack.c.h.b16 %v337
        %v494 = vunpack.c.l.b16 %v338
        %v495 = vunpack.c.h.b16 %v338
        %v496 = vunpack.c.l.b16 %v339
        %v497 = vunpack.c.h.b16 %v339
        %v498 = vpack.c.b16 %v492, %v490
        %v499 = vpack.c.b16 %v493, %v491
        %v500 = vpack.c.b16 %v496, %v494
        %v501 = vpack.c.b16 %v497, %v495
        %v505 = vsel %vm412, %v485, 0
        %v508 = vsel %vm416, %v500, 0
        %v511 = vsel %vm416, %v501, 0
        %513 = vmatprep.subr.bf16.mxu0 %v499
        %514 = vmatpush1.bf16.msra.mxu0 %v498
        %515 = vmatprep.subr.bf16.mxu0 %v511
        %516 = vmatpush1.bf16.msra.mxu0 %v508
        %517 = vmatprep.subr.bf16.mxu0 0
        %518 = vmatpush1.bf16.msra.mxu0 0
        %519 = vmatprep.subr.bf16.mxu0 0
        %520 = vmatpush1.bf16.msra.mxu0 0
        %521 = vmatprep.subr.bf16.mxu0 0
        %522 = vmatpush1.bf16.msra.mxu0 0
        %523 = vmatprep.subr.bf16.mxu0 0
        %524 = vmatpush1.bf16.msra.mxu0 0
        %525 = vmatprep.subr.bf16.mxu0 0
        %526 = vmatpush1.bf16.msra.mxu0 0
        %527 = vmatprep.subr.bf16.mxu0 0
        %528 = vmatpush1.bf16.msra.mxu0 0
        %529 = vmatprep.subr.bf16.mxu0 0
        %530 = vmatpush1.bf16.msra.mxu0 0
        %531 = vmatprep.subr.bf16.mxu0 0
        %532 = vmatpush1.bf16.msra.mxu0 0
        %533 = vmatprep.subr.bf16.mxu0 0
        %534 = vmatpush1.bf16.msra.mxu0 0
        %535 = vmatprep.subr.bf16.mxu0 0
        %536 = vmatpush1.bf16.msra.mxu0 0
        %537 = vmatprep.subr.bf16.mxu0 0
        %538 = vmatpush1.bf16.msra.mxu0 0
        %539 = vmatprep.subr.bf16.mxu0 0
        %540 = vmatpush1.bf16.msra.mxu0 0
        %541 = vmatprep.subr.bf16.mxu0 0
        %542 = vmatpush1.bf16.msra.mxu0 0
        %543 = vmatprep.subr.bf16.mxu0 0
        %544 = vmatpush1.bf16.msra.mxu0 0
        %545 = vmatprep.mubr.bf16.mxu0 0
        %546 = vmatmul.mubr.bf16.gmra.mrb[0].mxu0 %v505
        %v547 = vpop.f32.mrb[0].mxu0
        %v548 = vadd.f32 0.0, %v547
        %v549 = vpop.f32.mrb[0].mxu0
        %v550 = vadd.f32 0.0, %v549
        %v551 = vpop.f32.mrb[0].mxu0
        %v552 = vadd.f32 0.0, %v551
        %v553 = vpop.f32.mrb[0].mxu0
        %v554 = vadd.f32 0.0, %v553
        %555 = vdwg.mxu0
        %v556 = vadd.f32 %v477, %v548
        %v557 = vadd.f32 %v478, %v550
        %v558 = vadd.f32 %v479, %v552
        %v559 = vadd.f32 %v480, %v554
        %v561 = vunpack.c.l.b16 %v385
        %v562 = vpack.c.b16 %v561, %v391
        %v564 = vshrl.u32 %v562, 16
        %v566 = vshll.u32 %v562, 16
        %v568 = vrot.slane %v566, 1
        %v569 = vor.u32 %v564, %v568
        %v574 = vunpack.c.l.b16 %v341
        %v575 = vunpack.c.h.b16 %v341
        %v576 = vunpack.c.l.b16 %v342
        %v577 = vunpack.c.h.b16 %v342
        %v578 = vunpack.c.l.b16 %v343
        %v579 = vunpack.c.h.b16 %v343
        %v580 = vunpack.c.l.b16 %v344
        %v581 = vunpack.c.h.b16 %v344
        %v582 = vpack.c.b16 %v576, %v574
        %v583 = vpack.c.b16 %v577, %v575
        %v584 = vpack.c.b16 %v580, %v578
        %v585 = vpack.c.b16 %v581, %v579
        %v589 = vsel %vm412, %v569, 0
        %v592 = vsel %vm416, %v584, 0
        %v595 = vsel %vm416, %v585, 0
        %597 = vmatprep.subr.bf16.mxu0 %v583
        %598 = vmatpush1.bf16.msra.mxu0 %v582
        %599 = vmatprep.subr.bf16.mxu0 %v595
        %600 = vmatpush1.bf16.msra.mxu0 %v592
        %601 = vmatprep.subr.bf16.mxu0 0
        %602 = vmatpush1.bf16.msra.mxu0 0
        %603 = vmatprep.subr.bf16.mxu0 0
        %604 = vmatpush1.bf16.msra.mxu0 0
        %605 = vmatprep.subr.bf16.mxu0 0
        %606 = vmatpush1.bf16.msra.mxu0 0
        %607 = vmatprep.subr.bf16.mxu0 0
        %608 = vmatpush1.bf16.msra.mxu0 0
        %609 = vmatprep.subr.bf16.mxu0 0
        %610 = vmatpush1.bf16.msra.mxu0 0
        %611 = vmatprep.subr.bf16.mxu0 0
        %612 = vmatpush1.bf16.msra.mxu0 0
        %613 = vmatprep.subr.bf16.mxu0 0
        %614 = vmatpush1.bf16.msra.mxu0 0
        %615 = vmatprep.subr.bf16.mxu0 0
        %616 = vmatpush1.bf16.msra.mxu0 0
        %617 = vmatprep.subr.bf16.mxu0 0
        %618 = vmatpush1.bf16.msra.mxu0 0
        %619 = vmatprep.subr.bf16.mxu0 0
        %620 = vmatpush1.bf16.msra.mxu0 0
        %621 = vmatprep.subr.bf16.mxu0 0
        %622 = vmatpush1.bf16.msra.mxu0 0
        %623 = vmatprep.subr.bf16.mxu0 0
        %624 = vmatpush1.bf16.msra.mxu0 0
        %625 = vmatprep.subr.bf16.mxu0 0
        %626 = vmatpush1.bf16.msra.mxu0 0
        %627 = vmatprep.subr.bf16.mxu0 0
        %628 = vmatpush1.bf16.msra.mxu0 0
        %629 = vmatprep.mubr.bf16.mxu0 0
        %630 = vmatmul.mubr.bf16.gmra.mrb[0].mxu0 %v589
        %v631 = vpop.f32.mrb[0].mxu0
        %v632 = vadd.f32 0.0, %v631
        %v633 = vpop.f32.mrb[0].mxu0
        %v634 = vadd.f32 0.0, %v633
        %v635 = vpop.f32.mrb[0].mxu0
        %v636 = vadd.f32 0.0, %v635
        %v637 = vpop.f32.mrb[0].mxu0
        %v638 = vadd.f32 0.0, %v637
        %639 = vdwg.mxu0
        %v640 = vadd.f32 %v556, %v632
        %v641 = vadd.f32 %v557, %v634
        %v642 = vadd.f32 %v558, %v636
        %v643 = vadd.f32 %v559, %v638
        %v645 = vunpack.c.l.b16 %v386
        %v646 = vpack.c.b16 %v645, %v483
        %v648 = vshrl.u32 %v646, 16
        %v650 = vshll.u32 %v646, 16
        %v652 = vrot.slane %v650, 1
        %v653 = vor.u32 %v648, %v652
        %v658 = vunpack.c.l.b16 %v346
        %v659 = vunpack.c.h.b16 %v346
        %v660 = vunpack.c.l.b16 %v347
        %v661 = vunpack.c.h.b16 %v347
        %v662 = vunpack.c.l.b16 %v348
        %v663 = vunpack.c.h.b16 %v348
        %v664 = vunpack.c.l.b16 %v349
        %v665 = vunpack.c.h.b16 %v349
        %v666 = vpack.c.b16 %v660, %v658
        %v667 = vpack.c.b16 %v661, %v659
        %v668 = vpack.c.b16 %v664, %v662
        %v669 = vpack.c.b16 %v665, %v663
        %v673 = vsel %vm412, %v653, 0
        %v676 = vsel %vm416, %v668, 0
        %v679 = vsel %vm416, %v669, 0
        %681 = vmatprep.subr.bf16.mxu0 %v667
        %682 = vmatpush1.bf16.msra.mxu0 %v666
        %683 = vmatprep.subr.bf16.mxu0 %v679
        %684 = vmatpush1.bf16.msra.mxu0 %v676
        %685 = vmatprep.subr.bf16.mxu0 0
        %686 = vmatpush1.bf16.msra.mxu0 0
        %687 = vmatprep.subr.bf16.mxu0 0
        %688 = vmatpush1.bf16.msra.mxu0 0
        %689 = vmatprep.subr.bf16.mxu0 0
        %690 = vmatpush1.bf16.msra.mxu0 0
        %691 = vmatprep.subr.bf16.mxu0 0
        %692 = vmatpush1.bf16.msra.mxu0 0
        %693 = vmatprep.subr.bf16.mxu0 0
        %694 = vmatpush1.bf16.msra.mxu0 0
        %695 = vmatprep.subr.bf16.mxu0 0
        %696 = vmatpush1.bf16.msra.mxu0 0
        %697 = vmatprep.subr.bf16.mxu0 0
        %698 = vmatpush1.bf16.msra.mxu0 0
        %699 = vmatprep.subr.bf16.mxu0 0
        %700 = vmatpush1.bf16.msra.mxu0 0
        %701 = vmatprep.subr.bf16.mxu0 0
        %702 = vmatpush1.bf16.msra.mxu0 0
        %703 = vmatprep.subr.bf16.mxu0 0
        %704 = vmatpush1.bf16.msra.mxu0 0
        %705 = vmatprep.subr.bf16.mxu0 0
        %706 = vmatpush1.bf16.msra.mxu0 0
        %707 = vmatprep.subr.bf16.mxu0 0
        %708 = vmatpush1.bf16.msra.mxu0 0
        %709 = vmatprep.subr.bf16.mxu0 0
        %710 = vmatpush1.bf16.msra.mxu0 0
        %711 = vmatprep.subr.bf16.mxu0 0
        %712 = vmatpush1.bf16.msra.mxu0 0
        %713 = vmatprep.mubr.bf16.mxu0 0
        %714 = vmatmul.mubr.bf16.gmra.mrb[0].mxu0 %v673
        %v715 = vpop.f32.mrb[0].mxu0
        %v716 = vadd.f32 0.0, %v715
        %v717 = vpop.f32.mrb[0].mxu0
        %v718 = vadd.f32 0.0, %v717
        %v719 = vpop.f32.mrb[0].mxu0
        %v720 = vadd.f32 0.0, %v719
        %v721 = vpop.f32.mrb[0].mxu0
        %v722 = vadd.f32 0.0, %v721
        %723 = vdwg.mxu0
        %v724 = vadd.f32 %v640, %v716
        %v725 = vadd.f32 %v641, %v718
        %v726 = vadd.f32 %v642, %v720
        %v727 = vadd.f32 %v643, %v722
        %v729 = vunpack.c.l.b16 %v387
        %v730 = vpack.c.b16 %v561, %v729
        %v731 = vrot.slane %v730, 1
        %v736 = vunpack.c.l.b16 %v351
        %v737 = vunpack.c.h.b16 %v351
        %v738 = vunpack.c.l.b16 %v352
        %v739 = vunpack.c.h.b16 %v352
        %v740 = vunpack.c.l.b16 %v353
        %v741 = vunpack.c.h.b16 %v353
        %v742 = vunpack.c.l.b16 %v354
        %v743 = vunpack.c.h.b16 %v354
        %v744 = vpack.c.b16 %v738, %v736
        %v745 = vpack.c.b16 %v739, %v737
        %v746 = vpack.c.b16 %v742, %v740
        %v747 = vpack.c.b16 %v743, %v741
        %v751 = vsel %vm412, %v731, 0
        %v754 = vsel %vm416, %v746, 0
        %v757 = vsel %vm416, %v747, 0
        %759 = vmatprep.subr.bf16.mxu0 %v745
        %760 = vmatpush1.bf16.msra.mxu0 %v744
        %761 = vmatprep.subr.bf16.mxu0 %v757
        %762 = vmatpush1.bf16.msra.mxu0 %v754
        %763 = vmatprep.subr.bf16.mxu0 0
        %764 = vmatpush1.bf16.msra.mxu0 0
        %765 = vmatprep.subr.bf16.mxu0 0
        %766 = vmatpush1.bf16.msra.mxu0 0
        %767 = vmatprep.subr.bf16.mxu0 0
        %768 = vmatpush1.bf16.msra.mxu0 0
        %769 = vmatprep.subr.bf16.mxu0 0
        %770 = vmatpush1.bf16.msra.mxu0 0
        %771 = vmatprep.subr.bf16.mxu0 0
        %772 = vmatpush1.bf16.msra.mxu0 0
        %773 = vmatprep.subr.bf16.mxu0 0
        %774 = vmatpush1.bf16.msra.mxu0 0
        %775 = vmatprep.subr.bf16.mxu0 0
        %776 = vmatpush1.bf16.msra.mxu0 0
        %777 = vmatprep.subr.bf16.mxu0 0
        %778 = vmatpush1.bf16.msra.mxu0 0
        %779 = vmatprep.subr.bf16.mxu0 0
        %780 = vmatpush1.bf16.msra.mxu0 0
        %781 = vmatprep.subr.bf16.mxu0 0
        %782 = vmatpush1.bf16.msra.mxu0 0
        %783 = vmatprep.subr.bf16.mxu0 0
        %784 = vmatpush1.bf16.msra.mxu0 0
        %785 = vmatprep.subr.bf16.mxu0 0
        %786 = vmatpush1.bf16.msra.mxu0 0
        %787 = vmatprep.subr.bf16.mxu0 0
        %788 = vmatpush1.bf16.msra.mxu0 0
        %789 = vmatprep.subr.bf16.mxu0 0
        %790 = vmatpush1.bf16.msra.mxu0 0
        %791 = vmatprep.mubr.bf16.mxu0 0
        %792 = vmatmul.mubr.bf16.gmra.mrb[0].mxu0 %v751
        %v793 = vpop.f32.mrb[0].mxu0
        %v794 = vadd.f32 0.0, %v793
        %v795 = vpop.f32.mrb[0].mxu0
        %v796 = vadd.f32 0.0, %v795
        %v797 = vpop.f32.mrb[0].mxu0
        %v798 = vadd.f32 0.0, %v797
        %v799 = vpop.f32.mrb[0].mxu0
        %v800 = vadd.f32 0.0, %v799
        %801 = vdwg.mxu0
        %v802 = vadd.f32 %v724, %v794
        %v803 = vadd.f32 %v725, %v796
        %v804 = vadd.f32 %v726, %v798
        %v805 = vadd.f32 %v727, %v800
        %v810 = vunpack.c.l.b16 %v356
        %v811 = vunpack.c.h.b16 %v356
        %v812 = vunpack.c.l.b16 %v357
        %v813 = vunpack.c.h.b16 %v357
        %v814 = vunpack.c.l.b16 %v358
        %v815 = vunpack.c.h.b16 %v358
        %v816 = vunpack.c.l.b16 %v359
        %v817 = vunpack.c.h.b16 %v359
        %v818 = vpack.c.b16 %v812, %v810
        %v819 = vpack.c.b16 %v813, %v811
        %v820 = vpack.c.b16 %v816, %v814
        %v821 = vpack.c.b16 %v817, %v815
        %v825 = vsel %vm416, %v820, 0
        %v828 = vsel %vm416, %v821, 0
        %830 = vmatprep.subr.bf16.mxu0 %v819
        %831 = vmatpush1.bf16.msra.mxu0 %v818
        %832 = vmatprep.subr.bf16.mxu0 %v828
        %833 = vmatpush1.bf16.msra.mxu0 %v825
        %834 = vmatprep.subr.bf16.mxu0 0
        %835 = vmatpush1.bf16.msra.mxu0 0
        %836 = vmatprep.subr.bf16.mxu0 0
        %837 = vmatpush1.bf16.msra.mxu0 0
        %838 = vmatprep.subr.bf16.mxu0 0
        %839 = vmatpush1.bf16.msra.mxu0 0
        %840 = vmatprep.subr.bf16.mxu0 0
        %841 = vmatpush1.bf16.msra.mxu0 0
        %842 = vmatprep.subr.bf16.mxu0 0
        %843 = vmatpush1.bf16.msra.mxu0 0
        %844 = vmatprep.subr.bf16.mxu0 0
        %845 = vmatpush1.bf16.msra.mxu0 0
        %846 = vmatprep.subr.bf16.mxu0 0
        %847 = vmatpush1.bf16.msra.mxu0 0
        %848 = vmatprep.subr.bf16.mxu0 0
        %849 = vmatpush1.bf16.msra.mxu0 0
        %850 = vmatprep.subr.bf16.mxu0 0
        %851 = vmatpush1.bf16.msra.mxu0 0
        %852 = vmatprep.subr.bf16.mxu0 0
        %853 = vmatpush1.bf16.msra.mxu0 0
        %854 = vmatprep.subr.bf16.mxu0 0
        %855 = vmatpush1.bf16.msra.mxu0 0
        %856 = vmatprep.subr.bf16.mxu0 0
        %857 = vmatpush1.bf16.msra.mxu0 0
        %858 = vmatprep.subr.bf16.mxu0 0
        %859 = vmatpush1.bf16.msra.mxu0 0
        %860 = vmatprep.subr.bf16.mxu0 0
        %861 = vmatpush1.bf16.msra.mxu0 0
        %862 = vmatprep.mubr.bf16.mxu0 0
        %863 = vmatmul.mubr.bf16.gmra.mrb[0].mxu0 %v414
        %v864 = vpop.f32.mrb[0].mxu0
        %v865 = vadd.f32 0.0, %v864
        %v866 = vpop.f32.mrb[0].mxu0
        %v867 = vadd.f32 0.0, %v866
        %v868 = vpop.f32.mrb[0].mxu0
        %v869 = vadd.f32 0.0, %v868
        %v870 = vpop.f32.mrb[0].mxu0
        %v871 = vadd.f32 0.0, %v870
        %872 = vdwg.mxu0
        %v873 = vadd.f32 %v470, %v865
        %v874 = vadd.f32 %v474, %v867
        %v875 = vadd.f32 %v470, %v869
        %v876 = vadd.f32 %v474, %v871
        %v881 = vunpack.c.l.b16 %v361
        %v882 = vunpack.c.h.b16 %v361
        %v883 = vunpack.c.l.b16 %v362
        %v884 = vunpack.c.h.b16 %v362
        %v885 = vunpack.c.l.b16 %v363
        %v886 = vunpack.c.h.b16 %v363
        %v887 = vunpack.c.l.b16 %v364
        %v888 = vunpack.c.h.b16 %v364
        %v889 = vpack.c.b16 %v883, %v881
        %v890 = vpack.c.b16 %v884, %v882
        %v891 = vpack.c.b16 %v887, %v885
        %v892 = vpack.c.b16 %v888, %v886
        %v896 = vsel %vm416, %v891, 0
        %v899 = vsel %vm416, %v892, 0
        %901 = vmatprep.subr.bf16.mxu0 %v890
        %902 = vmatpush1.bf16.msra.mxu0 %v889
        %903 = vmatprep.subr.bf16.mxu0 %v899
        %904 = vmatpush1.bf16.msra.mxu0 %v896
        %905 = vmatprep.subr.bf16.mxu0 0
        %906 = vmatpush1.bf16.msra.mxu0 0
        %907 = vmatprep.subr.bf16.mxu0 0
        %908 = vmatpush1.bf16.msra.mxu0 0
        %909 = vmatprep.subr.bf16.mxu0 0
        %910 = vmatpush1.bf16.msra.mxu0 0
        %911 = vmatprep.subr.bf16.mxu0 0
        %912 = vmatpush1.bf16.msra.mxu0 0
        %913 = vmatprep.subr.bf16.mxu0 0
        %914 = vmatpush1.bf16.msra.mxu0 0
        %915 = vmatprep.subr.bf16.mxu0 0
        %916 = vmatpush1.bf16.msra.mxu0 0
        %917 = vmatprep.subr.bf16.mxu0 0
        %918 = vmatpush1.bf16.msra.mxu0 0
        %919 = vmatprep.subr.bf16.mxu0 0
        %920 = vmatpush1.bf16.msra.mxu0 0
        %921 = vmatprep.subr.bf16.mxu0 0
        %922 = vmatpush1.bf16.msra.mxu0 0
        %923 = vmatprep.subr.bf16.mxu0 0
        %924 = vmatpush1.bf16.msra.mxu0 0
        %925 = vmatprep.subr.bf16.mxu0 0
        %926 = vmatpush1.bf16.msra.mxu0 0
        %927 = vmatprep.subr.bf16.mxu0 0
        %928 = vmatpush1.bf16.msra.mxu0 0
        %929 = vmatprep.subr.bf16.mxu0 0
        %930 = vmatpush1.bf16.msra.mxu0 0
        %931 = vmatprep.subr.bf16.mxu0 0
        %932 = vmatpush1.bf16.msra.mxu0 0
        %933 = vmatprep.mubr.bf16.mxu0 0
        %934 = vmatmul.mubr.bf16.gmra.mrb[0].mxu0 %v505
        %v935 = vpop.f32.mrb[0].mxu0
        %v936 = vadd.f32 0.0, %v935
        %v937 = vpop.f32.mrb[0].mxu0
        %v938 = vadd.f32 0.0, %v937
        %v939 = vpop.f32.mrb[0].mxu0
        %v940 = vadd.f32 0.0, %v939
        %v941 = vpop.f32.mrb[0].mxu0
        %v942 = vadd.f32 0.0, %v941
        %943 = vdwg.mxu0
        %v944 = vadd.f32 %v873, %v936
        %v945 = vadd.f32 %v874, %v938
        %v946 = vadd.f32 %v875, %v940
        %v947 = vadd.f32 %v876, %v942
        %v952 = vunpack.c.l.b16 %v366
        %v953 = vunpack.c.h.b16 %v366
        %v954 = vunpack.c.l.b16 %v367
        %v955 = vunpack.c.h.b16 %v367
        %v956 = vunpack.c.l.b16 %v368
        %v957 = vunpack.c.h.b16 %v368
        %v958 = vunpack.c.l.b16 %v369
        %v959 = vunpack.c.h.b16 %v369
        %v960 = vpack.c.b16 %v954, %v952
        %v961 = vpack.c.b16 %v955, %v953
        %v962 = vpack.c.b16 %v958, %v956
        %v963 = vpack.c.b16 %v959, %v957
        %v967 = vsel %vm416, %v962, 0
        %v970 = vsel %vm416, %v963, 0
        %972 = vmatprep.subr.bf16.mxu0 %v961
        %973 = vmatpush1.bf16.msra.mxu0 %v960
        %974 = vmatprep.subr.bf16.mxu0 %v970
        %975 = vmatpush1.bf16.msra.mxu0 %v967
        %976 = vmatprep.subr.bf16.mxu0 0
        %977 = vmatpush1.bf16.msra.mxu0 0
        %978 = vmatprep.subr.bf16.mxu0 0
        %979 = vmatpush1.bf16.msra.mxu0 0
        %980 = vmatprep.subr.bf16.mxu0 0
        %981 = vmatpush1.bf16.msra.mxu0 0
        %982 = vmatprep.subr.bf16.mxu0 0
        %983 = vmatpush1.bf16.msra.mxu0 0
        %984 = vmatprep.subr.bf16.mxu0 0
        %985 = vmatpush1.bf16.msra.mxu0 0
        %986 = vmatprep.subr.bf16.mxu0 0
        %987 = vmatpush1.bf16.msra.mxu0 0
        %988 = vmatprep.subr.bf16.mxu0 0
        %989 = vmatpush1.bf16.msra.mxu0 0
        %990 = vmatprep.subr.bf16.mxu0 0
        %991 = vmatpush1.bf16.msra.mxu0 0
        %992 = vmatprep.subr.bf16.mxu0 0
        %993 = vmatpush1.bf16.msra.mxu0 0
        %994 = vmatprep.subr.bf16.mxu0 0
        %995 = vmatpush1.bf16.msra.mxu0 0
        %996 = vmatprep.subr.bf16.mxu0 0
        %997 = vmatpush1.bf16.msra.mxu0 0
        %998 = vmatprep.subr.bf16.mxu0 0
        %999 = vmatpush1.bf16.msra.mxu0 0
        %1000 = vmatprep.subr.bf16.mxu0 0
        %1001 = vmatpush1.bf16.msra.mxu0 0
        %1002 = vmatprep.subr.bf16.mxu0 0
        %1003 = vmatpush1.bf16.msra.mxu0 0
        %1004 = vmatprep.mubr.bf16.mxu0 0
        %1005 = vmatmul.mubr.bf16.gmra.mrb[0].mxu0 %v589
        %v1006 = vpop.f32.mrb[0].mxu0
        %v1007 = vadd.f32 0.0, %v1006
        %v1008 = vpop.f32.mrb[0].mxu0
        %v1009 = vadd.f32 0.0, %v1008
        %v1010 = vpop.f32.mrb[0].mxu0
        %v1011 = vadd.f32 0.0, %v1010
        %v1012 = vpop.f32.mrb[0].mxu0
        %v1013 = vadd.f32 0.0, %v1012
        %1014 = vdwg.mxu0
        %v1015 = vadd.f32 %v944, %v1007
        %v1016 = vadd.f32 %v945, %v1009
        %v1017 = vadd.f32 %v946, %v1011
        %v1018 = vadd.f32 %v947, %v1013
        %v1023 = vunpack.c.l.b16 %v371
        %v1024 = vunpack.c.h.b16 %v371
        %v1025 = vunpack.c.l.b16 %v372
        %v1026 = vunpack.c.h.b16 %v372
        %v1027 = vunpack.c.l.b16 %v373
        %v1028 = vunpack.c.h.b16 %v373
        %v1029 = vunpack.c.l.b16 %v374
        %v1030 = vunpack.c.h.b16 %v374
        %v1031 = vpack.c.b16 %v1025, %v1023
        %v1032 = vpack.c.b16 %v1026, %v1024
        %v1033 = vpack.c.b16 %v1029, %v1027
        %v1034 = vpack.c.b16 %v1030, %v1028
        %v1038 = vsel %vm416, %v1033, 0
        %v1041 = vsel %vm416, %v1034, 0
        %1043 = vmatprep.subr.bf16.mxu0 %v1032
        %1044 = vmatpush1.bf16.msra.mxu0 %v1031
        %1045 = vmatprep.subr.bf16.mxu0 %v1041
        %1046 = vmatpush1.bf16.msra.mxu0 %v1038
        %1047 = vmatprep.subr.bf16.mxu0 0
        %1048 = vmatpush1.bf16.msra.mxu0 0
        %1049 = vmatprep.subr.bf16.mxu0 0
        %1050 = vmatpush1.bf16.msra.mxu0 0
        %1051 = vmatprep.subr.bf16.mxu0 0
        %1052 = vmatpush1.bf16.msra.mxu0 0
        %1053 = vmatprep.subr.bf16.mxu0 0
        %1054 = vmatpush1.bf16.msra.mxu0 0
        %1055 = vmatprep.subr.bf16.mxu0 0
        %1056 = vmatpush1.bf16.msra.mxu0 0
        %1057 = vmatprep.subr.bf16.mxu0 0
        %1058 = vmatpush1.bf16.msra.mxu0 0
        %1059 = vmatprep.subr.bf16.mxu0 0
        %1060 = vmatpush1.bf16.msra.mxu0 0
        %1061 = vmatprep.subr.bf16.mxu0 0
        %1062 = vmatpush1.bf16.msra.mxu0 0
        %1063 = vmatprep.subr.bf16.mxu0 0
        %1064 = vmatpush1.bf16.msra.mxu0 0
        %1065 = vmatprep.subr.bf16.mxu0 0
        %1066 = vmatpush1.bf16.msra.mxu0 0
        %1067 = vmatprep.subr.bf16.mxu0 0
        %1068 = vmatpush1.bf16.msra.mxu0 0
        %1069 = vmatprep.subr.bf16.mxu0 0
        %1070 = vmatpush1.bf16.msra.mxu0 0
        %1071 = vmatprep.subr.bf16.mxu0 0
        %1072 = vmatpush1.bf16.msra.mxu0 0
        %1073 = vmatprep.subr.bf16.mxu0 0
        %1074 = vmatpush1.bf16.msra.mxu0 0
        %1075 = vmatprep.mubr.bf16.mxu0 0
        %1076 = vmatmul.mubr.bf16.gmra.mrb[0].mxu0 %v673
        %v1077 = vpop.f32.mrb[0].mxu0
        %v1078 = vadd.f32 0.0, %v1077
        %v1079 = vpop.f32.mrb[0].mxu0
        %v1080 = vadd.f32 0.0, %v1079
        %v1081 = vpop.f32.mrb[0].mxu0
        %v1082 = vadd.f32 0.0, %v1081
        %v1083 = vpop.f32.mrb[0].mxu0
        %v1084 = vadd.f32 0.0, %v1083
        %1085 = vdwg.mxu0
        %v1086 = vadd.f32 %v1015, %v1078
        %v1087 = vadd.f32 %v1016, %v1080
        %v1088 = vadd.f32 %v1017, %v1082
        %v1089 = vadd.f32 %v1018, %v1084
        %v1094 = vunpack.c.l.b16 %v376
        %v1095 = vunpack.c.h.b16 %v376
        %v1096 = vunpack.c.l.b16 %v377
        %v1097 = vunpack.c.h.b16 %v377
        %v1098 = vunpack.c.l.b16 %v378
        %v1099 = vunpack.c.h.b16 %v378
        %v1100 = vunpack.c.l.b16 %v379
        %v1101 = vunpack.c.h.b16 %v379
        %v1102 = vpack.c.b16 %v1096, %v1094
        %v1103 = vpack.c.b16 %v1097, %v1095
        %v1104 = vpack.c.b16 %v1100, %v1098
        %v1105 = vpack.c.b16 %v1101, %v1099
        %v1109 = vsel %vm416, %v1104, 0
        %v1112 = vsel %vm416, %v1105, 0
        %1114 = vmatprep.subr.bf16.mxu0 %v1103
        %1115 = vmatpush1.bf16.msra.mxu0 %v1102
        %1116 = vmatprep.subr.bf16.mxu0 %v1112
        %1117 = vmatpush1.bf16.msra.mxu0 %v1109
        %1118 = vmatprep.subr.bf16.mxu0 0
        %1119 = vmatpush1.bf16.msra.mxu0 0
        %1120 = vmatprep.subr.bf16.mxu0 0
        %1121 = vmatpush1.bf16.msra.mxu0 0
        %1122 = vmatprep.subr.bf16.mxu0 0
        %1123 = vmatpush1.bf16.msra.mxu0 0
        %1124 = vmatprep.subr.bf16.mxu0 0
        %1125 = vmatpush1.bf16.msra.mxu0 0
        %1126 = vmatprep.subr.bf16.mxu0 0
        %1127 = vmatpush1.bf16.msra.mxu0 0
        %1128 = vmatprep.subr.bf16.mxu0 0
        %1129 = vmatpush1.bf16.msra.mxu0 0
        %1130 = vmatprep.subr.bf16.mxu0 0
        %1131 = vmatpush1.bf16.msra.mxu0 0
        %1132 = vmatprep.subr.bf16.mxu0 0
        %1133 = vmatpush1.bf16.msra.mxu0 0
        %1134 = vmatprep.subr.bf16.mxu0 0
        %1135 = vmatpush1.bf16.msra.mxu0 0
        %1136 = vmatprep.subr.bf16.mxu0 0
        %1137 = vmatpush1.bf16.msra.mxu0 0
        %1138 = vmatprep.subr.bf16.mxu0 0
        %1139 = vmatpush1.bf16.msra.mxu0 0
        %1140 = vmatprep.subr.bf16.mxu0 0
        %1141 = vmatpush1.bf16.msra.mxu0 0
        %1142 = vmatprep.subr.bf16.mxu0 0
        %1143 = vmatpush1.bf16.msra.mxu0 0
        %1144 = vmatprep.subr.bf16.mxu0 0
        %1145 = vmatpush1.bf16.msra.mxu0 0
        %1146 = vmatprep.mubr.bf16.mxu0 0
        %1147 = vmatmul.mubr.bf16.gmra.mrb[0].mxu0 %v751
        %v1148 = vpop.f32.mrb[0].mxu0
        %v1149 = vadd.f32 0.0, %v1148
        %v1150 = vpop.f32.mrb[0].mxu0
        %v1151 = vadd.f32 0.0, %v1150
        %v1152 = vpop.f32.mrb[0].mxu0
        %v1153 = vadd.f32 0.0, %v1152
        %v1154 = vpop.f32.mrb[0].mxu0
        %v1155 = vadd.f32 0.0, %v1154
        %1156 = vdwg.mxu0
        %v1157 = vadd.f32 %v1086, %v1149
        %v1158 = vadd.f32 %v1087, %v1151
        %v1159 = vadd.f32 %v1088, %v1153
        %v1160 = vadd.f32 %v1089, %v1155
        %v1161 = vld [vmem:[%s382] sm:$0xe]
        %1162 = vmatprep.subr.bf16.mxu0 %v407
        %1163 = vmatpush1.bf16.msra.mxu0 %v406
        %1164 = vmatprep.subr.bf16.mxu0 %v421
        %1165 = vmatpush1.bf16.msra.mxu0 %v418
        %1166 = vmatprep.subr.bf16.mxu0 0
        %1167 = vmatpush1.bf16.msra.mxu0 0
        %1168 = vmatprep.subr.bf16.mxu0 0
        %1169 = vmatpush1.bf16.msra.mxu0 0
        %1170 = vmatprep.subr.bf16.mxu0 0
        %1171 = vmatpush1.bf16.msra.mxu0 0
        %1172 = vmatprep.subr.bf16.mxu0 0
        %1173 = vmatpush1.bf16.msra.mxu0 0
        %1174 = vmatprep.subr.bf16.mxu0 0
        %1175 = vmatpush1.bf16.msra.mxu0 0
        %1176 = vmatprep.subr.bf16.mxu0 0
        %1177 = vmatpush1.bf16.msra.mxu0 0
        %1178 = vmatprep.subr.bf16.mxu0 0
        %1179 = vmatpush1.bf16.msra.mxu0 0
        %1180 = vmatprep.subr.bf16.mxu0 0
        %1181 = vmatpush1.bf16.msra.mxu0 0
        %1182 = vmatprep.subr.bf16.mxu0 0
        %1183 = vmatpush1.bf16.msra.mxu0 0
        %1184 = vmatprep.subr.bf16.mxu0 0
        %1185 = vmatpush1.bf16.msra.mxu0 0
        %1186 = vmatprep.subr.bf16.mxu0 0
        %1187 = vmatpush1.bf16.msra.mxu0 0
        %1188 = vmatprep.subr.bf16.mxu0 0
        %1189 = vmatpush1.bf16.msra.mxu0 0
        %1190 = vmatprep.subr.bf16.mxu0 0
        %1191 = vmatpush1.bf16.msra.mxu0 0
        %1192 = vmatprep.subr.bf16.mxu0 0
        %1193 = vmatpush1.bf16.msra.mxu0 0
        %1194 = vmatprep.mubr.bf16.mxu0 0
        %1195 = vmatmul.mubr.bf16.gmra.mrb[0].mxu0 %v505
        %v1196 = vpop.f32.mrb[0].mxu0
        %v1197 = vadd.f32 0.0, %v1196
        %v1198 = vpop.f32.mrb[0].mxu0
        %v1199 = vadd.f32 0.0, %v1198
        %v1200 = vpop.f32.mrb[0].mxu0
        %v1201 = vadd.f32 0.0, %v1200
        %v1202 = vpop.f32.mrb[0].mxu0
        %v1203 = vadd.f32 0.0, %v1202
        %1204 = vdwg.mxu0
        %v1205 = vadd.f32 %v470, %v1197
        %v1206 = vadd.f32 %v474, %v1199
        %v1207 = vadd.f32 %v470, %v1201
        %v1208 = vadd.f32 %v474, %v1203
        %1209 = vmatprep.subr.bf16.mxu0 %v499
        %1210 = vmatpush1.bf16.msra.mxu0 %v498
        %1211 = vmatprep.subr.bf16.mxu0 %v511
        %1212 = vmatpush1.bf16.msra.mxu0 %v508
        %1213 = vmatprep.subr.bf16.mxu0 0
        %1214 = vmatpush1.bf16.msra.mxu0 0
        %1215 = vmatprep.subr.bf16.mxu0 0
        %1216 = vmatpush1.bf16.msra.mxu0 0
        %1217 = vmatprep.subr.bf16.mxu0 0
        %1218 = vmatpush1.bf16.msra.mxu0 0
        %1219 = vmatprep.subr.bf16.mxu0 0
        %1220 = vmatpush1.bf16.msra.mxu0 0
        %1221 = vmatprep.subr.bf16.mxu0 0
        %1222 = vmatpush1.bf16.msra.mxu0 0
        %1223 = vmatprep.subr.bf16.mxu0 0
        %1224 = vmatpush1.bf16.msra.mxu0 0
        %1225 = vmatprep.subr.bf16.mxu0 0
        %1226 = vmatpush1.bf16.msra.mxu0 0
        %1227 = vmatprep.subr.bf16.mxu0 0
        %1228 = vmatpush1.bf16.msra.mxu0 0
        %1229 = vmatprep.subr.bf16.mxu0 0
        %1230 = vmatpush1.bf16.msra.mxu0 0
        %1231 = vmatprep.subr.bf16.mxu0 0
        %1232 = vmatpush1.bf16.msra.mxu0 0
        %1233 = vmatprep.subr.bf16.mxu0 0
        %1234 = vmatpush1.bf16.msra.mxu0 0
        %1235 = vmatprep.subr.bf16.mxu0 0
        %1236 = vmatpush1.bf16.msra.mxu0 0
        %1237 = vmatprep.subr.bf16.mxu0 0
        %1238 = vmatpush1.bf16.msra.mxu0 0
        %1239 = vmatprep.subr.bf16.mxu0 0
        %1240 = vmatpush1.bf16.msra.mxu0 0
        %1241 = vmatprep.mubr.bf16.mxu0 0
        %1242 = vmatmul.mubr.bf16.gmra.mrb[0].mxu0 %v589
        %v1243 = vpop.f32.mrb[0].mxu0
        %v1244 = vadd.f32 0.0, %v1243
        %v1245 = vpop.f32.mrb[0].mxu0
        %v1246 = vadd.f32 0.0, %v1245
        %v1247 = vpop.f32.mrb[0].mxu0
        %v1248 = vadd.f32 0.0, %v1247
        %v1249 = vpop.f32.mrb[0].mxu0
        %v1250 = vadd.f32 0.0, %v1249
        %1251 = vdwg.mxu0
        %v1252 = vadd.f32 %v1205, %v1244
        %v1253 = vadd.f32 %v1206, %v1246
        %v1254 = vadd.f32 %v1207, %v1248
        %v1255 = vadd.f32 %v1208, %v1250
        %1256 = vmatprep.subr.bf16.mxu0 %v583
        %1257 = vmatpush1.bf16.msra.mxu0 %v582
        %1258 = vmatprep.subr.bf16.mxu0 %v595
        %1259 = vmatpush1.bf16.msra.mxu0 %v592
        %1260 = vmatprep.subr.bf16.mxu0 0
        %1261 = vmatpush1.bf16.msra.mxu0 0
        %1262 = vmatprep.subr.bf16.mxu0 0
        %1263 = vmatpush1.bf16.msra.mxu0 0
        %1264 = vmatprep.subr.bf16.mxu0 0
        %1265 = vmatpush1.bf16.msra.mxu0 0
        %1266 = vmatprep.subr.bf16.mxu0 0
        %1267 = vmatpush1.bf16.msra.mxu0 0
        %1268 = vmatprep.subr.bf16.mxu0 0
        %1269 = vmatpush1.bf16.msra.mxu0 0
        %1270 = vmatprep.subr.bf16.mxu0 0
        %1271 = vmatpush1.bf16.msra.mxu0 0
        %1272 = vmatprep.subr.bf16.mxu0 0
        %1273 = vmatpush1.bf16.msra.mxu0 0
        %1274 = vmatprep.subr.bf16.mxu0 0
        %1275 = vmatpush1.bf16.msra.mxu0 0
        %1276 = vmatprep.subr.bf16.mxu0 0
        %1277 = vmatpush1.bf16.msra.mxu0 0
        %1278 = vmatprep.subr.bf16.mxu0 0
        %1279 = vmatpush1.bf16.msra.mxu0 0
        %1280 = vmatprep.subr.bf16.mxu0 0
        %1281 = vmatpush1.bf16.msra.mxu0 0
        %1282 = vmatprep.subr.bf16.mxu0 0
        %1283 = vmatpush1.bf16.msra.mxu0 0
        %1284 = vmatprep.subr.bf16.mxu0 0
        %1285 = vmatpush1.bf16.msra.mxu0 0
        %1286 = vmatprep.subr.bf16.mxu0 0
        %1287 = vmatpush1.bf16.msra.mxu0 0
        %1288 = vmatprep.mubr.bf16.mxu0 0
        %1289 = vmatmul.mubr.bf16.gmra.mrb[0].mxu0 %v673
        %v1290 = vpop.f32.mrb[0].mxu0
        %v1291 = vadd.f32 0.0, %v1290
        %v1292 = vpop.f32.mrb[0].mxu0
        %v1293 = vadd.f32 0.0, %v1292
        %v1294 = vpop.f32.mrb[0].mxu0
        %v1295 = vadd.f32 0.0, %v1294
        %v1296 = vpop.f32.mrb[0].mxu0
        %v1297 = vadd.f32 0.0, %v1296
        %1298 = vdwg.mxu0
        %v1299 = vadd.f32 %v1252, %v1291
        %v1300 = vadd.f32 %v1253, %v1293
        %v1301 = vadd.f32 %v1254, %v1295
        %v1302 = vadd.f32 %v1255, %v1297
        %1303 = vmatprep.subr.bf16.mxu0 %v667
        %1304 = vmatpush1.bf16.msra.mxu0 %v666
        %1305 = vmatprep.subr.bf16.mxu0 %v679
        %1306 = vmatpush1.bf16.msra.mxu0 %v676
        %1307 = vmatprep.subr.bf16.mxu0 0
        %1308 = vmatpush1.bf16.msra.mxu0 0
        %1309 = vmatprep.subr.bf16.mxu0 0
        %1310 = vmatpush1.bf16.msra.mxu0 0
        %1311 = vmatprep.subr.bf16.mxu0 0
        %1312 = vmatpush1.bf16.msra.mxu0 0
        %1313 = vmatprep.subr.bf16.mxu0 0
        %1314 = vmatpush1.bf16.msra.mxu0 0
        %1315 = vmatprep.subr.bf16.mxu0 0
        %1316 = vmatpush1.bf16.msra.mxu0 0
        %1317 = vmatprep.subr.bf16.mxu0 0
        %1318 = vmatpush1.bf16.msra.mxu0 0
        %1319 = vmatprep.subr.bf16.mxu0 0
        %1320 = vmatpush1.bf16.msra.mxu0 0
        %1321 = vmatprep.subr.bf16.mxu0 0
        %1322 = vmatpush1.bf16.msra.mxu0 0
        %1323 = vmatprep.subr.bf16.mxu0 0
        %1324 = vmatpush1.bf16.msra.mxu0 0
        %1325 = vmatprep.subr.bf16.mxu0 0
        %1326 = vmatpush1.bf16.msra.mxu0 0
        %1327 = vmatprep.subr.bf16.mxu0 0
        %1328 = vmatpush1.bf16.msra.mxu0 0
        %1329 = vmatprep.subr.bf16.mxu0 0
        %1330 = vmatpush1.bf16.msra.mxu0 0
        %1331 = vmatprep.subr.bf16.mxu0 0
        %1332 = vmatpush1.bf16.msra.mxu0 0
        %1333 = vmatprep.subr.bf16.mxu0 0
        %1334 = vmatpush1.bf16.msra.mxu0 0
        %1335 = vmatprep.mubr.bf16.mxu0 0
        %1336 = vmatmul.mubr.bf16.gmra.mrb[0].mxu0 %v751
        %v1337 = vpop.f32.mrb[0].mxu0
        %v1338 = vadd.f32 0.0, %v1337
        %v1339 = vpop.f32.mrb[0].mxu0
        %v1340 = vadd.f32 0.0, %v1339
        %v1341 = vpop.f32.mrb[0].mxu0
        %v1342 = vadd.f32 0.0, %v1341
        %v1343 = vpop.f32.mrb[0].mxu0
        %v1344 = vadd.f32 0.0, %v1343
        %1345 = vdwg.mxu0
        %v1346 = vadd.f32 %v1299, %v1338
        %v1347 = vadd.f32 %v1300, %v1340
        %v1348 = vadd.f32 %v1301, %v1342
        %v1349 = vadd.f32 %v1302, %v1344
        %v1351 = vunpack.c.l.b16 %v1161
        %v1352 = vpack.c.b16 %v645, %v1351
        %v1353 = vrot.slane %v1352, 1
        %v1355 = vsel %vm412, %v1353, 0
        %1357 = vmatprep.subr.bf16.mxu0 %v745
        %1358 = vmatpush1.bf16.msra.mxu0 %v744
        %1359 = vmatprep.subr.bf16.mxu0 %v757
        %1360 = vmatpush1.bf16.msra.mxu0 %v754
        %1361 = vmatprep.subr.bf16.mxu0 0
        %1362 = vmatpush1.bf16.msra.mxu0 0
        %1363 = vmatprep.subr.bf16.mxu0 0
        %1364 = vmatpush1.bf16.msra.mxu0 0
        %1365 = vmatprep.subr.bf16.mxu0 0
        %1366 = vmatpush1.bf16.msra.mxu0 0
        %1367 = vmatprep.subr.bf16.mxu0 0
        %1368 = vmatpush1.bf16.msra.mxu0 0
        %1369 = vmatprep.subr.bf16.mxu0 0
        %1370 = vmatpush1.bf16.msra.mxu0 0
        %1371 = vmatprep.subr.bf16.mxu0 0
        %1372 = vmatpush1.bf16.msra.mxu0 0
        %1373 = vmatprep.subr.bf16.mxu0 0
        %1374 = vmatpush1.bf16.msra.mxu0 0
        %1375 = vmatprep.subr.bf16.mxu0 0
        %1376 = vmatpush1.bf16.msra.mxu0 0
        %1377 = vmatprep.subr.bf16.mxu0 0
        %1378 = vmatpush1.bf16.msra.mxu0 0
        %1379 = vmatprep.subr.bf16.mxu0 0
        %1380 = vmatpush1.bf16.msra.mxu0 0
        %1381 = vmatprep.subr.bf16.mxu0 0
        %1382 = vmatpush1.bf16.msra.mxu0 0
        %1383 = vmatprep.subr.bf16.mxu0 0
        %1384 = vmatpush1.bf16.msra.mxu0 0
        %1385 = vmatprep.subr.bf16.mxu0 0
        %1386 = vmatpush1.bf16.msra.mxu0 0
        %1387 = vmatprep.subr.bf16.mxu0 0
        %1388 = vmatpush1.bf16.msra.mxu0 0
        %1389 = vmatprep.mubr.bf16.mxu0 0
        %1390 = vmatmul.mubr.bf16.gmra.mrb[0].mxu0 %v1355
        %v1391 = vpop.f32.mrb[0].mxu0
        %v1392 = vadd.f32 0.0, %v1391
        %v1393 = vpop.f32.mrb[0].mxu0
        %v1394 = vadd.f32 0.0, %v1393
        %v1395 = vpop.f32.mrb[0].mxu0
        %v1396 = vadd.f32 0.0, %v1395
        %v1397 = vpop.f32.mrb[0].mxu0
        %v1398 = vadd.f32 0.0, %v1397
        %1399 = vdwg.mxu0
        %v1400 = vadd.f32 %v1346, %v1392
        %v1401 = vadd.f32 %v1347, %v1394
        %v1402 = vadd.f32 %v1348, %v1396
        %v1403 = vadd.f32 %v1349, %v1398
        %1404 = vmatprep.subr.bf16.mxu0 %v819
        %1405 = vmatpush1.bf16.msra.mxu0 %v818
        %1406 = vmatprep.subr.bf16.mxu0 %v828
        %1407 = vmatpush1.bf16.msra.mxu0 %v825
        %1408 = vmatprep.subr.bf16.mxu0 0
        %1409 = vmatpush1.bf16.msra.mxu0 0
        %1410 = vmatprep.subr.bf16.mxu0 0
        %1411 = vmatpush1.bf16.msra.mxu0 0
        %1412 = vmatprep.subr.bf16.mxu0 0
        %1413 = vmatpush1.bf16.msra.mxu0 0
        %1414 = vmatprep.subr.bf16.mxu0 0
        %1415 = vmatpush1.bf16.msra.mxu0 0
        %1416 = vmatprep.subr.bf16.mxu0 0
        %1417 = vmatpush1.bf16.msra.mxu0 0
        %1418 = vmatprep.subr.bf16.mxu0 0
        %1419 = vmatpush1.bf16.msra.mxu0 0
        %1420 = vmatprep.subr.bf16.mxu0 0
        %1421 = vmatpush1.bf16.msra.mxu0 0
        %1422 = vmatprep.subr.bf16.mxu0 0
        %1423 = vmatpush1.bf16.msra.mxu0 0
        %1424 = vmatprep.subr.bf16.mxu0 0
        %1425 = vmatpush1.bf16.msra.mxu0 0
        %1426 = vmatprep.subr.bf16.mxu0 0
        %1427 = vmatpush1.bf16.msra.mxu0 0
        %1428 = vmatprep.subr.bf16.mxu0 0
        %1429 = vmatpush1.bf16.msra.mxu0 0
        %1430 = vmatprep.subr.bf16.mxu0 0
        %1431 = vmatpush1.bf16.msra.mxu0 0
        %1432 = vmatprep.subr.bf16.mxu0 0
        %1433 = vmatpush1.bf16.msra.mxu0 0
        %1434 = vmatprep.subr.bf16.mxu0 0
        %1435 = vmatpush1.bf16.msra.mxu0 0
        %1436 = vmatprep.mubr.bf16.mxu0 0
        %1437 = vmatmul.mubr.bf16.gmra.mrb[0].mxu0 %v505
        %v1438 = vpop.f32.mrb[0].mxu0
        %v1439 = vadd.f32 0.0, %v1438
        %v1440 = vpop.f32.mrb[0].mxu0
        %v1441 = vadd.f32 0.0, %v1440
        %v1442 = vpop.f32.mrb[0].mxu0
        %v1443 = vadd.f32 0.0, %v1442
        %v1444 = vpop.f32.mrb[0].mxu0
        %v1445 = vadd.f32 0.0, %v1444
        %1446 = vdwg.mxu0
        %v1447 = vadd.f32 %v470, %v1439
        %v1448 = vadd.f32 %v474, %v1441
        %v1449 = vadd.f32 %v470, %v1443
        %v1450 = vadd.f32 %v474, %v1445
        %1451 = vmatprep.subr.bf16.mxu0 %v890
        %1452 = vmatpush1.bf16.msra.mxu0 %v889
        %1453 = vmatprep.subr.bf16.mxu0 %v899
        %1454 = vmatpush1.bf16.msra.mxu0 %v896
        %1455 = vmatprep.subr.bf16.mxu0 0
        %1456 = vmatpush1.bf16.msra.mxu0 0
        %1457 = vmatprep.subr.bf16.mxu0 0
        %1458 = vmatpush1.bf16.msra.mxu0 0
        %1459 = vmatprep.subr.bf16.mxu0 0
        %1460 = vmatpush1.bf16.msra.mxu0 0
        %1461 = vmatprep.subr.bf16.mxu0 0
        %1462 = vmatpush1.bf16.msra.mxu0 0
        %1463 = vmatprep.subr.bf16.mxu0 0
        %1464 = vmatpush1.bf16.msra.mxu0 0
        %1465 = vmatprep.subr.bf16.mxu0 0
        %1466 = vmatpush1.bf16.msra.mxu0 0
        %1467 = vmatprep.subr.bf16.mxu0 0
        %1468 = vmatpush1.bf16.msra.mxu0 0
        %1469 = vmatprep.subr.bf16.mxu0 0
        %1470 = vmatpush1.bf16.msra.mxu0 0
        %1471 = vmatprep.subr.bf16.mxu0 0
        %1472 = vmatpush1.bf16.msra.mxu0 0
        %1473 = vmatprep.subr.bf16.mxu0 0
        %1474 = vmatpush1.bf16.msra.mxu0 0
        %1475 = vmatprep.subr.bf16.mxu0 0
        %1476 = vmatpush1.bf16.msra.mxu0 0
        %1477 = vmatprep.subr.bf16.mxu0 0
        %1478 = vmatpush1.bf16.msra.mxu0 0
        %1479 = vmatprep.subr.bf16.mxu0 0
        %1480 = vmatpush1.bf16.msra.mxu0 0
        %1481 = vmatprep.subr.bf16.mxu0 0
        %1482 = vmatpush1.bf16.msra.mxu0 0
        %1483 = vmatprep.mubr.bf16.mxu0 0
        %1484 = vmatmul.mubr.bf16.gmra.mrb[0].mxu0 %v589
        %v1485 = vpop.f32.mrb[0].mxu0
        %v1486 = vadd.f32 0.0, %v1485
        %v1487 = vpop.f32.mrb[0].mxu0
        %v1488 = vadd.f32 0.0, %v1487
        %v1489 = vpop.f32.mrb[0].mxu0
        %v1490 = vadd.f32 0.0, %v1489
        %v1491 = vpop.f32.mrb[0].mxu0
        %v1492 = vadd.f32 0.0, %v1491
        %1493 = vdwg.mxu0
        %v1494 = vadd.f32 %v1447, %v1486
        %v1495 = vadd.f32 %v1448, %v1488
        %v1496 = vadd.f32 %v1449, %v1490
        %v1497 = vadd.f32 %v1450, %v1492
        %1498 = vmatprep.subr.bf16.mxu0 %v961
        %1499 = vmatpush1.bf16.msra.mxu0 %v960
        %1500 = vmatprep.subr.bf16.mxu0 %v970
        %1501 = vmatpush1.bf16.msra.mxu0 %v967
        %1502 = vmatprep.subr.bf16.mxu0 0
        %1503 = vmatpush1.bf16.msra.mxu0 0
        %1504 = vmatprep.subr.bf16.mxu0 0
        %1505 = vmatpush1.bf16.msra.mxu0 0
        %1506 = vmatprep.subr.bf16.mxu0 0
        %1507 = vmatpush1.bf16.msra.mxu0 0
        %1508 = vmatprep.subr.bf16.mxu0 0
        %1509 = vmatpush1.bf16.msra.mxu0 0
        %1510 = vmatprep.subr.bf16.mxu0 0
        %1511 = vmatpush1.bf16.msra.mxu0 0
        %1512 = vmatprep.subr.bf16.mxu0 0
        %1513 = vmatpush1.bf16.msra.mxu0 0
        %1514 = vmatprep.subr.bf16.mxu0 0
        %1515 = vmatpush1.bf16.msra.mxu0 0
        %1516 = vmatprep.subr.bf16.mxu0 0
        %1517 = vmatpush1.bf16.msra.mxu0 0
        %1518 = vmatprep.subr.bf16.mxu0 0
        %1519 = vmatpush1.bf16.msra.mxu0 0
        %1520 = vmatprep.subr.bf16.mxu0 0
        %1521 = vmatpush1.bf16.msra.mxu0 0
        %1522 = vmatprep.subr.bf16.mxu0 0
        %1523 = vmatpush1.bf16.msra.mxu0 0
        %1524 = vmatprep.subr.bf16.mxu0 0
        %1525 = vmatpush1.bf16.msra.mxu0 0
        %1526 = vmatprep.subr.bf16.mxu0 0
        %1527 = vmatpush1.bf16.msra.mxu0 0
        %1528 = vmatprep.subr.bf16.mxu0 0
        %1529 = vmatpush1.bf16.msra.mxu0 0
        %1530 = vmatprep.mubr.bf16.mxu0 0
        %1531 = vmatmul.mubr.bf16.gmra.mrb[0].mxu0 %v673
        %v1532 = vpop.f32.mrb[0].mxu0
        %v1533 = vadd.f32 0.0, %v1532
        %v1534 = vpop.f32.mrb[0].mxu0
        %v1535 = vadd.f32 0.0, %v1534
        %v1536 = vpop.f32.mrb[0].mxu0
        %v1537 = vadd.f32 0.0, %v1536
        %v1538 = vpop.f32.mrb[0].mxu0
        %v1539 = vadd.f32 0.0, %v1538
        %1540 = vdwg.mxu0
        %v1541 = vadd.f32 %v1494, %v1533
        %v1542 = vadd.f32 %v1495, %v1535
        %v1543 = vadd.f32 %v1496, %v1537
        %v1544 = vadd.f32 %v1497, %v1539
        %1545 = vmatprep.subr.bf16.mxu0 %v1032
        %1546 = vmatpush1.bf16.msra.mxu0 %v1031
        %1547 = vmatprep.subr.bf16.mxu0 %v1041
        %1548 = vmatpush1.bf16.msra.mxu0 %v1038
        %1549 = vmatprep.subr.bf16.mxu0 0
        %1550 = vmatpush1.bf16.msra.mxu0 0
        %1551 = vmatprep.subr.bf16.mxu0 0
        %1552 = vmatpush1.bf16.msra.mxu0 0
        %1553 = vmatprep.subr.bf16.mxu0 0
        %1554 = vmatpush1.bf16.msra.mxu0 0
        %1555 = vmatprep.subr.bf16.mxu0 0
        %1556 = vmatpush1.bf16.msra.mxu0 0
        %1557 = vmatprep.subr.bf16.mxu0 0
        %1558 = vmatpush1.bf16.msra.mxu0 0
        %1559 = vmatprep.subr.bf16.mxu0 0
        %1560 = vmatpush1.bf16.msra.mxu0 0
        %1561 = vmatprep.subr.bf16.mxu0 0
        %1562 = vmatpush1.bf16.msra.mxu0 0
        %1563 = vmatprep.subr.bf16.mxu0 0
        %1564 = vmatpush1.bf16.msra.mxu0 0
        %1565 = vmatprep.subr.bf16.mxu0 0
        %1566 = vmatpush1.bf16.msra.mxu0 0
        %1567 = vmatprep.subr.bf16.mxu0 0
        %1568 = vmatpush1.bf16.msra.mxu0 0
        %1569 = vmatprep.subr.bf16.mxu0 0
        %1570 = vmatpush1.bf16.msra.mxu0 0
        %1571 = vmatprep.subr.bf16.mxu0 0
        %1572 = vmatpush1.bf16.msra.mxu0 0
        %1573 = vmatprep.subr.bf16.mxu0 0
        %1574 = vmatpush1.bf16.msra.mxu0 0
        %1575 = vmatprep.subr.bf16.mxu0 0
        %1576 = vmatpush1.bf16.msra.mxu0 0
        %1577 = vmatprep.mubr.bf16.mxu0 0
        %1578 = vmatmul.mubr.bf16.gmra.mrb[0].mxu0 %v751
        %v1579 = vpop.f32.mrb[0].mxu0
        %v1580 = vadd.f32 0.0, %v1579
        %v1581 = vpop.f32.mrb[0].mxu0
        %v1582 = vadd.f32 0.0, %v1581
        %v1583 = vpop.f32.mrb[0].mxu0
        %v1584 = vadd.f32 0.0, %v1583
        %v1585 = vpop.f32.mrb[0].mxu0
        %v1586 = vadd.f32 0.0, %v1585
        %1587 = vdwg.mxu0
        %v1588 = vadd.f32 %v1541, %v1580
        %v1589 = vadd.f32 %v1542, %v1582
        %v1590 = vadd.f32 %v1543, %v1584
        %v1591 = vadd.f32 %v1544, %v1586
        %1592 = vmatprep.subr.bf16.mxu0 %v1103
        %1593 = vmatpush1.bf16.msra.mxu0 %v1102
        %1594 = vmatprep.subr.bf16.mxu0 %v1112
        %1595 = vmatpush1.bf16.msra.mxu0 %v1109
        %1596 = vmatprep.subr.bf16.mxu0 0
        %1597 = vmatpush1.bf16.msra.mxu0 0
        %1598 = vmatprep.subr.bf16.mxu0 0
        %1599 = vmatpush1.bf16.msra.mxu0 0
        %1600 = vmatprep.subr.bf16.mxu0 0
        %1601 = vmatpush1.bf16.msra.mxu0 0
        %1602 = vmatprep.subr.bf16.mxu0 0
        %1603 = vmatpush1.bf16.msra.mxu0 0
        %1604 = vmatprep.subr.bf16.mxu0 0
        %1605 = vmatpush1.bf16.msra.mxu0 0
        %1606 = vmatprep.subr.bf16.mxu0 0
        %1607 = vmatpush1.bf16.msra.mxu0 0
        %1608 = vmatprep.subr.bf16.mxu0 0
        %1609 = vmatpush1.bf16.msra.mxu0 0
        %1610 = vmatprep.subr.bf16.mxu0 0
        %1611 = vmatpush1.bf16.msra.mxu0 0
        %1612 = vmatprep.subr.bf16.mxu0 0
        %1613 = vmatpush1.bf16.msra.mxu0 0
        %1614 = vmatprep.subr.bf16.mxu0 0
        %1615 = vmatpush1.bf16.msra.mxu0 0
        %1616 = vmatprep.subr.bf16.mxu0 0
        %1617 = vmatpush1.bf16.msra.mxu0 0
        %1618 = vmatprep.subr.bf16.mxu0 0
        %1619 = vmatpush1.bf16.msra.mxu0 0
        %1620 = vmatprep.subr.bf16.mxu0 0
        %1621 = vmatpush1.bf16.msra.mxu0 0
        %1622 = vmatprep.subr.bf16.mxu0 0
        %1623 = vmatpush1.bf16.msra.mxu0 0
        %1624 = vmatprep.mubr.bf16.mxu0 0
        %1625 = vmatmul.mubr.bf16.gmra.mrb[0].mxu0 %v1355
        %v1626 = vpop.f32.mrb[0].mxu0
        %v1627 = vadd.f32 0.0, %v1626
        %v1628 = vpop.f32.mrb[0].mxu0
        %v1629 = vadd.f32 0.0, %v1628
        %v1630 = vpop.f32.mrb[0].mxu0
        %v1631 = vadd.f32 0.0, %v1630
        %v1632 = vpop.f32.mrb[0].mxu0
        %v1633 = vadd.f32 0.0, %v1632
        %1634 = vdwg.mxu0
        %v1635 = vadd.f32 %v1588, %v1627
        %v1636 = vadd.f32 %v1589, %v1629
        %v1637 = vadd.f32 %v1590, %v1631
        %v1638 = vadd.f32 %v1591, %v1633
        %v1639 = vmax.f32 %v802, %v1157
        %v1640 = vmax.f32 %v803, %v1158
        %v1641 = vmax.f32 %v804, %v1159
        %v1642 = vmax.f32 %v805, %v1160
        %v1643 = vmax.f32 %v1400, %v1635
        %v1644 = vmax.f32 %v1401, %v1636
        %v1645 = vmax.f32 %v1402, %v1637
        %v1646 = vmax.f32 %v1403, %v1638
        %v1647 = vmax.f32 %v1639, %v1643
        %v1648 = vmax.f32 %v1640, %v1644
        %v1649 = vmax.f32 %v1641, %v1645
        %v1650 = vmax.f32 %v1642, %v1646
        %v1651 = vmax.f32 %v1647, 0.0
        %v1652 = vmax.f32 %v1648, 0.0
        %v1653 = vmax.f32 %v1649, 0.0
        %v1654 = vmax.f32 %v1650, 0.0
        %v1655 = vpack.c.bf16 %v1653, %v1651
        %v1656 = vpack.c.bf16 %v1654, %v1652
        %v1657 = vld [vmem:[%s4] sm:$0x3]
        %v1658 = vld [vmem:[%s3] sm:$0xff]
        %v1659 = vld [vmem:[%s3 + $0x8] sm:$0xff]
        %v1660 = vld [vmem:[%s3 + $0x10] sm:$0xff]
        %v1661 = vld [vmem:[%s3 + $0x18] sm:$0xff]
        %v1662 = vld [vmem:[%s3 + $0x20] sm:$0xff]
        %v1663 = vld [vmem:[%s3 + $0x28] sm:$0xff]
        %v1664 = vld [vmem:[%s3 + $0x30] sm:$0xff]
        %v1665 = vld [vmem:[%s3 + $0x38] sm:$0xff]
        %v1666 = vld [vmem:[%s3 + $0x40] sm:$0xff]
        %v1667 = vld [vmem:[%s3 + $0x48] sm:$0xff]
        %v1668 = vld [vmem:[%s3 + $0x50] sm:$0xff]
        %v1669 = vld [vmem:[%s3 + $0x58] sm:$0xff]
        %v1670 = vld [vmem:[%s3 + $0x60] sm:$0xff]
        %v1671 = vld [vmem:[%s3 + $0x68] sm:$0xff]
        %v1672 = vld [vmem:[%s3 + $0x70] sm:$0xff]
        %v1673 = vld [vmem:[%s3 + $0x78] sm:$0xff]
        %v1674 = vld [vmem:[%s3 + $0x80] sm:$0xff]
        %v1675 = vld [vmem:[%s3 + $0x88] sm:$0xff]
        %v1676 = vld [vmem:[%s3 + $0x90] sm:$0xff]
        %v1677 = vld [vmem:[%s3 + $0x98] sm:$0xff]
        %v1678 = vld [vmem:[%s3 + $0xa0] sm:$0xff]
        %v1679 = vld [vmem:[%s3 + $0xa8] sm:$0xff]
        %v1680 = vld [vmem:[%s3 + $0xb0] sm:$0xff]
        %v1681 = vld [vmem:[%s3 + $0xb8] sm:$0xff]
        %v1682 = vld [vmem:[%s3 + $0xc0] sm:$0xff]
        %v1683 = vld [vmem:[%s3 + $0xc8] sm:$0xff]
        %v1684 = vld [vmem:[%s3 + $0xd0] sm:$0xff]
        %v1685 = vld [vmem:[%s3 + $0xd8] sm:$0xff]
        %v1686 = vld [vmem:[%s3 + $0xe0] sm:$0xff]
        %v1687 = vld [vmem:[%s3 + $0xe8] sm:$0xff]
        %v1718 = vunpack.c.l.b16 %v1658
        %v1719 = vunpack.c.h.b16 %v1658
        %v1720 = vunpack.c.l.b16 %v1659
        %v1721 = vunpack.c.h.b16 %v1659
        %v1722 = vunpack.c.l.b16 %v1660
        %v1723 = vunpack.c.h.b16 %v1660
        %v1724 = vunpack.c.l.b16 %v1661
        %v1725 = vunpack.c.h.b16 %v1661
        %v1726 = vunpack.c.l.b16 %v1662
        %v1727 = vunpack.c.h.b16 %v1662
        %v1728 = vunpack.c.l.b16 %v1663
        %v1729 = vunpack.c.h.b16 %v1663
        %v1730 = vunpack.c.l.b16 %v1664
        %v1731 = vunpack.c.h.b16 %v1664
        %v1732 = vunpack.c.l.b16 %v1665
        %v1733 = vunpack.c.h.b16 %v1665
        %v1734 = vunpack.c.l.b16 %v1666
        %v1735 = vunpack.c.h.b16 %v1666
        %v1736 = vunpack.c.l.b16 %v1667
        %v1737 = vunpack.c.h.b16 %v1667
        %v1738 = vunpack.c.l.b16 %v1668
        %v1739 = vunpack.c.h.b16 %v1668
        %v1740 = vunpack.c.l.b16 %v1669
        %v1741 = vunpack.c.h.b16 %v1669
        %v1742 = vunpack.c.l.b16 %v1670
        %v1743 = vunpack.c.h.b16 %v1670
        %v1744 = vunpack.c.l.b16 %v1671
        %v1745 = vunpack.c.h.b16 %v1671
        %v1746 = vunpack.c.l.b16 %v1672
        %v1747 = vunpack.c.h.b16 %v1672
        %v1748 = vunpack.c.l.b16 %v1673
        %v1749 = vunpack.c.h.b16 %v1673
        %v1750 = vunpack.c.l.b16 %v1674
        %v1751 = vunpack.c.h.b16 %v1674
        %v1752 = vunpack.c.l.b16 %v1675
        %v1753 = vunpack.c.h.b16 %v1675
        %v1754 = vunpack.c.l.b16 %v1676
        %v1755 = vunpack.c.h.b16 %v1676
        %v1756 = vunpack.c.l.b16 %v1677
        %v1757 = vunpack.c.h.b16 %v1677
        %v1758 = vunpack.c.l.b16 %v1678
        %v1759 = vunpack.c.h.b16 %v1678
        %v1760 = vunpack.c.l.b16 %v1679
        %v1761 = vunpack.c.h.b16 %v1679
        %v1762 = vunpack.c.l.b16 %v1680
        %v1763 = vunpack.c.h.b16 %v1680
        %v1764 = vunpack.c.l.b16 %v1681
        %v1765 = vunpack.c.h.b16 %v1681
        %v1766 = vunpack.c.l.b16 %v1682
        %v1767 = vunpack.c.h.b16 %v1682
        %v1768 = vunpack.c.l.b16 %v1683
        %v1769 = vunpack.c.h.b16 %v1683
        %v1770 = vunpack.c.l.b16 %v1684
        %v1771 = vunpack.c.h.b16 %v1684
        %v1772 = vunpack.c.l.b16 %v1685
        %v1773 = vunpack.c.h.b16 %v1685
        %v1774 = vunpack.c.l.b16 %v1686
        %v1775 = vunpack.c.h.b16 %v1686
        %v1776 = vunpack.c.l.b16 %v1687
        %v1777 = vunpack.c.h.b16 %v1687
        %v1778 = vpack.c.b16 %v1720, %v1718
        %v1779 = vpack.c.b16 %v1721, %v1719
        %v1780 = vpack.c.b16 %v1724, %v1722
        %v1781 = vpack.c.b16 %v1725, %v1723
        %v1782 = vpack.c.b16 %v1728, %v1726
        %v1783 = vpack.c.b16 %v1729, %v1727
        %v1784 = vpack.c.b16 %v1732, %v1730
        %v1785 = vpack.c.b16 %v1733, %v1731
        %v1786 = vpack.c.b16 %v1736, %v1734
        %v1787 = vpack.c.b16 %v1737, %v1735
        %v1788 = vpack.c.b16 %v1740, %v1738
        %v1789 = vpack.c.b16 %v1741, %v1739
        %v1790 = vpack.c.b16 %v1744, %v1742
        %v1791 = vpack.c.b16 %v1745, %v1743
        %v1792 = vpack.c.b16 %v1748, %v1746
        %v1793 = vpack.c.b16 %v1749, %v1747
        %v1794 = vpack.c.b16 %v1752, %v1750
        %v1795 = vpack.c.b16 %v1753, %v1751
        %v1796 = vpack.c.b16 %v1756, %v1754
        %v1797 = vpack.c.b16 %v1757, %v1755
        %v1798 = vpack.c.b16 %v1760, %v1758
        %v1799 = vpack.c.b16 %v1761, %v1759
        %v1800 = vpack.c.b16 %v1764, %v1762
        %v1801 = vpack.c.b16 %v1765, %v1763
        %v1802 = vpack.c.b16 %v1768, %v1766
        %v1803 = vpack.c.b16 %v1769, %v1767
        %v1804 = vpack.c.b16 %v1772, %v1770
        %v1805 = vpack.c.b16 %v1773, %v1771
        %v1806 = vpack.c.b16 %v1776, %v1774
        %v1807 = vpack.c.b16 %v1777, %v1775
        %vm1838 = vcmask 916480
        %v1840 = vsel %vm1838, %v1656, 0
        %1842 = vmatprep.subr.bf16.mxu0 %v1779
        %1843 = vmatpush1.bf16.msra.mxu0 %v1778
        %1844 = vmatprep.subr.bf16.mxu0 %v1781
        %1845 = vmatpush1.bf16.msra.mxu0 %v1780
        %1846 = vmatprep.subr.bf16.mxu0 %v1783
        %1847 = vmatpush1.bf16.msra.mxu0 %v1782
        %1848 = vmatprep.subr.bf16.mxu0 %v1785
        %1849 = vmatpush1.bf16.msra.mxu0 %v1784
        %1850 = vmatprep.subr.bf16.mxu0 %v1787
        %1851 = vmatpush1.bf16.msra.mxu0 %v1786
        %1852 = vmatprep.subr.bf16.mxu0 %v1789
        %1853 = vmatpush1.bf16.msra.mxu0 %v1788
        %1854 = vmatprep.subr.bf16.mxu0 %v1791
        %1855 = vmatpush1.bf16.msra.mxu0 %v1790
        %1856 = vmatprep.subr.bf16.mxu0 %v1793
        %1857 = vmatpush1.bf16.msra.mxu0 %v1792
        %1858 = vmatprep.subr.bf16.mxu0 %v1795
        %1859 = vmatpush1.bf16.msra.mxu0 %v1794
        %1860 = vmatprep.subr.bf16.mxu0 %v1797
        %1861 = vmatpush1.bf16.msra.mxu0 %v1796
        %1862 = vmatprep.subr.bf16.mxu0 %v1799
        %1863 = vmatpush1.bf16.msra.mxu0 %v1798
        %1864 = vmatprep.subr.bf16.mxu0 %v1801
        %1865 = vmatpush1.bf16.msra.mxu0 %v1800
        %1866 = vmatprep.subr.bf16.mxu0 %v1803
        %1867 = vmatpush1.bf16.msra.mxu0 %v1802
        %1868 = vmatprep.subr.bf16.mxu0 %v1805
        %1869 = vmatpush1.bf16.msra.mxu0 %v1804
        %1870 = vmatprep.subr.bf16.mxu0 %v1807
        %1871 = vmatpush1.bf16.msra.mxu0 %v1806
        %1872 = vmatprep.subr.bf16.mxu0 0
        %1873 = vmatpush1.bf16.msra.mxu0 0
        %1874 = vmatprep.mubr.bf16.mxu0 %v1840
        %1875 = vmatmul.mubr.bf16.gmra.mrb[0].mxu0 %v1655
        %v1876 = vpop.f32.mrb[0].mxu0
        %v1877 = vadd.f32 0.0, %v1876
        %v1878 = vpop.f32.mrb[0].mxu0
        %v1879 = vadd.f32 0.0, %v1878
        %v1880 = vpop.f32.mrb[0].mxu0
        %v1881 = vpop.f32.mrb[0].mxu0
        %1882 = vdwg.mxu0
        %v1884 = vlaneseq
        %v1885 = vshrl.u32 %v1884, 7
        %v1886 = vsub.s32 0, %v1885
        %v1887 = vrot.slane %v1657, %v1886
        %v1888 = vlaneseq
        %v1889 = vshrl.u32 %v1888, 7
        %v1890 = vsub.s32 1, %v1889
        %v1891 = vrot.slane %v1657, %v1890
        %v1894 = vadd.f32 %v1887, %v1877
        %v1895 = vadd.f32 %v1891, %v1879
        %s1896 = scalar_lea.vmem %s3, 240
        %v1897 = vld [vmem:[%s1896] sm:$0xff]
        %v1898 = vld [vmem:[%s1896 + $0x8] sm:$0xff]
        %v1899 = vld [vmem:[%s1896 + $0x10] sm:$0xff]
        %v1900 = vld [vmem:[%s1896 + $0x18] sm:$0xff]
        %v1901 = vld [vmem:[%s1896 + $0x20] sm:$0xff]
        %v1902 = vld [vmem:[%s1896 + $0x28] sm:$0xff]
        %v1903 = vld [vmem:[%s1896 + $0x30] sm:$0xff]
        %v1904 = vld [vmem:[%s1896 + $0x38] sm:$0xff]
        %v1905 = vld [vmem:[%s1896 + $0x40] sm:$0xff]
        %v1906 = vld [vmem:[%s1896 + $0x48] sm:$0xff]
        %v1907 = vld [vmem:[%s1896 + $0x50] sm:$0xff]
        %v1908 = vld [vmem:[%s1896 + $0x58] sm:$0xff]
        %v1909 = vld [vmem:[%s1896 + $0x60] sm:$0xff]
        %v1910 = vld [vmem:[%s1896 + $0x68] sm:$0xff]
        %v1911 = vld [vmem:[%s1896 + $0x70] sm:$0xff]
        %v1912 = vld [vmem:[%s1896 + $0x78] sm:$0xff]
        %v1913 = vld [vmem:[%s1896 + $0x80] sm:$0xff]
        %v1914 = vld [vmem:[%s1896 + $0x88] sm:$0xff]
        %v1915 = vld [vmem:[%s1896 + $0x90] sm:$0xff]
        %v1916 = vld [vmem:[%s1896 + $0x98] sm:$0xff]
        %v1917 = vld [vmem:[%s1896 + $0xa0] sm:$0xff]
        %v1918 = vld [vmem:[%s1896 + $0xa8] sm:$0xff]
        %v1919 = vld [vmem:[%s1896 + $0xb0] sm:$0xff]
        %v1920 = vld [vmem:[%s1896 + $0xb8] sm:$0xff]
        %v1921 = vld [vmem:[%s1896 + $0xc0] sm:$0xff]
        %v1922 = vld [vmem:[%s1896 + $0xc8] sm:$0xff]
        %v1923 = vld [vmem:[%s1896 + $0xd0] sm:$0xff]
        %v1924 = vld [vmem:[%s1896 + $0xd8] sm:$0xff]
        %v1925 = vld [vmem:[%s1896 + $0xe0] sm:$0xff]
        %v1926 = vld [vmem:[%s1896 + $0xe8] sm:$0xff]
        %v1928 = vshrl.u32 %v1655, 16
        %v1930 = vshll.u32 %v1655, 16
        %v1932 = vrot.slane %v1930, 1
        %v1933 = vor.u32 %v1928, %v1932
        %v1934 = vshrl.u32 %v1656, 16
        %v1936 = vshll.u32 %v1656, 16
        %v1938 = vrot.slane %v1936, 1
        %v1939 = vor.u32 %v1934, %v1938
        %v1971 = vunpack.c.l.b16 %v1897
        %v1972 = vunpack.c.h.b16 %v1897
        %v1973 = vunpack.c.l.b16 %v1898
        %v1974 = vunpack.c.h.b16 %v1898
        %v1975 = vunpack.c.l.b16 %v1899
        %v1976 = vunpack.c.h.b16 %v1899
        %v1977 = vunpack.c.l.b16 %v1900
        %v1978 = vunpack.c.h.b16 %v1900
        %v1979 = vunpack.c.l.b16 %v1901
        %v1980 = vunpack.c.h.b16 %v1901
        %v1981 = vunpack.c.l.b16 %v1902
        %v1982 = vunpack.c.h.b16 %v1902
        %v1983 = vunpack.c.l.b16 %v1903
        %v1984 = vunpack.c.h.b16 %v1903
        %v1985 = vunpack.c.l.b16 %v1904
        %v1986 = vunpack.c.h.b16 %v1904
        %v1987 = vunpack.c.l.b16 %v1905
        %v1988 = vunpack.c.h.b16 %v1905
        %v1989 = vunpack.c.l.b16 %v1906
        %v1990 = vunpack.c.h.b16 %v1906
        %v1991 = vunpack.c.l.b16 %v1907
        %v1992 = vunpack.c.h.b16 %v1907
        %v1993 = vunpack.c.l.b16 %v1908
        %v1994 = vunpack.c.h.b16 %v1908
        %v1995 = vunpack.c.l.b16 %v1909
        %v1996 = vunpack.c.h.b16 %v1909
        %v1997 = vunpack.c.l.b16 %v1910
        %v1998 = vunpack.c.h.b16 %v1910
        %v1999 = vunpack.c.l.b16 %v1911
        %v2000 = vunpack.c.h.b16 %v1911
        %v2001 = vunpack.c.l.b16 %v1912
        %v2002 = vunpack.c.h.b16 %v1912
        %v2003 = vunpack.c.l.b16 %v1913
        %v2004 = vunpack.c.h.b16 %v1913
        %v2005 = vunpack.c.l.b16 %v1914
        %v2006 = vunpack.c.h.b16 %v1914
        %v2007 = vunpack.c.l.b16 %v1915
        %v2008 = vunpack.c.h.b16 %v1915
        %v2009 = vunpack.c.l.b16 %v1916
        %v2010 = vunpack.c.h.b16 %v1916
        %v2011 = vunpack.c.l.b16 %v1917
        %v2012 = vunpack.c.h.b16 %v1917
        %v2013 = vunpack.c.l.b16 %v1918
        %v2014 = vunpack.c.h.b16 %v1918
        %v2015 = vunpack.c.l.b16 %v1919
        %v2016 = vunpack.c.h.b16 %v1919
        %v2017 = vunpack.c.l.b16 %v1920
        %v2018 = vunpack.c.h.b16 %v1920
        %v2019 = vunpack.c.l.b16 %v1921
        %v2020 = vunpack.c.h.b16 %v1921
        %v2021 = vunpack.c.l.b16 %v1922
        %v2022 = vunpack.c.h.b16 %v1922
        %v2023 = vunpack.c.l.b16 %v1923
        %v2024 = vunpack.c.h.b16 %v1923
        %v2025 = vunpack.c.l.b16 %v1924
        %v2026 = vunpack.c.h.b16 %v1924
        %v2027 = vunpack.c.l.b16 %v1925
        %v2028 = vunpack.c.h.b16 %v1925
        %v2029 = vunpack.c.l.b16 %v1926
        %v2030 = vunpack.c.h.b16 %v1926
        %v2031 = vpack.c.b16 %v1973, %v1971
        %v2032 = vpack.c.b16 %v1974, %v1972
        %v2033 = vpack.c.b16 %v1977, %v1975
        %v2034 = vpack.c.b16 %v1978, %v1976
        %v2035 = vpack.c.b16 %v1981, %v1979
        %v2036 = vpack.c.b16 %v1982, %v1980
        %v2037 = vpack.c.b16 %v1985, %v1983
        %v2038 = vpack.c.b16 %v1986, %v1984
        %v2039 = vpack.c.b16 %v1989, %v1987
        %v2040 = vpack.c.b16 %v1990, %v1988
        %v2041 = vpack.c.b16 %v1993, %v1991
        %v2042 = vpack.c.b16 %v1994, %v1992
        %v2043 = vpack.c.b16 %v1997, %v1995
        %v2044 = vpack.c.b16 %v1998, %v1996
        %v2045 = vpack.c.b16 %v2001, %v1999
        %v2046 = vpack.c.b16 %v2002, %v2000
        %v2047 = vpack.c.b16 %v2005, %v2003
        %v2048 = vpack.c.b16 %v2006, %v2004
        %v2049 = vpack.c.b16 %v2009, %v2007
        %v2050 = vpack.c.b16 %v2010, %v2008
        %v2051 = vpack.c.b16 %v2013, %v2011
        %v2052 = vpack.c.b16 %v2014, %v2012
        %v2053 = vpack.c.b16 %v2017, %v2015
        %v2054 = vpack.c.b16 %v2018, %v2016
        %v2055 = vpack.c.b16 %v2021, %v2019
        %v2056 = vpack.c.b16 %v2022, %v2020
        %v2057 = vpack.c.b16 %v2025, %v2023
        %v2058 = vpack.c.b16 %v2026, %v2024
        %v2059 = vpack.c.b16 %v2029, %v2027
        %v2060 = vpack.c.b16 %v2030, %v2028
        %v2092 = vsel %vm1838, %v1939, 0
        %2094 = vmatprep.subr.bf16.mxu0 %v2032
        %2095 = vmatpush1.bf16.msra.mxu0 %v2031
        %2096 = vmatprep.subr.bf16.mxu0 %v2034
        %2097 = vmatpush1.bf16.msra.mxu0 %v2033
        %2098 = vmatprep.subr.bf16.mxu0 %v2036
        %2099 = vmatpush1.bf16.msra.mxu0 %v2035
        %2100 = vmatprep.subr.bf16.mxu0 %v2038
        %2101 = vmatpush1.bf16.msra.mxu0 %v2037
        %2102 = vmatprep.subr.bf16.mxu0 %v2040
        %2103 = vmatpush1.bf16.msra.mxu0 %v2039
        %2104 = vmatprep.subr.bf16.mxu0 %v2042
        %2105 = vmatpush1.bf16.msra.mxu0 %v2041
        %2106 = vmatprep.subr.bf16.mxu0 %v2044
        %2107 = vmatpush1.bf16.msra.mxu0 %v2043
        %2108 = vmatprep.subr.bf16.mxu0 %v2046
        %2109 = vmatpush1.bf16.msra.mxu0 %v2045
        %2110 = vmatprep.subr.bf16.mxu0 %v2048
        %2111 = vmatpush1.bf16.msra.mxu0 %v2047
        %2112 = vmatprep.subr.bf16.mxu0 %v2050
        %2113 = vmatpush1.bf16.msra.mxu0 %v2049
        %2114 = vmatprep.subr.bf16.mxu0 %v2052
        %2115 = vmatpush1.bf16.msra.mxu0 %v2051
        %2116 = vmatprep.subr.bf16.mxu0 %v2054
        %2117 = vmatpush1.bf16.msra.mxu0 %v2053
        %2118 = vmatprep.subr.bf16.mxu0 %v2056
        %2119 = vmatpush1.bf16.msra.mxu0 %v2055
        %2120 = vmatprep.subr.bf16.mxu0 %v2058
        %2121 = vmatpush1.bf16.msra.mxu0 %v2057
        %2122 = vmatprep.subr.bf16.mxu0 %v2060
        %2123 = vmatpush1.bf16.msra.mxu0 %v2059
        %2124 = vmatprep.subr.bf16.mxu0 0
        %2125 = vmatpush1.bf16.msra.mxu0 0
        %2126 = vmatprep.mubr.bf16.mxu0 %v2092
        %2127 = vmatmul.mubr.bf16.gmra.mrb[0].mxu0 %v1933
        %v2128 = vpop.f32.mrb[0].mxu0
        %v2129 = vadd.f32 0.0, %v2128
        %v2130 = vpop.f32.mrb[0].mxu0
        %v2131 = vadd.f32 0.0, %v2130
        %v2132 = vpop.f32.mrb[0].mxu0
        %v2133 = vpop.f32.mrb[0].mxu0
        %2134 = vdwg.mxu0
        %v2135 = vadd.f32 %v1894, %v2129
        %v2136 = vadd.f32 %v1895, %v2131
        %s2137 = scalar_lea.vmem %s3, 480
        %v2138 = vld [vmem:[%s2137] sm:$0xff]
        %v2139 = vld [vmem:[%s2137 + $0x8] sm:$0xff]
        %v2140 = vld [vmem:[%s2137 + $0x10] sm:$0xff]
        %v2141 = vld [vmem:[%s2137 + $0x18] sm:$0xff]
        %v2142 = vld [vmem:[%s2137 + $0x20] sm:$0xff]
        %v2143 = vld [vmem:[%s2137 + $0x28] sm:$0xff]
        %v2144 = vld [vmem:[%s2137 + $0x30] sm:$0xff]
        %v2145 = vld [vmem:[%s2137 + $0x38] sm:$0xff]
        %v2146 = vld [vmem:[%s2137 + $0x40] sm:$0xff]
        %v2147 = vld [vmem:[%s2137 + $0x48] sm:$0xff]
        %v2148 = vld [vmem:[%s2137 + $0x50] sm:$0xff]
        %v2149 = vld [vmem:[%s2137 + $0x58] sm:$0xff]
        %v2150 = vld [vmem:[%s2137 + $0x60] sm:$0xff]
        %v2151 = vld [vmem:[%s2137 + $0x68] sm:$0xff]
        %v2152 = vld [vmem:[%s2137 + $0x70] sm:$0xff]
        %v2153 = vld [vmem:[%s2137 + $0x78] sm:$0xff]
        %v2154 = vld [vmem:[%s2137 + $0x80] sm:$0xff]
        %v2155 = vld [vmem:[%s2137 + $0x88] sm:$0xff]
        %v2156 = vld [vmem:[%s2137 + $0x90] sm:$0xff]
        %v2157 = vld [vmem:[%s2137 + $0x98] sm:$0xff]
        %v2158 = vld [vmem:[%s2137 + $0xa0] sm:$0xff]
        %v2159 = vld [vmem:[%s2137 + $0xa8] sm:$0xff]
        %v2160 = vld [vmem:[%s2137 + $0xb0] sm:$0xff]
        %v2161 = vld [vmem:[%s2137 + $0xb8] sm:$0xff]
        %v2162 = vld [vmem:[%s2137 + $0xc0] sm:$0xff]
        %v2163 = vld [vmem:[%s2137 + $0xc8] sm:$0xff]
        %v2164 = vld [vmem:[%s2137 + $0xd0] sm:$0xff]
        %v2165 = vld [vmem:[%s2137 + $0xd8] sm:$0xff]
        %v2166 = vld [vmem:[%s2137 + $0xe0] sm:$0xff]
        %v2167 = vld [vmem:[%s2137 + $0xe8] sm:$0xff]
        %v2170 = vrot.slane %v1655, 1
        %v2171 = vrot.slane %v1656, 1
        %v2203 = vunpack.c.l.b16 %v2138
        %v2204 = vunpack.c.h.b16 %v2138
        %v2205 = vunpack.c.l.b16 %v2139
        %v2206 = vunpack.c.h.b16 %v2139
        %v2207 = vunpack.c.l.b16 %v2140
        %v2208 = vunpack.c.h.b16 %v2140
        %v2209 = vunpack.c.l.b16 %v2141
        %v2210 = vunpack.c.h.b16 %v2141
        %v2211 = vunpack.c.l.b16 %v2142
        %v2212 = vunpack.c.h.b16 %v2142
        %v2213 = vunpack.c.l.b16 %v2143
        %v2214 = vunpack.c.h.b16 %v2143
        %v2215 = vunpack.c.l.b16 %v2144
        %v2216 = vunpack.c.h.b16 %v2144
        %v2217 = vunpack.c.l.b16 %v2145
        %v2218 = vunpack.c.h.b16 %v2145
        %v2219 = vunpack.c.l.b16 %v2146
        %v2220 = vunpack.c.h.b16 %v2146
        %v2221 = vunpack.c.l.b16 %v2147
        %v2222 = vunpack.c.h.b16 %v2147
        %v2223 = vunpack.c.l.b16 %v2148
        %v2224 = vunpack.c.h.b16 %v2148
        %v2225 = vunpack.c.l.b16 %v2149
        %v2226 = vunpack.c.h.b16 %v2149
        %v2227 = vunpack.c.l.b16 %v2150
        %v2228 = vunpack.c.h.b16 %v2150
        %v2229 = vunpack.c.l.b16 %v2151
        %v2230 = vunpack.c.h.b16 %v2151
        %v2231 = vunpack.c.l.b16 %v2152
        %v2232 = vunpack.c.h.b16 %v2152
        %v2233 = vunpack.c.l.b16 %v2153
        %v2234 = vunpack.c.h.b16 %v2153
        %v2235 = vunpack.c.l.b16 %v2154
        %v2236 = vunpack.c.h.b16 %v2154
        %v2237 = vunpack.c.l.b16 %v2155
        %v2238 = vunpack.c.h.b16 %v2155
        %v2239 = vunpack.c.l.b16 %v2156
        %v2240 = vunpack.c.h.b16 %v2156
        %v2241 = vunpack.c.l.b16 %v2157
        %v2242 = vunpack.c.h.b16 %v2157
        %v2243 = vunpack.c.l.b16 %v2158
        %v2244 = vunpack.c.h.b16 %v2158
        %v2245 = vunpack.c.l.b16 %v2159
        %v2246 = vunpack.c.h.b16 %v2159
        %v2247 = vunpack.c.l.b16 %v2160
        %v2248 = vunpack.c.h.b16 %v2160
        %v2249 = vunpack.c.l.b16 %v2161
        %v2250 = vunpack.c.h.b16 %v2161
        %v2251 = vunpack.c.l.b16 %v2162
        %v2252 = vunpack.c.h.b16 %v2162
        %v2253 = vunpack.c.l.b16 %v2163
        %v2254 = vunpack.c.h.b16 %v2163
        %v2255 = vunpack.c.l.b16 %v2164
        %v2256 = vunpack.c.h.b16 %v2164
        %v2257 = vunpack.c.l.b16 %v2165
        %v2258 = vunpack.c.h.b16 %v2165
        %v2259 = vunpack.c.l.b16 %v2166
        %v2260 = vunpack.c.h.b16 %v2166
        %v2261 = vunpack.c.l.b16 %v2167
        %v2262 = vunpack.c.h.b16 %v2167
        %v2263 = vpack.c.b16 %v2205, %v2203
        %v2264 = vpack.c.b16 %v2206, %v2204
        %v2265 = vpack.c.b16 %v2209, %v2207
        %v2266 = vpack.c.b16 %v2210, %v2208
        %v2267 = vpack.c.b16 %v2213, %v2211
        %v2268 = vpack.c.b16 %v2214, %v2212
        %v2269 = vpack.c.b16 %v2217, %v2215
        %v2270 = vpack.c.b16 %v2218, %v2216
        %v2271 = vpack.c.b16 %v2221, %v2219
        %v2272 = vpack.c.b16 %v2222, %v2220
        %v2273 = vpack.c.b16 %v2225, %v2223
        %v2274 = vpack.c.b16 %v2226, %v2224
        %v2275 = vpack.c.b16 %v2229, %v2227
        %v2276 = vpack.c.b16 %v2230, %v2228
        %v2277 = vpack.c.b16 %v2233, %v2231
        %v2278 = vpack.c.b16 %v2234, %v2232
        %v2279 = vpack.c.b16 %v2237, %v2235
        %v2280 = vpack.c.b16 %v2238, %v2236
        %v2281 = vpack.c.b16 %v2241, %v2239
        %v2282 = vpack.c.b16 %v2242, %v2240
        %v2283 = vpack.c.b16 %v2245, %v2243
        %v2284 = vpack.c.b16 %v2246, %v2244
        %v2285 = vpack.c.b16 %v2249, %v2247
        %v2286 = vpack.c.b16 %v2250, %v2248
        %v2287 = vpack.c.b16 %v2253, %v2251
        %v2288 = vpack.c.b16 %v2254, %v2252
        %v2289 = vpack.c.b16 %v2257, %v2255
        %v2290 = vpack.c.b16 %v2258, %v2256
        %v2291 = vpack.c.b16 %v2261, %v2259
        %v2292 = vpack.c.b16 %v2262, %v2260
        %v2324 = vsel %vm1838, %v2171, 0
        %2326 = vmatprep.subr.bf16.mxu0 %v2264
        %2327 = vmatpush1.bf16.msra.mxu0 %v2263
        %2328 = vmatprep.subr.bf16.mxu0 %v2266
        %2329 = vmatpush1.bf16.msra.mxu0 %v2265
        %2330 = vmatprep.subr.bf16.mxu0 %v2268
        %2331 = vmatpush1.bf16.msra.mxu0 %v2267
        %2332 = vmatprep.subr.bf16.mxu0 %v2270
        %2333 = vmatpush1.bf16.msra.mxu0 %v2269
        %2334 = vmatprep.subr.bf16.mxu0 %v2272
        %2335 = vmatpush1.bf16.msra.mxu0 %v2271
        %2336 = vmatprep.subr.bf16.mxu0 %v2274
        %2337 = vmatpush1.bf16.msra.mxu0 %v2273
        %2338 = vmatprep.subr.bf16.mxu0 %v2276
        %2339 = vmatpush1.bf16.msra.mxu0 %v2275
        %2340 = vmatprep.subr.bf16.mxu0 %v2278
        %2341 = vmatpush1.bf16.msra.mxu0 %v2277
        %2342 = vmatprep.subr.bf16.mxu0 %v2280
        %2343 = vmatpush1.bf16.msra.mxu0 %v2279
        %2344 = vmatprep.subr.bf16.mxu0 %v2282
        %2345 = vmatpush1.bf16.msra.mxu0 %v2281
        %2346 = vmatprep.subr.bf16.mxu0 %v2284
        %2347 = vmatpush1.bf16.msra.mxu0 %v2283
        %2348 = vmatprep.subr.bf16.mxu0 %v2286
        %2349 = vmatpush1.bf16.msra.mxu0 %v2285
        %2350 = vmatprep.subr.bf16.mxu0 %v2288
        %2351 = vmatpush1.bf16.msra.mxu0 %v2287
        %2352 = vmatprep.subr.bf16.mxu0 %v2290
        %2353 = vmatpush1.bf16.msra.mxu0 %v2289
        %2354 = vmatprep.subr.bf16.mxu0 %v2292
        %2355 = vmatpush1.bf16.msra.mxu0 %v2291
        %2356 = vmatprep.subr.bf16.mxu0 0
        %2357 = vmatpush1.bf16.msra.mxu0 0
        %2358 = vmatprep.mubr.bf16.mxu0 %v2324
        %2359 = vmatmul.mubr.bf16.gmra.mrb[0].mxu0 %v2170
        %v2360 = vpop.f32.mrb[0].mxu0
        %v2361 = vadd.f32 0.0, %v2360
        %v2362 = vpop.f32.mrb[0].mxu0
        %v2363 = vadd.f32 0.0, %v2362
        %v2364 = vpop.f32.mrb[0].mxu0
        %v2365 = vpop.f32.mrb[0].mxu0
        %2366 = vdwg.mxu0
        %v2367 = vadd.f32 %v2135, %v2361
        %v2368 = vadd.f32 %v2136, %v2363
        %s2369 = scalar_lea.vmem %s3, 720
        %v2370 = vld [vmem:[%s2369] sm:$0xff]
        %v2371 = vld [vmem:[%s2369 + $0x8] sm:$0xff]
        %v2372 = vld [vmem:[%s2369 + $0x10] sm:$0xff]
        %v2373 = vld [vmem:[%s2369 + $0x18] sm:$0xff]
        %v2374 = vld [vmem:[%s2369 + $0x20] sm:$0xff]
        %v2375 = vld [vmem:[%s2369 + $0x28] sm:$0xff]
        %v2376 = vld [vmem:[%s2369 + $0x30] sm:$0xff]
        %v2377 = vld [vmem:[%s2369 + $0x38] sm:$0xff]
        %v2378 = vld [vmem:[%s2369 + $0x40] sm:$0xff]
        %v2379 = vld [vmem:[%s2369 + $0x48] sm:$0xff]
        %v2380 = vld [vmem:[%s2369 + $0x50] sm:$0xff]
        %v2381 = vld [vmem:[%s2369 + $0x58] sm:$0xff]
        %v2382 = vld [vmem:[%s2369 + $0x60] sm:$0xff]
        %v2383 = vld [vmem:[%s2369 + $0x68] sm:$0xff]
        %v2384 = vld [vmem:[%s2369 + $0x70] sm:$0xff]
        %v2385 = vld [vmem:[%s2369 + $0x78] sm:$0xff]
        %v2386 = vld [vmem:[%s2369 + $0x80] sm:$0xff]
        %v2387 = vld [vmem:[%s2369 + $0x88] sm:$0xff]
        %v2388 = vld [vmem:[%s2369 + $0x90] sm:$0xff]
        %v2389 = vld [vmem:[%s2369 + $0x98] sm:$0xff]
        %v2390 = vld [vmem:[%s2369 + $0xa0] sm:$0xff]
        %v2391 = vld [vmem:[%s2369 + $0xa8] sm:$0xff]
        %v2392 = vld [vmem:[%s2369 + $0xb0] sm:$0xff]
        %v2393 = vld [vmem:[%s2369 + $0xb8] sm:$0xff]
        %v2394 = vld [vmem:[%s2369 + $0xc0] sm:$0xff]
        %v2395 = vld [vmem:[%s2369 + $0xc8] sm:$0xff]
        %v2396 = vld [vmem:[%s2369 + $0xd0] sm:$0xff]
        %v2397 = vld [vmem:[%s2369 + $0xd8] sm:$0xff]
        %v2398 = vld [vmem:[%s2369 + $0xe0] sm:$0xff]
        %v2399 = vld [vmem:[%s2369 + $0xe8] sm:$0xff]
        %v2400 = vrot.slane %v1928, 1
        %v2401 = vrot.slane %v1930, 2
        %v2402 = vor.u32 %v2400, %v2401
        %v2403 = vrot.slane %v1934, 1
        %v2404 = vrot.slane %v1936, 2
        %v2405 = vor.u32 %v2403, %v2404
        %v2437 = vunpack.c.l.b16 %v2370
        %v2438 = vunpack.c.h.b16 %v2370
        %v2439 = vunpack.c.l.b16 %v2371
        %v2440 = vunpack.c.h.b16 %v2371
        %v2441 = vunpack.c.l.b16 %v2372
        %v2442 = vunpack.c.h.b16 %v2372
        %v2443 = vunpack.c.l.b16 %v2373
        %v2444 = vunpack.c.h.b16 %v2373
        %v2445 = vunpack.c.l.b16 %v2374
        %v2446 = vunpack.c.h.b16 %v2374
        %v2447 = vunpack.c.l.b16 %v2375
        %v2448 = vunpack.c.h.b16 %v2375
        %v2449 = vunpack.c.l.b16 %v2376
        %v2450 = vunpack.c.h.b16 %v2376
        %v2451 = vunpack.c.l.b16 %v2377
        %v2452 = vunpack.c.h.b16 %v2377
        %v2453 = vunpack.c.l.b16 %v2378
        %v2454 = vunpack.c.h.b16 %v2378
        %v2455 = vunpack.c.l.b16 %v2379
        %v2456 = vunpack.c.h.b16 %v2379
        %v2457 = vunpack.c.l.b16 %v2380
        %v2458 = vunpack.c.h.b16 %v2380
        %v2459 = vunpack.c.l.b16 %v2381
        %v2460 = vunpack.c.h.b16 %v2381
        %v2461 = vunpack.c.l.b16 %v2382
        %v2462 = vunpack.c.h.b16 %v2382
        %v2463 = vunpack.c.l.b16 %v2383
        %v2464 = vunpack.c.h.b16 %v2383
        %v2465 = vunpack.c.l.b16 %v2384
        %v2466 = vunpack.c.h.b16 %v2384
        %v2467 = vunpack.c.l.b16 %v2385
        %v2468 = vunpack.c.h.b16 %v2385
        %v2469 = vunpack.c.l.b16 %v2386
        %v2470 = vunpack.c.h.b16 %v2386
        %v2471 = vunpack.c.l.b16 %v2387
        %v2472 = vunpack.c.h.b16 %v2387
        %v2473 = vunpack.c.l.b16 %v2388
        %v2474 = vunpack.c.h.b16 %v2388
        %v2475 = vunpack.c.l.b16 %v2389
        %v2476 = vunpack.c.h.b16 %v2389
        %v2477 = vunpack.c.l.b16 %v2390
        %v2478 = vunpack.c.h.b16 %v2390
        %v2479 = vunpack.c.l.b16 %v2391
        %v2480 = vunpack.c.h.b16 %v2391
        %v2481 = vunpack.c.l.b16 %v2392
        %v2482 = vunpack.c.h.b16 %v2392
        %v2483 = vunpack.c.l.b16 %v2393
        %v2484 = vunpack.c.h.b16 %v2393
        %v2485 = vunpack.c.l.b16 %v2394
        %v2486 = vunpack.c.h.b16 %v2394
        %v2487 = vunpack.c.l.b16 %v2395
        %v2488 = vunpack.c.h.b16 %v2395
        %v2489 = vunpack.c.l.b16 %v2396
        %v2490 = vunpack.c.h.b16 %v2396
        %v2491 = vunpack.c.l.b16 %v2397
        %v2492 = vunpack.c.h.b16 %v2397
        %v2493 = vunpack.c.l.b16 %v2398
        %v2494 = vunpack.c.h.b16 %v2398
        %v2495 = vunpack.c.l.b16 %v2399
        %v2496 = vunpack.c.h.b16 %v2399
        %v2497 = vpack.c.b16 %v2439, %v2437
        %v2498 = vpack.c.b16 %v2440, %v2438
        %v2499 = vpack.c.b16 %v2443, %v2441
        %v2500 = vpack.c.b16 %v2444, %v2442
        %v2501 = vpack.c.b16 %v2447, %v2445
        %v2502 = vpack.c.b16 %v2448, %v2446
        %v2503 = vpack.c.b16 %v2451, %v2449
        %v2504 = vpack.c.b16 %v2452, %v2450
        %v2505 = vpack.c.b16 %v2455, %v2453
        %v2506 = vpack.c.b16 %v2456, %v2454
        %v2507 = vpack.c.b16 %v2459, %v2457
        %v2508 = vpack.c.b16 %v2460, %v2458
        %v2509 = vpack.c.b16 %v2463, %v2461
        %v2510 = vpack.c.b16 %v2464, %v2462
        %v2511 = vpack.c.b16 %v2467, %v2465
        %v2512 = vpack.c.b16 %v2468, %v2466
        %v2513 = vpack.c.b16 %v2471, %v2469
        %v2514 = vpack.c.b16 %v2472, %v2470
        %v2515 = vpack.c.b16 %v2475, %v2473
        %v2516 = vpack.c.b16 %v2476, %v2474
        %v2517 = vpack.c.b16 %v2479, %v2477
        %v2518 = vpack.c.b16 %v2480, %v2478
        %v2519 = vpack.c.b16 %v2483, %v2481
        %v2520 = vpack.c.b16 %v2484, %v2482
        %v2521 = vpack.c.b16 %v2487, %v2485
        %v2522 = vpack.c.b16 %v2488, %v2486
        %v2523 = vpack.c.b16 %v2491, %v2489
        %v2524 = vpack.c.b16 %v2492, %v2490
        %v2525 = vpack.c.b16 %v2495, %v2493
        %v2526 = vpack.c.b16 %v2496, %v2494
        %v2558 = vsel %vm1838, %v2405, 0
        %2560 = vmatprep.subr.bf16.mxu0 %v2498
        %2561 = vmatpush1.bf16.msra.mxu0 %v2497
        %2562 = vmatprep.subr.bf16.mxu0 %v2500
        %2563 = vmatpush1.bf16.msra.mxu0 %v2499
        %2564 = vmatprep.subr.bf16.mxu0 %v2502
        %2565 = vmatpush1.bf16.msra.mxu0 %v2501
        %2566 = vmatprep.subr.bf16.mxu0 %v2504
        %2567 = vmatpush1.bf16.msra.mxu0 %v2503
        %2568 = vmatprep.subr.bf16.mxu0 %v2506
        %2569 = vmatpush1.bf16.msra.mxu0 %v2505
        %2570 = vmatprep.subr.bf16.mxu0 %v2508
        %2571 = vmatpush1.bf16.msra.mxu0 %v2507
        %2572 = vmatprep.subr.bf16.mxu0 %v2510
        %2573 = vmatpush1.bf16.msra.mxu0 %v2509
        %2574 = vmatprep.subr.bf16.mxu0 %v2512
        %2575 = vmatpush1.bf16.msra.mxu0 %v2511
        %2576 = vmatprep.subr.bf16.mxu0 %v2514
        %2577 = vmatpush1.bf16.msra.mxu0 %v2513
        %2578 = vmatprep.subr.bf16.mxu0 %v2516
        %2579 = vmatpush1.bf16.msra.mxu0 %v2515
        %2580 = vmatprep.subr.bf16.mxu0 %v2518
        %2581 = vmatpush1.bf16.msra.mxu0 %v2517
        %2582 = vmatprep.subr.bf16.mxu0 %v2520
        %2583 = vmatpush1.bf16.msra.mxu0 %v2519
        %2584 = vmatprep.subr.bf16.mxu0 %v2522
        %2585 = vmatpush1.bf16.msra.mxu0 %v2521
        %2586 = vmatprep.subr.bf16.mxu0 %v2524
        %2587 = vmatpush1.bf16.msra.mxu0 %v2523
        %2588 = vmatprep.subr.bf16.mxu0 %v2526
        %2589 = vmatpush1.bf16.msra.mxu0 %v2525
        %2590 = vmatprep.subr.bf16.mxu0 0
        %2591 = vmatpush1.bf16.msra.mxu0 0
        %2592 = vmatprep.mubr.bf16.mxu0 %v2558
        %2593 = vmatmul.mubr.bf16.gmra.mrb[0].mxu0 %v2402
        %v2594 = vpop.f32.mrb[0].mxu0
        %v2595 = vadd.f32 0.0, %v2594
        %v2596 = vpop.f32.mrb[0].mxu0
        %v2597 = vadd.f32 0.0, %v2596
        %v2598 = vpop.f32.mrb[0].mxu0
        %v2599 = vpop.f32.mrb[0].mxu0
        %2600 = vdwg.mxu0
        %v2601 = vadd.f32 %v2367, %v2595
        %v2602 = vadd.f32 %v2368, %v2597
        %s2603 = scalar_lea.vmem %s3, 960
        %v2604 = vld [vmem:[%s2603] sm:$0xff]
        %v2605 = vld [vmem:[%s2603 + $0x8] sm:$0xff]
        %v2606 = vld [vmem:[%s2603 + $0x10] sm:$0xff]
        %v2607 = vld [vmem:[%s2603 + $0x18] sm:$0xff]
        %v2608 = vld [vmem:[%s2603 + $0x20] sm:$0xff]
        %v2609 = vld [vmem:[%s2603 + $0x28] sm:$0xff]
        %v2610 = vld [vmem:[%s2603 + $0x30] sm:$0xff]
        %v2611 = vld [vmem:[%s2603 + $0x38] sm:$0xff]
        %v2612 = vld [vmem:[%s2603 + $0x40] sm:$0xff]
        %v2613 = vld [vmem:[%s2603 + $0x48] sm:$0xff]
        %v2614 = vld [vmem:[%s2603 + $0x50] sm:$0xff]
        %v2615 = vld [vmem:[%s2603 + $0x58] sm:$0xff]
        %v2616 = vld [vmem:[%s2603 + $0x60] sm:$0xff]
        %v2617 = vld [vmem:[%s2603 + $0x68] sm:$0xff]
        %v2618 = vld [vmem:[%s2603 + $0x70] sm:$0xff]
        %v2619 = vld [vmem:[%s2603 + $0x78] sm:$0xff]
        %v2620 = vld [vmem:[%s2603 + $0x80] sm:$0xff]
        %v2621 = vld [vmem:[%s2603 + $0x88] sm:$0xff]
        %v2622 = vld [vmem:[%s2603 + $0x90] sm:$0xff]
        %v2623 = vld [vmem:[%s2603 + $0x98] sm:$0xff]
        %v2624 = vld [vmem:[%s2603 + $0xa0] sm:$0xff]
        %v2625 = vld [vmem:[%s2603 + $0xa8] sm:$0xff]
        %v2626 = vld [vmem:[%s2603 + $0xb0] sm:$0xff]
        %v2627 = vld [vmem:[%s2603 + $0xb8] sm:$0xff]
        %v2628 = vld [vmem:[%s2603 + $0xc0] sm:$0xff]
        %v2629 = vld [vmem:[%s2603 + $0xc8] sm:$0xff]
        %v2630 = vld [vmem:[%s2603 + $0xd0] sm:$0xff]
        %v2631 = vld [vmem:[%s2603 + $0xd8] sm:$0xff]
        %v2632 = vld [vmem:[%s2603 + $0xe0] sm:$0xff]
        %v2633 = vld [vmem:[%s2603 + $0xe8] sm:$0xff]
        %v2634 = vrot.slane %v1655, 2
        %v2635 = vrot.slane %v1656, 2
        %v2667 = vunpack.c.l.b16 %v2604
        %v2668 = vunpack.c.h.b16 %v2604
        %v2669 = vunpack.c.l.b16 %v2605
        %v2670 = vunpack.c.h.b16 %v2605
        %v2671 = vunpack.c.l.b16 %v2606
        %v2672 = vunpack.c.h.b16 %v2606
        %v2673 = vunpack.c.l.b16 %v2607
        %v2674 = vunpack.c.h.b16 %v2607
        %v2675 = vunpack.c.l.b16 %v2608
        %v2676 = vunpack.c.h.b16 %v2608
        %v2677 = vunpack.c.l.b16 %v2609
        %v2678 = vunpack.c.h.b16 %v2609
        %v2679 = vunpack.c.l.b16 %v2610
        %v2680 = vunpack.c.h.b16 %v2610
        %v2681 = vunpack.c.l.b16 %v2611
        %v2682 = vunpack.c.h.b16 %v2611
        %v2683 = vunpack.c.l.b16 %v2612
        %v2684 = vunpack.c.h.b16 %v2612
        %v2685 = vunpack.c.l.b16 %v2613
        %v2686 = vunpack.c.h.b16 %v2613
        %v2687 = vunpack.c.l.b16 %v2614
        %v2688 = vunpack.c.h.b16 %v2614
        %v2689 = vunpack.c.l.b16 %v2615
        %v2690 = vunpack.c.h.b16 %v2615
        %v2691 = vunpack.c.l.b16 %v2616
        %v2692 = vunpack.c.h.b16 %v2616
        %v2693 = vunpack.c.l.b16 %v2617
        %v2694 = vunpack.c.h.b16 %v2617
        %v2695 = vunpack.c.l.b16 %v2618
        %v2696 = vunpack.c.h.b16 %v2618
        %v2697 = vunpack.c.l.b16 %v2619
        %v2698 = vunpack.c.h.b16 %v2619
        %v2699 = vunpack.c.l.b16 %v2620
        %v2700 = vunpack.c.h.b16 %v2620
        %v2701 = vunpack.c.l.b16 %v2621
        %v2702 = vunpack.c.h.b16 %v2621
        %v2703 = vunpack.c.l.b16 %v2622
        %v2704 = vunpack.c.h.b16 %v2622
        %v2705 = vunpack.c.l.b16 %v2623
        %v2706 = vunpack.c.h.b16 %v2623
        %v2707 = vunpack.c.l.b16 %v2624
        %v2708 = vunpack.c.h.b16 %v2624
        %v2709 = vunpack.c.l.b16 %v2625
        %v2710 = vunpack.c.h.b16 %v2625
        %v2711 = vunpack.c.l.b16 %v2626
        %v2712 = vunpack.c.h.b16 %v2626
        %v2713 = vunpack.c.l.b16 %v2627
        %v2714 = vunpack.c.h.b16 %v2627
        %v2715 = vunpack.c.l.b16 %v2628
        %v2716 = vunpack.c.h.b16 %v2628
        %v2717 = vunpack.c.l.b16 %v2629
        %v2718 = vunpack.c.h.b16 %v2629
        %v2719 = vunpack.c.l.b16 %v2630
        %v2720 = vunpack.c.h.b16 %v2630
        %v2721 = vunpack.c.l.b16 %v2631
        %v2722 = vunpack.c.h.b16 %v2631
        %v2723 = vunpack.c.l.b16 %v2632
        %v2724 = vunpack.c.h.b16 %v2632
        %v2725 = vunpack.c.l.b16 %v2633
        %v2726 = vunpack.c.h.b16 %v2633
        %v2727 = vpack.c.b16 %v2669, %v2667
        %v2728 = vpack.c.b16 %v2670, %v2668
        %v2729 = vpack.c.b16 %v2673, %v2671
        %v2730 = vpack.c.b16 %v2674, %v2672
        %v2731 = vpack.c.b16 %v2677, %v2675
        %v2732 = vpack.c.b16 %v2678, %v2676
        %v2733 = vpack.c.b16 %v2681, %v2679
        %v2734 = vpack.c.b16 %v2682, %v2680
        %v2735 = vpack.c.b16 %v2685, %v2683
        %v2736 = vpack.c.b16 %v2686, %v2684
        %v2737 = vpack.c.b16 %v2689, %v2687
        %v2738 = vpack.c.b16 %v2690, %v2688
        %v2739 = vpack.c.b16 %v2693, %v2691
        %v2740 = vpack.c.b16 %v2694, %v2692
        %v2741 = vpack.c.b16 %v2697, %v2695
        %v2742 = vpack.c.b16 %v2698, %v2696
        %v2743 = vpack.c.b16 %v2701, %v2699
        %v2744 = vpack.c.b16 %v2702, %v2700
        %v2745 = vpack.c.b16 %v2705, %v2703
        %v2746 = vpack.c.b16 %v2706, %v2704
        %v2747 = vpack.c.b16 %v2709, %v2707
        %v2748 = vpack.c.b16 %v2710, %v2708
        %v2749 = vpack.c.b16 %v2713, %v2711
        %v2750 = vpack.c.b16 %v2714, %v2712
        %v2751 = vpack.c.b16 %v2717, %v2715
        %v2752 = vpack.c.b16 %v2718, %v2716
        %v2753 = vpack.c.b16 %v2721, %v2719
        %v2754 = vpack.c.b16 %v2722, %v2720
        %v2755 = vpack.c.b16 %v2725, %v2723
        %v2756 = vpack.c.b16 %v2726, %v2724
        %v2788 = vsel %vm1838, %v2635, 0
        %2790 = vmatprep.subr.bf16.mxu0 %v2728
        %2791 = vmatpush1.bf16.msra.mxu0 %v2727
        %2792 = vmatprep.subr.bf16.mxu0 %v2730
        %2793 = vmatpush1.bf16.msra.mxu0 %v2729
        %2794 = vmatprep.subr.bf16.mxu0 %v2732
        %2795 = vmatpush1.bf16.msra.mxu0 %v2731
        %2796 = vmatprep.subr.bf16.mxu0 %v2734
        %2797 = vmatpush1.bf16.msra.mxu0 %v2733
        %2798 = vmatprep.subr.bf16.mxu0 %v2736
        %2799 = vmatpush1.bf16.msra.mxu0 %v2735
        %2800 = vmatprep.subr.bf16.mxu0 %v2738
        %2801 = vmatpush1.bf16.msra.mxu0 %v2737
        %2802 = vmatprep.subr.bf16.mxu0 %v2740
        %2803 = vmatpush1.bf16.msra.mxu0 %v2739
        %2804 = vmatprep.subr.bf16.mxu0 %v2742
        %2805 = vmatpush1.bf16.msra.mxu0 %v2741
        %2806 = vmatprep.subr.bf16.mxu0 %v2744
        %2807 = vmatpush1.bf16.msra.mxu0 %v2743
        %2808 = vmatprep.subr.bf16.mxu0 %v2746
        %2809 = vmatpush1.bf16.msra.mxu0 %v2745
        %2810 = vmatprep.subr.bf16.mxu0 %v2748
        %2811 = vmatpush1.bf16.msra.mxu0 %v2747
        %2812 = vmatprep.subr.bf16.mxu0 %v2750
        %2813 = vmatpush1.bf16.msra.mxu0 %v2749
        %2814 = vmatprep.subr.bf16.mxu0 %v2752
        %2815 = vmatpush1.bf16.msra.mxu0 %v2751
        %2816 = vmatprep.subr.bf16.mxu0 %v2754
        %2817 = vmatpush1.bf16.msra.mxu0 %v2753
        %2818 = vmatprep.subr.bf16.mxu0 %v2756
        %2819 = vmatpush1.bf16.msra.mxu0 %v2755
        %2820 = vmatprep.subr.bf16.mxu0 0
        %2821 = vmatpush1.bf16.msra.mxu0 0
        %2822 = vmatprep.mubr.bf16.mxu0 %v2788
        %2823 = vmatmul.mubr.bf16.gmra.mrb[0].mxu0 %v2634
        %v2824 = vpop.f32.mrb[0].mxu0
        %v2825 = vadd.f32 0.0, %v2824
        %v2826 = vpop.f32.mrb[0].mxu0
        %v2827 = vadd.f32 0.0, %v2826
        %v2828 = vpop.f32.mrb[0].mxu0
        %v2829 = vpop.f32.mrb[0].mxu0
        %2830 = vdwg.mxu0
        %v2831 = vadd.f32 %v2601, %v2825
        %v2832 = vadd.f32 %v2602, %v2827
        %s2833 = scalar_lea.vmem %s3, 1200
        %v2834 = vld [vmem:[%s2833] sm:$0xff]
        %v2835 = vld [vmem:[%s2833 + $0x8] sm:$0xff]
        %v2836 = vld [vmem:[%s2833 + $0x10] sm:$0xff]
        %v2837 = vld [vmem:[%s2833 + $0x18] sm:$0xff]
        %v2838 = vld [vmem:[%s2833 + $0x20] sm:$0xff]
        %v2839 = vld [vmem:[%s2833 + $0x28] sm:$0xff]
        %v2840 = vld [vmem:[%s2833 + $0x30] sm:$0xff]
        %v2841 = vld [vmem:[%s2833 + $0x38] sm:$0xff]
        %v2842 = vld [vmem:[%s2833 + $0x40] sm:$0xff]
        %v2843 = vld [vmem:[%s2833 + $0x48] sm:$0xff]
        %v2844 = vld [vmem:[%s2833 + $0x50] sm:$0xff]
        %v2845 = vld [vmem:[%s2833 + $0x58] sm:$0xff]
        %v2846 = vld [vmem:[%s2833 + $0x60] sm:$0xff]
        %v2847 = vld [vmem:[%s2833 + $0x68] sm:$0xff]
        %v2848 = vld [vmem:[%s2833 + $0x70] sm:$0xff]
        %v2849 = vld [vmem:[%s2833 + $0x78] sm:$0xff]
        %v2850 = vld [vmem:[%s2833 + $0x80] sm:$0xff]
        %v2851 = vld [vmem:[%s2833 + $0x88] sm:$0xff]
        %v2852 = vld [vmem:[%s2833 + $0x90] sm:$0xff]
        %v2853 = vld [vmem:[%s2833 + $0x98] sm:$0xff]
        %v2854 = vld [vmem:[%s2833 + $0xa0] sm:$0xff]
        %v2855 = vld [vmem:[%s2833 + $0xa8] sm:$0xff]
        %v2856 = vld [vmem:[%s2833 + $0xb0] sm:$0xff]
        %v2857 = vld [vmem:[%s2833 + $0xb8] sm:$0xff]
        %v2858 = vld [vmem:[%s2833 + $0xc0] sm:$0xff]
        %v2859 = vld [vmem:[%s2833 + $0xc8] sm:$0xff]
        %v2860 = vld [vmem:[%s2833 + $0xd0] sm:$0xff]
        %v2861 = vld [vmem:[%s2833 + $0xd8] sm:$0xff]
        %v2862 = vld [vmem:[%s2833 + $0xe0] sm:$0xff]
        %v2863 = vld [vmem:[%s2833 + $0xe8] sm:$0xff]
        %v2894 = vunpack.c.l.b16 %v2834
        %v2895 = vunpack.c.h.b16 %v2834
        %v2896 = vunpack.c.l.b16 %v2835
        %v2897 = vunpack.c.h.b16 %v2835
        %v2898 = vunpack.c.l.b16 %v2836
        %v2899 = vunpack.c.h.b16 %v2836
        %v2900 = vunpack.c.l.b16 %v2837
        %v2901 = vunpack.c.h.b16 %v2837
        %v2902 = vunpack.c.l.b16 %v2838
        %v2903 = vunpack.c.h.b16 %v2838
        %v2904 = vunpack.c.l.b16 %v2839
        %v2905 = vunpack.c.h.b16 %v2839
        %v2906 = vunpack.c.l.b16 %v2840
        %v2907 = vunpack.c.h.b16 %v2840
        %v2908 = vunpack.c.l.b16 %v2841
        %v2909 = vunpack.c.h.b16 %v2841
        %v2910 = vunpack.c.l.b16 %v2842
        %v2911 = vunpack.c.h.b16 %v2842
        %v2912 = vunpack.c.l.b16 %v2843
        %v2913 = vunpack.c.h.b16 %v2843
        %v2914 = vunpack.c.l.b16 %v2844
        %v2915 = vunpack.c.h.b16 %v2844
        %v2916 = vunpack.c.l.b16 %v2845
        %v2917 = vunpack.c.h.b16 %v2845
        %v2918 = vunpack.c.l.b16 %v2846
        %v2919 = vunpack.c.h.b16 %v2846
        %v2920 = vunpack.c.l.b16 %v2847
        %v2921 = vunpack.c.h.b16 %v2847
        %v2922 = vunpack.c.l.b16 %v2848
        %v2923 = vunpack.c.h.b16 %v2848
        %v2924 = vunpack.c.l.b16 %v2849
        %v2925 = vunpack.c.h.b16 %v2849
        %v2926 = vunpack.c.l.b16 %v2850
        %v2927 = vunpack.c.h.b16 %v2850
        %v2928 = vunpack.c.l.b16 %v2851
        %v2929 = vunpack.c.h.b16 %v2851
        %v2930 = vunpack.c.l.b16 %v2852
        %v2931 = vunpack.c.h.b16 %v2852
        %v2932 = vunpack.c.l.b16 %v2853
        %v2933 = vunpack.c.h.b16 %v2853
        %v2934 = vunpack.c.l.b16 %v2854
        %v2935 = vunpack.c.h.b16 %v2854
        %v2936 = vunpack.c.l.b16 %v2855
        %v2937 = vunpack.c.h.b16 %v2855
        %v2938 = vunpack.c.l.b16 %v2856
        %v2939 = vunpack.c.h.b16 %v2856
        %v2940 = vunpack.c.l.b16 %v2857
        %v2941 = vunpack.c.h.b16 %v2857
        %v2942 = vunpack.c.l.b16 %v2858
        %v2943 = vunpack.c.h.b16 %v2858
        %v2944 = vunpack.c.l.b16 %v2859
        %v2945 = vunpack.c.h.b16 %v2859
        %v2946 = vunpack.c.l.b16 %v2860
        %v2947 = vunpack.c.h.b16 %v2860
        %v2948 = vunpack.c.l.b16 %v2861
        %v2949 = vunpack.c.h.b16 %v2861
        %v2950 = vunpack.c.l.b16 %v2862
        %v2951 = vunpack.c.h.b16 %v2862
        %v2952 = vunpack.c.l.b16 %v2863
        %v2953 = vunpack.c.h.b16 %v2863
        %v2954 = vpack.c.b16 %v2896, %v2894
        %v2955 = vpack.c.b16 %v2897, %v2895
        %v2956 = vpack.c.b16 %v2900, %v2898
        %v2957 = vpack.c.b16 %v2901, %v2899
        %v2958 = vpack.c.b16 %v2904, %v2902
        %v2959 = vpack.c.b16 %v2905, %v2903
        %v2960 = vpack.c.b16 %v2908, %v2906
        %v2961 = vpack.c.b16 %v2909, %v2907
        %v2962 = vpack.c.b16 %v2912, %v2910
        %v2963 = vpack.c.b16 %v2913, %v2911
        %v2964 = vpack.c.b16 %v2916, %v2914
        %v2965 = vpack.c.b16 %v2917, %v2915
        %v2966 = vpack.c.b16 %v2920, %v2918
        %v2967 = vpack.c.b16 %v2921, %v2919
        %v2968 = vpack.c.b16 %v2924, %v2922
        %v2969 = vpack.c.b16 %v2925, %v2923
        %v2970 = vpack.c.b16 %v2928, %v2926
        %v2971 = vpack.c.b16 %v2929, %v2927
        %v2972 = vpack.c.b16 %v2932, %v2930
        %v2973 = vpack.c.b16 %v2933, %v2931
        %v2974 = vpack.c.b16 %v2936, %v2934
        %v2975 = vpack.c.b16 %v2937, %v2935
        %v2976 = vpack.c.b16 %v2940, %v2938
        %v2977 = vpack.c.b16 %v2941, %v2939
        %v2978 = vpack.c.b16 %v2944, %v2942
        %v2979 = vpack.c.b16 %v2945, %v2943
        %v2980 = vpack.c.b16 %v2948, %v2946
        %v2981 = vpack.c.b16 %v2949, %v2947
        %v2982 = vpack.c.b16 %v2952, %v2950
        %v2983 = vpack.c.b16 %v2953, %v2951
        %3014 = vmatprep.subr.bf16.mxu0 %v2955
        %3015 = vmatpush1.bf16.msra.mxu0 %v2954
        %3016 = vmatprep.subr.bf16.mxu0 %v2957
        %3017 = vmatpush1.bf16.msra.mxu0 %v2956
        %3018 = vmatprep.subr.bf16.mxu0 %v2959
        %3019 = vmatpush1.bf16.msra.mxu0 %v2958
        %3020 = vmatprep.subr.bf16.mxu0 %v2961
        %3021 = vmatpush1.bf16.msra.mxu0 %v2960
        %3022 = vmatprep.subr.bf16.mxu0 %v2963
        %3023 = vmatpush1.bf16.msra.mxu0 %v2962
        %3024 = vmatprep.subr.bf16.mxu0 %v2965
        %3025 = vmatpush1.bf16.msra.mxu0 %v2964
        %3026 = vmatprep.subr.bf16.mxu0 %v2967
        %3027 = vmatpush1.bf16.msra.mxu0 %v2966
        %3028 = vmatprep.subr.bf16.mxu0 %v2969
        %3029 = vmatpush1.bf16.msra.mxu0 %v2968
        %3030 = vmatprep.subr.bf16.mxu0 %v2971
        %3031 = vmatpush1.bf16.msra.mxu0 %v2970
        %3032 = vmatprep.subr.bf16.mxu0 %v2973
        %3033 = vmatpush1.bf16.msra.mxu0 %v2972
        %3034 = vmatprep.subr.bf16.mxu0 %v2975
        %3035 = vmatpush1.bf16.msra.mxu0 %v2974
        %3036 = vmatprep.subr.bf16.mxu0 %v2977
        %3037 = vmatpush1.bf16.msra.mxu0 %v2976
        %3038 = vmatprep.subr.bf16.mxu0 %v2979
        %3039 = vmatpush1.bf16.msra.mxu0 %v2978
        %3040 = vmatprep.subr.bf16.mxu0 %v2981
        %3041 = vmatpush1.bf16.msra.mxu0 %v2980
        %3042 = vmatprep.subr.bf16.mxu0 %v2983
        %3043 = vmatpush1.bf16.msra.mxu0 %v2982
        %3044 = vmatprep.subr.bf16.mxu0 0
        %3045 = vmatpush1.bf16.msra.mxu0 0
        %3046 = vmatprep.mubr.bf16.mxu0 %v1840
        %3047 = vmatmul.mubr.bf16.gmra.mrb[0].mxu0 %v1655
        %v3048 = vpop.f32.mrb[0].mxu0
        %v3049 = vadd.f32 0.0, %v3048
        %v3050 = vpop.f32.mrb[0].mxu0
        %v3051 = vadd.f32 0.0, %v3050
        %v3052 = vpop.f32.mrb[0].mxu0
        %v3053 = vpop.f32.mrb[0].mxu0
        %3054 = vdwg.mxu0
        %v3055 = vadd.f32 %v1887, %v3049
        %v3056 = vadd.f32 %v1891, %v3051
        %s3057 = scalar_lea.vmem %s3, 1440
        %v3058 = vld [vmem:[%s3057] sm:$0xff]
        %v3059 = vld [vmem:[%s3057 + $0x8] sm:$0xff]
        %v3060 = vld [vmem:[%s3057 + $0x10] sm:$0xff]
        %v3061 = vld [vmem:[%s3057 + $0x18] sm:$0xff]
        %v3062 = vld [vmem:[%s3057 + $0x20] sm:$0xff]
        %v3063 = vld [vmem:[%s3057 + $0x28] sm:$0xff]
        %v3064 = vld [vmem:[%s3057 + $0x30] sm:$0xff]
        %v3065 = vld [vmem:[%s3057 + $0x38] sm:$0xff]
        %v3066 = vld [vmem:[%s3057 + $0x40] sm:$0xff]
        %v3067 = vld [vmem:[%s3057 + $0x48] sm:$0xff]
        %v3068 = vld [vmem:[%s3057 + $0x50] sm:$0xff]
        %v3069 = vld [vmem:[%s3057 + $0x58] sm:$0xff]
        %v3070 = vld [vmem:[%s3057 + $0x60] sm:$0xff]
        %v3071 = vld [vmem:[%s3057 + $0x68] sm:$0xff]
        %v3072 = vld [vmem:[%s3057 + $0x70] sm:$0xff]
        %v3073 = vld [vmem:[%s3057 + $0x78] sm:$0xff]
        %v3074 = vld [vmem:[%s3057 + $0x80] sm:$0xff]
        %v3075 = vld [vmem:[%s3057 + $0x88] sm:$0xff]
        %v3076 = vld [vmem:[%s3057 + $0x90] sm:$0xff]
        %v3077 = vld [vmem:[%s3057 + $0x98] sm:$0xff]
        %v3078 = vld [vmem:[%s3057 + $0xa0] sm:$0xff]
        %v3079 = vld [vmem:[%s3057 + $0xa8] sm:$0xff]
        %v3080 = vld [vmem:[%s3057 + $0xb0] sm:$0xff]
        %v3081 = vld [vmem:[%s3057 + $0xb8] sm:$0xff]
        %v3082 = vld [vmem:[%s3057 + $0xc0] sm:$0xff]
        %v3083 = vld [vmem:[%s3057 + $0xc8] sm:$0xff]
        %v3084 = vld [vmem:[%s3057 + $0xd0] sm:$0xff]
        %v3085 = vld [vmem:[%s3057 + $0xd8] sm:$0xff]
        %v3086 = vld [vmem:[%s3057 + $0xe0] sm:$0xff]
        %v3087 = vld [vmem:[%s3057 + $0xe8] sm:$0xff]
        %v3118 = vunpack.c.l.b16 %v3058
        %v3119 = vunpack.c.h.b16 %v3058
        %v3120 = vunpack.c.l.b16 %v3059
        %v3121 = vunpack.c.h.b16 %v3059
        %v3122 = vunpack.c.l.b16 %v3060
        %v3123 = vunpack.c.h.b16 %v3060
        %v3124 = vunpack.c.l.b16 %v3061
        %v3125 = vunpack.c.h.b16 %v3061
        %v3126 = vunpack.c.l.b16 %v3062
        %v3127 = vunpack.c.h.b16 %v3062
        %v3128 = vunpack.c.l.b16 %v3063
        %v3129 = vunpack.c.h.b16 %v3063
        %v3130 = vunpack.c.l.b16 %v3064
        %v3131 = vunpack.c.h.b16 %v3064
        %v3132 = vunpack.c.l.b16 %v3065
        %v3133 = vunpack.c.h.b16 %v3065
        %v3134 = vunpack.c.l.b16 %v3066
        %v3135 = vunpack.c.h.b16 %v3066
        %v3136 = vunpack.c.l.b16 %v3067
        %v3137 = vunpack.c.h.b16 %v3067
        %v3138 = vunpack.c.l.b16 %v3068
        %v3139 = vunpack.c.h.b16 %v3068
        %v3140 = vunpack.c.l.b16 %v3069
        %v3141 = vunpack.c.h.b16 %v3069
        %v3142 = vunpack.c.l.b16 %v3070
        %v3143 = vunpack.c.h.b16 %v3070
        %v3144 = vunpack.c.l.b16 %v3071
        %v3145 = vunpack.c.h.b16 %v3071
        %v3146 = vunpack.c.l.b16 %v3072
        %v3147 = vunpack.c.h.b16 %v3072
        %v3148 = vunpack.c.l.b16 %v3073
        %v3149 = vunpack.c.h.b16 %v3073
        %v3150 = vunpack.c.l.b16 %v3074
        %v3151 = vunpack.c.h.b16 %v3074
        %v3152 = vunpack.c.l.b16 %v3075
        %v3153 = vunpack.c.h.b16 %v3075
        %v3154 = vunpack.c.l.b16 %v3076
        %v3155 = vunpack.c.h.b16 %v3076
        %v3156 = vunpack.c.l.b16 %v3077
        %v3157 = vunpack.c.h.b16 %v3077
        %v3158 = vunpack.c.l.b16 %v3078
        %v3159 = vunpack.c.h.b16 %v3078
        %v3160 = vunpack.c.l.b16 %v3079
        %v3161 = vunpack.c.h.b16 %v3079
        %v3162 = vunpack.c.l.b16 %v3080
        %v3163 = vunpack.c.h.b16 %v3080
        %v3164 = vunpack.c.l.b16 %v3081
        %v3165 = vunpack.c.h.b16 %v3081
        %v3166 = vunpack.c.l.b16 %v3082
        %v3167 = vunpack.c.h.b16 %v3082
        %v3168 = vunpack.c.l.b16 %v3083
        %v3169 = vunpack.c.h.b16 %v3083
        %v3170 = vunpack.c.l.b16 %v3084
        %v3171 = vunpack.c.h.b16 %v3084
        %v3172 = vunpack.c.l.b16 %v3085
        %v3173 = vunpack.c.h.b16 %v3085
        %v3174 = vunpack.c.l.b16 %v3086
        %v3175 = vunpack.c.h.b16 %v3086
        %v3176 = vunpack.c.l.b16 %v3087
        %v3177 = vunpack.c.h.b16 %v3087
        %v3178 = vpack.c.b16 %v3120, %v3118
        %v3179 = vpack.c.b16 %v3121, %v3119
        %v3180 = vpack.c.b16 %v3124, %v3122
        %v3181 = vpack.c.b16 %v3125, %v3123
        %v3182 = vpack.c.b16 %v3128, %v3126
        %v3183 = vpack.c.b16 %v3129, %v3127
        %v3184 = vpack.c.b16 %v3132, %v3130
        %v3185 = vpack.c.b16 %v3133, %v3131
        %v3186 = vpack.c.b16 %v3136, %v3134
        %v3187 = vpack.c.b16 %v3137, %v3135
        %v3188 = vpack.c.b16 %v3140, %v3138
        %v3189 = vpack.c.b16 %v3141, %v3139
        %v3190 = vpack.c.b16 %v3144, %v3142
        %v3191 = vpack.c.b16 %v3145, %v3143
        %v3192 = vpack.c.b16 %v3148, %v3146
        %v3193 = vpack.c.b16 %v3149, %v3147
        %v3194 = vpack.c.b16 %v3152, %v3150
        %v3195 = vpack.c.b16 %v3153, %v3151
        %v3196 = vpack.c.b16 %v3156, %v3154
        %v3197 = vpack.c.b16 %v3157, %v3155
        %v3198 = vpack.c.b16 %v3160, %v3158
        %v3199 = vpack.c.b16 %v3161, %v3159
        %v3200 = vpack.c.b16 %v3164, %v3162
        %v3201 = vpack.c.b16 %v3165, %v3163
        %v3202 = vpack.c.b16 %v3168, %v3166
        %v3203 = vpack.c.b16 %v3169, %v3167
        %v3204 = vpack.c.b16 %v3172, %v3170
        %v3205 = vpack.c.b16 %v3173, %v3171
        %v3206 = vpack.c.b16 %v3176, %v3174
        %v3207 = vpack.c.b16 %v3177, %v3175
        %3238 = vmatprep.subr.bf16.mxu0 %v3179
        %3239 = vmatpush1.bf16.msra.mxu0 %v3178
        %3240 = vmatprep.subr.bf16.mxu0 %v3181
        %3241 = vmatpush1.bf16.msra.mxu0 %v3180
        %3242 = vmatprep.subr.bf16.mxu0 %v3183
        %3243 = vmatpush1.bf16.msra.mxu0 %v3182
        %3244 = vmatprep.subr.bf16.mxu0 %v3185
        %3245 = vmatpush1.bf16.msra.mxu0 %v3184
        %3246 = vmatprep.subr.bf16.mxu0 %v3187
        %3247 = vmatpush1.bf16.msra.mxu0 %v3186
        %3248 = vmatprep.subr.bf16.mxu0 %v3189
        %3249 = vmatpush1.bf16.msra.mxu0 %v3188
        %3250 = vmatprep.subr.bf16.mxu0 %v3191
        %3251 = vmatpush1.bf16.msra.mxu0 %v3190
        %3252 = vmatprep.subr.bf16.mxu0 %v3193
        %3253 = vmatpush1.bf16.msra.mxu0 %v3192
        %3254 = vmatprep.subr.bf16.mxu0 %v3195
        %3255 = vmatpush1.bf16.msra.mxu0 %v3194
        %3256 = vmatprep.subr.bf16.mxu0 %v3197
        %3257 = vmatpush1.bf16.msra.mxu0 %v3196
        %3258 = vmatprep.subr.bf16.mxu0 %v3199
        %3259 = vmatpush1.bf16.msra.mxu0 %v3198
        %3260 = vmatprep.subr.bf16.mxu0 %v3201
        %3261 = vmatpush1.bf16.msra.mxu0 %v3200
        %3262 = vmatprep.subr.bf16.mxu0 %v3203
        %3263 = vmatpush1.bf16.msra.mxu0 %v3202
        %3264 = vmatprep.subr.bf16.mxu0 %v3205
        %3265 = vmatpush1.bf16.msra.mxu0 %v3204
        %3266 = vmatprep.subr.bf16.mxu0 %v3207
        %3267 = vmatpush1.bf16.msra.mxu0 %v3206
        %3268 = vmatprep.subr.bf16.mxu0 0
        %3269 = vmatpush1.bf16.msra.mxu0 0
        %3270 = vmatprep.mubr.bf16.mxu0 %v2092
        %3271 = vmatmul.mubr.bf16.gmra.mrb[0].mxu0 %v1933
        %v3272 = vpop.f32.mrb[0].mxu0
        %v3273 = vadd.f32 0.0, %v3272
        %v3274 = vpop.f32.mrb[0].mxu0
        %v3275 = vadd.f32 0.0, %v3274
        %v3276 = vpop.f32.mrb[0].mxu0
        %v3277 = vpop.f32.mrb[0].mxu0
        %3278 = vdwg.mxu0
        %v3279 = vadd.f32 %v3055, %v3273
        %v3280 = vadd.f32 %v3056, %v3275
        %s3281 = scalar_lea.vmem %s3, 1680
        %v3282 = vld [vmem:[%s3281] sm:$0xff]
        %v3283 = vld [vmem:[%s3281 + $0x8] sm:$0xff]
        %v3284 = vld [vmem:[%s3281 + $0x10] sm:$0xff]
        %v3285 = vld [vmem:[%s3281 + $0x18] sm:$0xff]
        %v3286 = vld [vmem:[%s3281 + $0x20] sm:$0xff]
        %v3287 = vld [vmem:[%s3281 + $0x28] sm:$0xff]
        %v3288 = vld [vmem:[%s3281 + $0x30] sm:$0xff]
        %v3289 = vld [vmem:[%s3281 + $0x38] sm:$0xff]
        %v3290 = vld [vmem:[%s3281 + $0x40] sm:$0xff]
        %v3291 = vld [vmem:[%s3281 + $0x48] sm:$0xff]
        %v3292 = vld [vmem:[%s3281 + $0x50] sm:$0xff]
        %v3293 = vld [vmem:[%s3281 + $0x58] sm:$0xff]
        %v3294 = vld [vmem:[%s3281 + $0x60] sm:$0xff]
        %v3295 = vld [vmem:[%s3281 + $0x68] sm:$0xff]
        %v3296 = vld [vmem:[%s3281 + $0x70] sm:$0xff]
        %v3297 = vld [vmem:[%s3281 + $0x78] sm:$0xff]
        %v3298 = vld [vmem:[%s3281 + $0x80] sm:$0xff]
        %v3299 = vld [vmem:[%s3281 + $0x88] sm:$0xff]
        %v3300 = vld [vmem:[%s3281 + $0x90] sm:$0xff]
        %v3301 = vld [vmem:[%s3281 + $0x98] sm:$0xff]
        %v3302 = vld [vmem:[%s3281 + $0xa0] sm:$0xff]
        %v3303 = vld [vmem:[%s3281 + $0xa8] sm:$0xff]
        %v3304 = vld [vmem:[%s3281 + $0xb0] sm:$0xff]
        %v3305 = vld [vmem:[%s3281 + $0xb8] sm:$0xff]
        %v3306 = vld [vmem:[%s3281 + $0xc0] sm:$0xff]
        %v3307 = vld [vmem:[%s3281 + $0xc8] sm:$0xff]
        %v3308 = vld [vmem:[%s3281 + $0xd0] sm:$0xff]
        %v3309 = vld [vmem:[%s3281 + $0xd8] sm:$0xff]
        %v3310 = vld [vmem:[%s3281 + $0xe0] sm:$0xff]
        %v3311 = vld [vmem:[%s3281 + $0xe8] sm:$0xff]
        %v3342 = vunpack.c.l.b16 %v3282
        %v3343 = vunpack.c.h.b16 %v3282
        %v3344 = vunpack.c.l.b16 %v3283
        %v3345 = vunpack.c.h.b16 %v3283
        %v3346 = vunpack.c.l.b16 %v3284
        %v3347 = vunpack.c.h.b16 %v3284
        %v3348 = vunpack.c.l.b16 %v3285
        %v3349 = vunpack.c.h.b16 %v3285
        %v3350 = vunpack.c.l.b16 %v3286
        %v3351 = vunpack.c.h.b16 %v3286
        %v3352 = vunpack.c.l.b16 %v3287
        %v3353 = vunpack.c.h.b16 %v3287
        %v3354 = vunpack.c.l.b16 %v3288
        %v3355 = vunpack.c.h.b16 %v3288
        %v3356 = vunpack.c.l.b16 %v3289
        %v3357 = vunpack.c.h.b16 %v3289
        %v3358 = vunpack.c.l.b16 %v3290
        %v3359 = vunpack.c.h.b16 %v3290
        %v3360 = vunpack.c.l.b16 %v3291
        %v3361 = vunpack.c.h.b16 %v3291
        %v3362 = vunpack.c.l.b16 %v3292
        %v3363 = vunpack.c.h.b16 %v3292
        %v3364 = vunpack.c.l.b16 %v3293
        %v3365 = vunpack.c.h.b16 %v3293
        %v3366 = vunpack.c.l.b16 %v3294
        %v3367 = vunpack.c.h.b16 %v3294
        %v3368 = vunpack.c.l.b16 %v3295
        %v3369 = vunpack.c.h.b16 %v3295
        %v3370 = vunpack.c.l.b16 %v3296
        %v3371 = vunpack.c.h.b16 %v3296
        %v3372 = vunpack.c.l.b16 %v3297
        %v3373 = vunpack.c.h.b16 %v3297
        %v3374 = vunpack.c.l.b16 %v3298
        %v3375 = vunpack.c.h.b16 %v3298
        %v3376 = vunpack.c.l.b16 %v3299
        %v3377 = vunpack.c.h.b16 %v3299
        %v3378 = vunpack.c.l.b16 %v3300
        %v3379 = vunpack.c.h.b16 %v3300
        %v3380 = vunpack.c.l.b16 %v3301
        %v3381 = vunpack.c.h.b16 %v3301
        %v3382 = vunpack.c.l.b16 %v3302
        %v3383 = vunpack.c.h.b16 %v3302
        %v3384 = vunpack.c.l.b16 %v3303
        %v3385 = vunpack.c.h.b16 %v3303
        %v3386 = vunpack.c.l.b16 %v3304
        %v3387 = vunpack.c.h.b16 %v3304
        %v3388 = vunpack.c.l.b16 %v3305
        %v3389 = vunpack.c.h.b16 %v3305
        %v3390 = vunpack.c.l.b16 %v3306
        %v3391 = vunpack.c.h.b16 %v3306
        %v3392 = vunpack.c.l.b16 %v3307
        %v3393 = vunpack.c.h.b16 %v3307
        %v3394 = vunpack.c.l.b16 %v3308
        %v3395 = vunpack.c.h.b16 %v3308
        %v3396 = vunpack.c.l.b16 %v3309
        %v3397 = vunpack.c.h.b16 %v3309
        %v3398 = vunpack.c.l.b16 %v3310
        %v3399 = vunpack.c.h.b16 %v3310
        %v3400 = vunpack.c.l.b16 %v3311
        %v3401 = vunpack.c.h.b16 %v3311
        %v3402 = vpack.c.b16 %v3344, %v3342
        %v3403 = vpack.c.b16 %v3345, %v3343
        %v3404 = vpack.c.b16 %v3348, %v3346
        %v3405 = vpack.c.b16 %v3349, %v3347
        %v3406 = vpack.c.b16 %v3352, %v3350
        %v3407 = vpack.c.b16 %v3353, %v3351
        %v3408 = vpack.c.b16 %v3356, %v3354
        %v3409 = vpack.c.b16 %v3357, %v3355
        %v3410 = vpack.c.b16 %v3360, %v3358
        %v3411 = vpack.c.b16 %v3361, %v3359
        %v3412 = vpack.c.b16 %v3364, %v3362
        %v3413 = vpack.c.b16 %v3365, %v3363
        %v3414 = vpack.c.b16 %v3368, %v3366
        %v3415 = vpack.c.b16 %v3369, %v3367
        %v3416 = vpack.c.b16 %v3372, %v3370
        %v3417 = vpack.c.b16 %v3373, %v3371
        %v3418 = vpack.c.b16 %v3376, %v3374
        %v3419 = vpack.c.b16 %v3377, %v3375
        %v3420 = vpack.c.b16 %v3380, %v3378
        %v3421 = vpack.c.b16 %v3381, %v3379
        %v3422 = vpack.c.b16 %v3384, %v3382
        %v3423 = vpack.c.b16 %v3385, %v3383
        %v3424 = vpack.c.b16 %v3388, %v3386
        %v3425 = vpack.c.b16 %v3389, %v3387
        %v3426 = vpack.c.b16 %v3392, %v3390
        %v3427 = vpack.c.b16 %v3393, %v3391
        %v3428 = vpack.c.b16 %v3396, %v3394
        %v3429 = vpack.c.b16 %v3397, %v3395
        %v3430 = vpack.c.b16 %v3400, %v3398
        %v3431 = vpack.c.b16 %v3401, %v3399
        %3462 = vmatprep.subr.bf16.mxu0 %v3403
        %3463 = vmatpush1.bf16.msra.mxu0 %v3402
        %3464 = vmatprep.subr.bf16.mxu0 %v3405
        %3465 = vmatpush1.bf16.msra.mxu0 %v3404
        %3466 = vmatprep.subr.bf16.mxu0 %v3407
        %3467 = vmatpush1.bf16.msra.mxu0 %v3406
        %3468 = vmatprep.subr.bf16.mxu0 %v3409
        %3469 = vmatpush1.bf16.msra.mxu0 %v3408
        %3470 = vmatprep.subr.bf16.mxu0 %v3411
        %3471 = vmatpush1.bf16.msra.mxu0 %v3410
        %3472 = vmatprep.subr.bf16.mxu0 %v3413
        %3473 = vmatpush1.bf16.msra.mxu0 %v3412
        %3474 = vmatprep.subr.bf16.mxu0 %v3415
        %3475 = vmatpush1.bf16.msra.mxu0 %v3414
        %3476 = vmatprep.subr.bf16.mxu0 %v3417
        %3477 = vmatpush1.bf16.msra.mxu0 %v3416
        %3478 = vmatprep.subr.bf16.mxu0 %v3419
        %3479 = vmatpush1.bf16.msra.mxu0 %v3418
        %3480 = vmatprep.subr.bf16.mxu0 %v3421
        %3481 = vmatpush1.bf16.msra.mxu0 %v3420
        %3482 = vmatprep.subr.bf16.mxu0 %v3423
        %3483 = vmatpush1.bf16.msra.mxu0 %v3422
        %3484 = vmatprep.subr.bf16.mxu0 %v3425
        %3485 = vmatpush1.bf16.msra.mxu0 %v3424
        %3486 = vmatprep.subr.bf16.mxu0 %v3427
        %3487 = vmatpush1.bf16.msra.mxu0 %v3426
        %3488 = vmatprep.subr.bf16.mxu0 %v3429
        %3489 = vmatpush1.bf16.msra.mxu0 %v3428
        %3490 = vmatprep.subr.bf16.mxu0 %v3431
        %3491 = vmatpush1.bf16.msra.mxu0 %v3430
        %3492 = vmatprep.subr.bf16.mxu0 0
        %3493 = vmatpush1.bf16.msra.mxu0 0
        %3494 = vmatprep.mubr.bf16.mxu0 %v2324
        %3495 = vmatmul.mubr.bf16.gmra.mrb[0].mxu0 %v2170
        %v3496 = vpop.f32.mrb[0].mxu0
        %v3497 = vadd.f32 0.0, %v3496
        %v3498 = vpop.f32.mrb[0].mxu0
        %v3499 = vadd.f32 0.0, %v3498
        %v3500 = vpop.f32.mrb[0].mxu0
        %v3501 = vpop.f32.mrb[0].mxu0
        %3502 = vdwg.mxu0
        %v3503 = vadd.f32 %v3279, %v3497
        %v3504 = vadd.f32 %v3280, %v3499
        %s3505 = scalar_lea.vmem %s3, 1920
        %v3506 = vld [vmem:[%s3505] sm:$0xff]
        %v3507 = vld [vmem:[%s3505 + $0x8] sm:$0xff]
        %v3508 = vld [vmem:[%s3505 + $0x10] sm:$0xff]
        %v3509 = vld [vmem:[%s3505 + $0x18] sm:$0xff]
        %v3510 = vld [vmem:[%s3505 + $0x20] sm:$0xff]
        %v3511 = vld [vmem:[%s3505 + $0x28] sm:$0xff]
        %v3512 = vld [vmem:[%s3505 + $0x30] sm:$0xff]
        %v3513 = vld [vmem:[%s3505 + $0x38] sm:$0xff]
        %v3514 = vld [vmem:[%s3505 + $0x40] sm:$0xff]
        %v3515 = vld [vmem:[%s3505 + $0x48] sm:$0xff]
        %v3516 = vld [vmem:[%s3505 + $0x50] sm:$0xff]
        %v3517 = vld [vmem:[%s3505 + $0x58] sm:$0xff]
        %v3518 = vld [vmem:[%s3505 + $0x60] sm:$0xff]
        %v3519 = vld [vmem:[%s3505 + $0x68] sm:$0xff]
        %v3520 = vld [vmem:[%s3505 + $0x70] sm:$0xff]
        %v3521 = vld [vmem:[%s3505 + $0x78] sm:$0xff]
        %v3522 = vld [vmem:[%s3505 + $0x80] sm:$0xff]
        %v3523 = vld [vmem:[%s3505 + $0x88] sm:$0xff]
        %v3524 = vld [vmem:[%s3505 + $0x90] sm:$0xff]
        %v3525 = vld [vmem:[%s3505 + $0x98] sm:$0xff]
        %v3526 = vld [vmem:[%s3505 + $0xa0] sm:$0xff]
        %v3527 = vld [vmem:[%s3505 + $0xa8] sm:$0xff]
        %v3528 = vld [vmem:[%s3505 + $0xb0] sm:$0xff]
        %v3529 = vld [vmem:[%s3505 + $0xb8] sm:$0xff]
        %v3530 = vld [vmem:[%s3505 + $0xc0] sm:$0xff]
        %v3531 = vld [vmem:[%s3505 + $0xc8] sm:$0xff]
        %v3532 = vld [vmem:[%s3505 + $0xd0] sm:$0xff]
        %v3533 = vld [vmem:[%s3505 + $0xd8] sm:$0xff]
        %v3534 = vld [vmem:[%s3505 + $0xe0] sm:$0xff]
        %v3535 = vld [vmem:[%s3505 + $0xe8] sm:$0xff]
        %v3566 = vunpack.c.l.b16 %v3506
        %v3567 = vunpack.c.h.b16 %v3506
        %v3568 = vunpack.c.l.b16 %v3507
        %v3569 = vunpack.c.h.b16 %v3507
        %v3570 = vunpack.c.l.b16 %v3508
        %v3571 = vunpack.c.h.b16 %v3508
        %v3572 = vunpack.c.l.b16 %v3509
        %v3573 = vunpack.c.h.b16 %v3509
        %v3574 = vunpack.c.l.b16 %v3510
        %v3575 = vunpack.c.h.b16 %v3510
        %v3576 = vunpack.c.l.b16 %v3511
        %v3577 = vunpack.c.h.b16 %v3511
        %v3578 = vunpack.c.l.b16 %v3512
        %v3579 = vunpack.c.h.b16 %v3512
        %v3580 = vunpack.c.l.b16 %v3513
        %v3581 = vunpack.c.h.b16 %v3513
        %v3582 = vunpack.c.l.b16 %v3514
        %v3583 = vunpack.c.h.b16 %v3514
        %v3584 = vunpack.c.l.b16 %v3515
        %v3585 = vunpack.c.h.b16 %v3515
        %v3586 = vunpack.c.l.b16 %v3516
        %v3587 = vunpack.c.h.b16 %v3516
        %v3588 = vunpack.c.l.b16 %v3517
        %v3589 = vunpack.c.h.b16 %v3517
        %v3590 = vunpack.c.l.b16 %v3518
        %v3591 = vunpack.c.h.b16 %v3518
        %v3592 = vunpack.c.l.b16 %v3519
        %v3593 = vunpack.c.h.b16 %v3519
        %v3594 = vunpack.c.l.b16 %v3520
        %v3595 = vunpack.c.h.b16 %v3520
        %v3596 = vunpack.c.l.b16 %v3521
        %v3597 = vunpack.c.h.b16 %v3521
        %v3598 = vunpack.c.l.b16 %v3522
        %v3599 = vunpack.c.h.b16 %v3522
        %v3600 = vunpack.c.l.b16 %v3523
        %v3601 = vunpack.c.h.b16 %v3523
        %v3602 = vunpack.c.l.b16 %v3524
        %v3603 = vunpack.c.h.b16 %v3524
        %v3604 = vunpack.c.l.b16 %v3525
        %v3605 = vunpack.c.h.b16 %v3525
        %v3606 = vunpack.c.l.b16 %v3526
        %v3607 = vunpack.c.h.b16 %v3526
        %v3608 = vunpack.c.l.b16 %v3527
        %v3609 = vunpack.c.h.b16 %v3527
        %v3610 = vunpack.c.l.b16 %v3528
        %v3611 = vunpack.c.h.b16 %v3528
        %v3612 = vunpack.c.l.b16 %v3529
        %v3613 = vunpack.c.h.b16 %v3529
        %v3614 = vunpack.c.l.b16 %v3530
        %v3615 = vunpack.c.h.b16 %v3530
        %v3616 = vunpack.c.l.b16 %v3531
        %v3617 = vunpack.c.h.b16 %v3531
        %v3618 = vunpack.c.l.b16 %v3532
        %v3619 = vunpack.c.h.b16 %v3532
        %v3620 = vunpack.c.l.b16 %v3533
        %v3621 = vunpack.c.h.b16 %v3533
        %v3622 = vunpack.c.l.b16 %v3534
        %v3623 = vunpack.c.h.b16 %v3534
        %v3624 = vunpack.c.l.b16 %v3535
        %v3625 = vunpack.c.h.b16 %v3535
        %v3626 = vpack.c.b16 %v3568, %v3566
        %v3627 = vpack.c.b16 %v3569, %v3567
        %v3628 = vpack.c.b16 %v3572, %v3570
        %v3629 = vpack.c.b16 %v3573, %v3571
        %v3630 = vpack.c.b16 %v3576, %v3574
        %v3631 = vpack.c.b16 %v3577, %v3575
        %v3632 = vpack.c.b16 %v3580, %v3578
        %v3633 = vpack.c.b16 %v3581, %v3579
        %v3634 = vpack.c.b16 %v3584, %v3582
        %v3635 = vpack.c.b16 %v3585, %v3583
        %v3636 = vpack.c.b16 %v3588, %v3586
        %v3637 = vpack.c.b16 %v3589, %v3587
        %v3638 = vpack.c.b16 %v3592, %v3590
        %v3639 = vpack.c.b16 %v3593, %v3591
        %v3640 = vpack.c.b16 %v3596, %v3594
        %v3641 = vpack.c.b16 %v3597, %v3595
        %v3642 = vpack.c.b16 %v3600, %v3598
        %v3643 = vpack.c.b16 %v3601, %v3599
        %v3644 = vpack.c.b16 %v3604, %v3602
        %v3645 = vpack.c.b16 %v3605, %v3603
        %v3646 = vpack.c.b16 %v3608, %v3606
        %v3647 = vpack.c.b16 %v3609, %v3607
        %v3648 = vpack.c.b16 %v3612, %v3610
        %v3649 = vpack.c.b16 %v3613, %v3611
        %v3650 = vpack.c.b16 %v3616, %v3614
        %v3651 = vpack.c.b16 %v3617, %v3615
        %v3652 = vpack.c.b16 %v3620, %v3618
        %v3653 = vpack.c.b16 %v3621, %v3619
        %v3654 = vpack.c.b16 %v3624, %v3622
        %v3655 = vpack.c.b16 %v3625, %v3623
        %3686 = vmatprep.subr.bf16.mxu0 %v3627
        %3687 = vmatpush1.bf16.msra.mxu0 %v3626
        %3688 = vmatprep.subr.bf16.mxu0 %v3629
        %3689 = vmatpush1.bf16.msra.mxu0 %v3628
        %3690 = vmatprep.subr.bf16.mxu0 %v3631
        %3691 = vmatpush1.bf16.msra.mxu0 %v3630
        %3692 = vmatprep.subr.bf16.mxu0 %v3633
        %3693 = vmatpush1.bf16.msra.mxu0 %v3632
        %3694 = vmatprep.subr.bf16.mxu0 %v3635
        %3695 = vmatpush1.bf16.msra.mxu0 %v3634
        %3696 = vmatprep.subr.bf16.mxu0 %v3637
        %3697 = vmatpush1.bf16.msra.mxu0 %v3636
        %3698 = vmatprep.subr.bf16.mxu0 %v3639
        %3699 = vmatpush1.bf16.msra.mxu0 %v3638
        %3700 = vmatprep.subr.bf16.mxu0 %v3641
        %3701 = vmatpush1.bf16.msra.mxu0 %v3640
        %3702 = vmatprep.subr.bf16.mxu0 %v3643
        %3703 = vmatpush1.bf16.msra.mxu0 %v3642
        %3704 = vmatprep.subr.bf16.mxu0 %v3645
        %3705 = vmatpush1.bf16.msra.mxu0 %v3644
        %3706 = vmatprep.subr.bf16.mxu0 %v3647
        %3707 = vmatpush1.bf16.msra.mxu0 %v3646
        %3708 = vmatprep.subr.bf16.mxu0 %v3649
        %3709 = vmatpush1.bf16.msra.mxu0 %v3648
        %3710 = vmatprep.subr.bf16.mxu0 %v3651
        %3711 = vmatpush1.bf16.msra.mxu0 %v3650
        %3712 = vmatprep.subr.bf16.mxu0 %v3653
        %3713 = vmatpush1.bf16.msra.mxu0 %v3652
        %3714 = vmatprep.subr.bf16.mxu0 %v3655
        %3715 = vmatpush1.bf16.msra.mxu0 %v3654
        %3716 = vmatprep.subr.bf16.mxu0 0
        %3717 = vmatpush1.bf16.msra.mxu0 0
        %3718 = vmatprep.mubr.bf16.mxu0 %v2558
        %3719 = vmatmul.mubr.bf16.gmra.mrb[0].mxu0 %v2402
        %v3720 = vpop.f32.mrb[0].mxu0
        %v3721 = vadd.f32 0.0, %v3720
        %v3722 = vpop.f32.mrb[0].mxu0
        %v3723 = vadd.f32 0.0, %v3722
        %v3724 = vpop.f32.mrb[0].mxu0
        %v3725 = vpop.f32.mrb[0].mxu0
        %3726 = vdwg.mxu0
        %v3727 = vadd.f32 %v3503, %v3721
        %v3728 = vadd.f32 %v3504, %v3723
        %s3729 = scalar_lea.vmem %s3, 2160
        %v3730 = vld [vmem:[%s3729] sm:$0xff]
        %v3731 = vld [vmem:[%s3729 + $0x8] sm:$0xff]
        %v3732 = vld [vmem:[%s3729 + $0x10] sm:$0xff]
        %v3733 = vld [vmem:[%s3729 + $0x18] sm:$0xff]
        %v3734 = vld [vmem:[%s3729 + $0x20] sm:$0xff]
        %v3735 = vld [vmem:[%s3729 + $0x28] sm:$0xff]
        %v3736 = vld [vmem:[%s3729 + $0x30] sm:$0xff]
        %v3737 = vld [vmem:[%s3729 + $0x38] sm:$0xff]
        %v3738 = vld [vmem:[%s3729 + $0x40] sm:$0xff]
        %v3739 = vld [vmem:[%s3729 + $0x48] sm:$0xff]
        %v3740 = vld [vmem:[%s3729 + $0x50] sm:$0xff]
        %v3741 = vld [vmem:[%s3729 + $0x58] sm:$0xff]
        %v3742 = vld [vmem:[%s3729 + $0x60] sm:$0xff]
        %v3743 = vld [vmem:[%s3729 + $0x68] sm:$0xff]
        %v3744 = vld [vmem:[%s3729 + $0x70] sm:$0xff]
        %v3745 = vld [vmem:[%s3729 + $0x78] sm:$0xff]
        %v3746 = vld [vmem:[%s3729 + $0x80] sm:$0xff]
        %v3747 = vld [vmem:[%s3729 + $0x88] sm:$0xff]
        %v3748 = vld [vmem:[%s3729 + $0x90] sm:$0xff]
        %v3749 = vld [vmem:[%s3729 + $0x98] sm:$0xff]
        %v3750 = vld [vmem:[%s3729 + $0xa0] sm:$0xff]
        %v3751 = vld [vmem:[%s3729 + $0xa8] sm:$0xff]
        %v3752 = vld [vmem:[%s3729 + $0xb0] sm:$0xff]
        %v3753 = vld [vmem:[%s3729 + $0xb8] sm:$0xff]
        %v3754 = vld [vmem:[%s3729 + $0xc0] sm:$0xff]
        %v3755 = vld [vmem:[%s3729 + $0xc8] sm:$0xff]
        %v3756 = vld [vmem:[%s3729 + $0xd0] sm:$0xff]
        %v3757 = vld [vmem:[%s3729 + $0xd8] sm:$0xff]
        %v3758 = vld [vmem:[%s3729 + $0xe0] sm:$0xff]
        %v3759 = vld [vmem:[%s3729 + $0xe8] sm:$0xff]
        %v3790 = vunpack.c.l.b16 %v3730
        %v3791 = vunpack.c.h.b16 %v3730
        %v3792 = vunpack.c.l.b16 %v3731
        %v3793 = vunpack.c.h.b16 %v3731
        %v3794 = vunpack.c.l.b16 %v3732
        %v3795 = vunpack.c.h.b16 %v3732
        %v3796 = vunpack.c.l.b16 %v3733
        %v3797 = vunpack.c.h.b16 %v3733
        %v3798 = vunpack.c.l.b16 %v3734
        %v3799 = vunpack.c.h.b16 %v3734
        %v3800 = vunpack.c.l.b16 %v3735
        %v3801 = vunpack.c.h.b16 %v3735
        %v3802 = vunpack.c.l.b16 %v3736
        %v3803 = vunpack.c.h.b16 %v3736
        %v3804 = vunpack.c.l.b16 %v3737
        %v3805 = vunpack.c.h.b16 %v3737
        %v3806 = vunpack.c.l.b16 %v3738
        %v3807 = vunpack.c.h.b16 %v3738
        %v3808 = vunpack.c.l.b16 %v3739
        %v3809 = vunpack.c.h.b16 %v3739
        %v3810 = vunpack.c.l.b16 %v3740
        %v3811 = vunpack.c.h.b16 %v3740
        %v3812 = vunpack.c.l.b16 %v3741
        %v3813 = vunpack.c.h.b16 %v3741
        %v3814 = vunpack.c.l.b16 %v3742
        %v3815 = vunpack.c.h.b16 %v3742
        %v3816 = vunpack.c.l.b16 %v3743
        %v3817 = vunpack.c.h.b16 %v3743
        %v3818 = vunpack.c.l.b16 %v3744
        %v3819 = vunpack.c.h.b16 %v3744
        %v3820 = vunpack.c.l.b16 %v3745
        %v3821 = vunpack.c.h.b16 %v3745
        %v3822 = vunpack.c.l.b16 %v3746
        %v3823 = vunpack.c.h.b16 %v3746
        %v3824 = vunpack.c.l.b16 %v3747
        %v3825 = vunpack.c.h.b16 %v3747
        %v3826 = vunpack.c.l.b16 %v3748
        %v3827 = vunpack.c.h.b16 %v3748
        %v3828 = vunpack.c.l.b16 %v3749
        %v3829 = vunpack.c.h.b16 %v3749
        %v3830 = vunpack.c.l.b16 %v3750
        %v3831 = vunpack.c.h.b16 %v3750
        %v3832 = vunpack.c.l.b16 %v3751
        %v3833 = vunpack.c.h.b16 %v3751
        %v3834 = vunpack.c.l.b16 %v3752
        %v3835 = vunpack.c.h.b16 %v3752
        %v3836 = vunpack.c.l.b16 %v3753
        %v3837 = vunpack.c.h.b16 %v3753
        %v3838 = vunpack.c.l.b16 %v3754
        %v3839 = vunpack.c.h.b16 %v3754
        %v3840 = vunpack.c.l.b16 %v3755
        %v3841 = vunpack.c.h.b16 %v3755
        %v3842 = vunpack.c.l.b16 %v3756
        %v3843 = vunpack.c.h.b16 %v3756
        %v3844 = vunpack.c.l.b16 %v3757
        %v3845 = vunpack.c.h.b16 %v3757
        %v3846 = vunpack.c.l.b16 %v3758
        %v3847 = vunpack.c.h.b16 %v3758
        %v3848 = vunpack.c.l.b16 %v3759
        %v3849 = vunpack.c.h.b16 %v3759
        %v3850 = vpack.c.b16 %v3792, %v3790
        %v3851 = vpack.c.b16 %v3793, %v3791
        %v3852 = vpack.c.b16 %v3796, %v3794
        %v3853 = vpack.c.b16 %v3797, %v3795
        %v3854 = vpack.c.b16 %v3800, %v3798
        %v3855 = vpack.c.b16 %v3801, %v3799
        %v3856 = vpack.c.b16 %v3804, %v3802
        %v3857 = vpack.c.b16 %v3805, %v3803
        %v3858 = vpack.c.b16 %v3808, %v3806
        %v3859 = vpack.c.b16 %v3809, %v3807
        %v3860 = vpack.c.b16 %v3812, %v3810
        %v3861 = vpack.c.b16 %v3813, %v3811
        %v3862 = vpack.c.b16 %v3816, %v3814
        %v3863 = vpack.c.b16 %v3817, %v3815
        %v3864 = vpack.c.b16 %v3820, %v3818
        %v3865 = vpack.c.b16 %v3821, %v3819
        %v3866 = vpack.c.b16 %v3824, %v3822
        %v3867 = vpack.c.b16 %v3825, %v3823
        %v3868 = vpack.c.b16 %v3828, %v3826
        %v3869 = vpack.c.b16 %v3829, %v3827
        %v3870 = vpack.c.b16 %v3832, %v3830
        %v3871 = vpack.c.b16 %v3833, %v3831
        %v3872 = vpack.c.b16 %v3836, %v3834
        %v3873 = vpack.c.b16 %v3837, %v3835
        %v3874 = vpack.c.b16 %v3840, %v3838
        %v3875 = vpack.c.b16 %v3841, %v3839
        %v3876 = vpack.c.b16 %v3844, %v3842
        %v3877 = vpack.c.b16 %v3845, %v3843
        %v3878 = vpack.c.b16 %v3848, %v3846
        %v3879 = vpack.c.b16 %v3849, %v3847
        %3910 = vmatprep.subr.bf16.mxu0 %v3851
        %3911 = vmatpush1.bf16.msra.mxu0 %v3850
        %3912 = vmatprep.subr.bf16.mxu0 %v3853
        %3913 = vmatpush1.bf16.msra.mxu0 %v3852
        %3914 = vmatprep.subr.bf16.mxu0 %v3855
        %3915 = vmatpush1.bf16.msra.mxu0 %v3854
        %3916 = vmatprep.subr.bf16.mxu0 %v3857
        %3917 = vmatpush1.bf16.msra.mxu0 %v3856
        %3918 = vmatprep.subr.bf16.mxu0 %v3859
        %3919 = vmatpush1.bf16.msra.mxu0 %v3858
        %3920 = vmatprep.subr.bf16.mxu0 %v3861
        %3921 = vmatpush1.bf16.msra.mxu0 %v3860
        %3922 = vmatprep.subr.bf16.mxu0 %v3863
        %3923 = vmatpush1.bf16.msra.mxu0 %v3862
        %3924 = vmatprep.subr.bf16.mxu0 %v3865
        %3925 = vmatpush1.bf16.msra.mxu0 %v3864
        %3926 = vmatprep.subr.bf16.mxu0 %v3867
        %3927 = vmatpush1.bf16.msra.mxu0 %v3866
        %3928 = vmatprep.subr.bf16.mxu0 %v3869
        %3929 = vmatpush1.bf16.msra.mxu0 %v3868
        %3930 = vmatprep.subr.bf16.mxu0 %v3871
        %3931 = vmatpush1.bf16.msra.mxu0 %v3870
        %3932 = vmatprep.subr.bf16.mxu0 %v3873
        %3933 = vmatpush1.bf16.msra.mxu0 %v3872
        %3934 = vmatprep.subr.bf16.mxu0 %v3875
        %3935 = vmatpush1.bf16.msra.mxu0 %v3874
        %3936 = vmatprep.subr.bf16.mxu0 %v3877
        %3937 = vmatpush1.bf16.msra.mxu0 %v3876
        %3938 = vmatprep.subr.bf16.mxu0 %v3879
        %3939 = vmatpush1.bf16.msra.mxu0 %v3878
        %3940 = vmatprep.subr.bf16.mxu0 0
        %3941 = vmatpush1.bf16.msra.mxu0 0
        %3942 = vmatprep.mubr.bf16.mxu0 %v2788
        %3943 = vmatmul.mubr.bf16.gmra.mrb[0].mxu0 %v2634
        %v3944 = vpop.f32.mrb[0].mxu0
        %v3945 = vadd.f32 0.0, %v3944
        %v3946 = vpop.f32.mrb[0].mxu0
        %v3947 = vadd.f32 0.0, %v3946
        %v3948 = vpop.f32.mrb[0].mxu0
        %v3949 = vpop.f32.mrb[0].mxu0
        %3950 = vdwg.mxu0
        %v3951 = vadd.f32 %v3727, %v3945
        %v3952 = vadd.f32 %v3728, %v3947
        %v3953 = vmax.f32 %v2831, %v3951
        %v3954 = vmax.f32 %v2832, %v3952
        %v3955 = vmax.f32 %v3953, 0.0
        %v3956 = vmax.f32 %v3954, 0.0
        %v3957 = vld [vmem:[%s6] sm:$0xf]
        %v3960 = vrot.slane %v3955, 1
        %v3961 = vrot.slane %v3956, 1
        %v3964 = vmax.f32 %v3955, %v3960
        %v3965 = vmax.f32 %v3956, %v3961
        %v3966 = vpack.c.bf16 %v3964, %v3964
        %v3967 = vpack.c.bf16 %v3965, %v3965
        %v3968 = vld [vmem:[%s5] sm:$0xff]
        %v3969 = vld [vmem:[%s5 + $0x8] sm:$0xff]
        %v3970 = vld [vmem:[%s5 + $0x10] sm:$0xff]
        %v3971 = vld [vmem:[%s5 + $0x18] sm:$0xff]
        %v3972 = vld [vmem:[%s5 + $0x20] sm:$0xff]
        %v3973 = vld [vmem:[%s5 + $0x28] sm:$0xff]
        %v3974 = vld [vmem:[%s5 + $0x30] sm:$0xff]
        %v3975 = vld [vmem:[%s5 + $0x38] sm:$0xff]
        %v3976 = vld [vmem:[%s5 + $0x40] sm:$0xff]
        %v3977 = vld [vmem:[%s5 + $0x48] sm:$0xff]
        %v3978 = vld [vmem:[%s5 + $0x50] sm:$0xff]
        %v3979 = vld [vmem:[%s5 + $0x58] sm:$0xff]
        %v3980 = vld [vmem:[%s5 + $0x60] sm:$0xff]
        %v3981 = vld [vmem:[%s5 + $0x68] sm:$0xff]
        %v3982 = vld [vmem:[%s5 + $0x70] sm:$0xff]
        %v3983 = vld [vmem:[%s5 + $0x78] sm:$0xff]
        %v3984 = vld [vmem:[%s5 + $0x80] sm:$0xff]
        %v3985 = vld [vmem:[%s5 + $0x88] sm:$0xff]
        %v3986 = vld [vmem:[%s5 + $0x90] sm:$0xff]
        %v3987 = vld [vmem:[%s5 + $0x98] sm:$0xff]
        %v3988 = vld [vmem:[%s5 + $0xa0] sm:$0xff]
        %v3989 = vld [vmem:[%s5 + $0xa8] sm:$0xff]
        %v3990 = vld [vmem:[%s5 + $0xb0] sm:$0xff]
        %v3991 = vld [vmem:[%s5 + $0xb8] sm:$0xff]
        %v3992 = vld [vmem:[%s5 + $0xc0] sm:$0xff]
        %v3993 = vld [vmem:[%s5 + $0xc8] sm:$0xff]
        %v3994 = vld [vmem:[%s5 + $0xd0] sm:$0xff]
        %v3995 = vld [vmem:[%s5 + $0xd8] sm:$0xff]
        %v3996 = vld [vmem:[%s5 + $0xe0] sm:$0xff]
        %v3997 = vld [vmem:[%s5 + $0xe8] sm:$0xff]
        %v3998 = vld [vmem:[%s5 + $0xf0] sm:$0xff]
        %v3999 = vld [vmem:[%s5 + $0xf8] sm:$0xff]
        %v4000 = vld [vmem:[%s5 + $0x100] sm:$0xff]
        %v4001 = vld [vmem:[%s5 + $0x108] sm:$0xff]
        %v4002 = vld [vmem:[%s5 + $0x110] sm:$0xff]
        %v4003 = vld [vmem:[%s5 + $0x118] sm:$0xff]
        %v4004 = vld [vmem:[%s5 + $0x120] sm:$0xff]
        %v4005 = vld [vmem:[%s5 + $0x128] sm:$0xff]
        %v4006 = vld [vmem:[%s5 + $0x130] sm:$0xff]
        %v4007 = vld [vmem:[%s5 + $0x138] sm:$0xff]
        %v4008 = vld [vmem:[%s5 + $0x140] sm:$0xff]
        %v4009 = vld [vmem:[%s5 + $0x148] sm:$0xff]
        %v4010 = vld [vmem:[%s5 + $0x150] sm:$0xff]
        %v4011 = vld [vmem:[%s5 + $0x158] sm:$0xff]
        %v4012 = vld [vmem:[%s5 + $0x160] sm:$0xff]
        %v4013 = vld [vmem:[%s5 + $0x168] sm:$0xff]
        %v4014 = vld [vmem:[%s5 + $0x170] sm:$0xff]
        %v4015 = vld [vmem:[%s5 + $0x178] sm:$0xff]
        %v4016 = vld [vmem:[%s5 + $0x180] sm:$0xff]
        %v4017 = vld [vmem:[%s5 + $0x188] sm:$0xff]
        %v4068 = vunpack.c.l.b16 %v3968
        %v4069 = vunpack.c.h.b16 %v3968
        %v4070 = vunpack.c.l.b16 %v3969
        %v4071 = vunpack.c.h.b16 %v3969
        %v4072 = vunpack.c.l.b16 %v3970
        %v4073 = vunpack.c.h.b16 %v3970
        %v4074 = vunpack.c.l.b16 %v3971
        %v4075 = vunpack.c.h.b16 %v3971
        %v4076 = vunpack.c.l.b16 %v3972
        %v4077 = vunpack.c.h.b16 %v3972
        %v4078 = vunpack.c.l.b16 %v3973
        %v4079 = vunpack.c.h.b16 %v3973
        %v4080 = vunpack.c.l.b16 %v3974
        %v4081 = vunpack.c.h.b16 %v3974
        %v4082 = vunpack.c.l.b16 %v3975
        %v4083 = vunpack.c.h.b16 %v3975
        %v4084 = vunpack.c.l.b16 %v3976
        %v4085 = vunpack.c.h.b16 %v3976
        %v4086 = vunpack.c.l.b16 %v3977
        %v4087 = vunpack.c.h.b16 %v3977
        %v4088 = vunpack.c.l.b16 %v3978
        %v4089 = vunpack.c.h.b16 %v3978
        %v4090 = vunpack.c.l.b16 %v3979
        %v4091 = vunpack.c.h.b16 %v3979
        %v4092 = vunpack.c.l.b16 %v3980
        %v4093 = vunpack.c.h.b16 %v3980
        %v4094 = vunpack.c.l.b16 %v3981
        %v4095 = vunpack.c.h.b16 %v3981
        %v4096 = vunpack.c.l.b16 %v3982
        %v4097 = vunpack.c.h.b16 %v3982
        %v4098 = vunpack.c.l.b16 %v3983
        %v4099 = vunpack.c.h.b16 %v3983
        %v4100 = vunpack.c.l.b16 %v3984
        %v4101 = vunpack.c.h.b16 %v3984
        %v4102 = vunpack.c.l.b16 %v3985
        %v4103 = vunpack.c.h.b16 %v3985
        %v4104 = vunpack.c.l.b16 %v3986
        %v4105 = vunpack.c.h.b16 %v3986
        %v4106 = vunpack.c.l.b16 %v3987
        %v4107 = vunpack.c.h.b16 %v3987
        %v4108 = vunpack.c.l.b16 %v3988
        %v4109 = vunpack.c.h.b16 %v3988
        %v4110 = vunpack.c.l.b16 %v3989
        %v4111 = vunpack.c.h.b16 %v3989
        %v4112 = vunpack.c.l.b16 %v3990
        %v4113 = vunpack.c.h.b16 %v3990
        %v4114 = vunpack.c.l.b16 %v3991
        %v4115 = vunpack.c.h.b16 %v3991
        %v4116 = vunpack.c.l.b16 %v3992
        %v4117 = vunpack.c.h.b16 %v3992
        %v4118 = vunpack.c.l.b16 %v3993
        %v4119 = vunpack.c.h.b16 %v3993
        %v4120 = vunpack.c.l.b16 %v3994
        %v4121 = vunpack.c.h.b16 %v3994
        %v4122 = vunpack.c.l.b16 %v3995
        %v4123 = vunpack.c.h.b16 %v3995
        %v4124 = vunpack.c.l.b16 %v3996
        %v4125 = vunpack.c.h.b16 %v3996
        %v4126 = vunpack.c.l.b16 %v3997
        %v4127 = vunpack.c.h.b16 %v3997
        %v4128 = vunpack.c.l.b16 %v3998
        %v4129 = vunpack.c.h.b16 %v3998
        %v4130 = vunpack.c.l.b16 %v3999
        %v4131 = vunpack.c.h.b16 %v3999
        %v4132 = vunpack.c.l.b16 %v4000
        %v4133 = vunpack.c.h.b16 %v4000
        %v4134 = vunpack.c.l.b16 %v4001
        %v4135 = vunpack.c.h.b16 %v4001
        %v4136 = vunpack.c.l.b16 %v4002
        %v4137 = vunpack.c.h.b16 %v4002
        %v4138 = vunpack.c.l.b16 %v4003
        %v4139 = vunpack.c.h.b16 %v4003
        %v4140 = vunpack.c.l.b16 %v4004
        %v4141 = vunpack.c.h.b16 %v4004
        %v4142 = vunpack.c.l.b16 %v4005
        %v4143 = vunpack.c.h.b16 %v4005
        %v4144 = vunpack.c.l.b16 %v4006
        %v4145 = vunpack.c.h.b16 %v4006
        %v4146 = vunpack.c.l.b16 %v4007
        %v4147 = vunpack.c.h.b16 %v4007
        %v4148 = vunpack.c.l.b16 %v4008
        %v4149 = vunpack.c.h.b16 %v4008
        %v4150 = vunpack.c.l.b16 %v4009
        %v4151 = vunpack.c.h.b16 %v4009
        %v4152 = vunpack.c.l.b16 %v4010
        %v4153 = vunpack.c.h.b16 %v4010
        %v4154 = vunpack.c.l.b16 %v4011
        %v4155 = vunpack.c.h.b16 %v4011
        %v4156 = vunpack.c.l.b16 %v4012
        %v4157 = vunpack.c.h.b16 %v4012
        %v4158 = vunpack.c.l.b16 %v4013
        %v4159 = vunpack.c.h.b16 %v4013
        %v4160 = vunpack.c.l.b16 %v4014
        %v4161 = vunpack.c.h.b16 %v4014
        %v4162 = vunpack.c.l.b16 %v4015
        %v4163 = vunpack.c.h.b16 %v4015
        %v4164 = vunpack.c.l.b16 %v4016
        %v4165 = vunpack.c.h.b16 %v4016
        %v4166 = vunpack.c.l.b16 %v4017
        %v4167 = vunpack.c.h.b16 %v4017
        %v4168 = vpack.c.b16 %v4072, %v4068
        %v4169 = vpack.c.b16 %v4073, %v4069
        %v4170 = vpack.c.b16 %v4074, %v4070
        %v4171 = vpack.c.b16 %v4075, %v4071
        %v4172 = vpack.c.b16 %v4080, %v4076
        %v4173 = vpack.c.b16 %v4081, %v4077
        %v4174 = vpack.c.b16 %v4082, %v4078
        %v4175 = vpack.c.b16 %v4083, %v4079
        %v4176 = vpack.c.b16 %v4088, %v4084
        %v4177 = vpack.c.b16 %v4089, %v4085
        %v4178 = vpack.c.b16 %v4090, %v4086
        %v4179 = vpack.c.b16 %v4091, %v4087
        %v4180 = vpack.c.b16 %v4096, %v4092
        %v4181 = vpack.c.b16 %v4097, %v4093
        %v4182 = vpack.c.b16 %v4098, %v4094
        %v4183 = vpack.c.b16 %v4099, %v4095
        %v4184 = vpack.c.b16 %v4104, %v4100
        %v4185 = vpack.c.b16 %v4105, %v4101
        %v4186 = vpack.c.b16 %v4106, %v4102
        %v4187 = vpack.c.b16 %v4107, %v4103
        %v4188 = vpack.c.b16 %v4112, %v4108
        %v4189 = vpack.c.b16 %v4113, %v4109
        %v4190 = vpack.c.b16 %v4114, %v4110
        %v4191 = vpack.c.b16 %v4115, %v4111
        %v4192 = vpack.c.b16 %v4120, %v4116
        %v4193 = vpack.c.b16 %v4121, %v4117
        %v4194 = vpack.c.b16 %v4122, %v4118
        %v4195 = vpack.c.b16 %v4123, %v4119
        %v4196 = vpack.c.b16 %v4128, %v4124
        %v4197 = vpack.c.b16 %v4129, %v4125
        %v4198 = vpack.c.b16 %v4130, %v4126
        %v4199 = vpack.c.b16 %v4131, %v4127
        %v4200 = vpack.c.b16 %v4136, %v4132
        %v4201 = vpack.c.b16 %v4137, %v4133
        %v4202 = vpack.c.b16 %v4138, %v4134
        %v4203 = vpack.c.b16 %v4139, %v4135
        %v4204 = vpack.c.b16 %v4144, %v4140
        %v4205 = vpack.c.b16 %v4145, %v4141
        %v4206 = vpack.c.b16 %v4146, %v4142
        %v4207 = vpack.c.b16 %v4147, %v4143
        %v4208 = vpack.c.b16 %v4152, %v4148
        %v4209 = vpack.c.b16 %v4153, %v4149
        %v4210 = vpack.c.b16 %v4154, %v4150
        %v4211 = vpack.c.b16 %v4155, %v4151
        %v4212 = vpack.c.b16 %v4160, %v4156
        %v4213 = vpack.c.b16 %v4161, %v4157
        %v4214 = vpack.c.b16 %v4162, %v4158
        %v4215 = vpack.c.b16 %v4163, %v4159
        %v4216 = vpack.c.b16 %v4164, %v4164
        %v4217 = vpack.c.b16 %v4165, %v4165
        %v4218 = vpack.c.b16 %v4166, %v4166
        %v4219 = vpack.c.b16 %v4167, %v4167
        %vm4268 = vcmask 588800
        %v4270 = vsel %vm4268, %v3967, 0
        %vm4272 = vcmask 1043456
        %v4274 = vsel %vm4272, %v4216, 0
        %v4277 = vsel %vm4272, %v4217, 0
        %v4280 = vsel %vm4272, %v4218, 0
        %v4283 = vsel %vm4272, %v4219, 0
        %4285 = vmatprep.subr.bf16.mxu0 %v4169
        %4286 = vmatpush1.bf16.msra.mxu0 %v4168
        %4287 = vmatprep.subr.bf16.mxu0 %v4173
        %4288 = vmatpush1.bf16.msra.mxu0 %v4172
        %4289 = vmatprep.subr.bf16.mxu0 %v4177
        %4290 = vmatpush1.bf16.msra.mxu0 %v4176
        %4291 = vmatprep.subr.bf16.mxu0 %v4181
        %4292 = vmatpush1.bf16.msra.mxu0 %v4180
        %4293 = vmatprep.subr.bf16.mxu0 %v4185
        %4294 = vmatpush1.bf16.msra.mxu0 %v4184
        %4295 = vmatprep.subr.bf16.mxu0 %v4189
        %4296 = vmatpush1.bf16.msra.mxu0 %v4188
        %4297 = vmatprep.subr.bf16.mxu0 %v4193
        %4298 = vmatpush1.bf16.msra.mxu0 %v4192
        %4299 = vmatprep.subr.bf16.mxu0 %v4197
        %4300 = vmatpush1.bf16.msra.mxu0 %v4196
        %4301 = vmatprep.subr.bf16.mxu0 %v4201
        %4302 = vmatpush1.bf16.msra.mxu0 %v4200
        %4303 = vmatprep.subr.bf16.mxu0 %v4205
        %4304 = vmatpush1.bf16.msra.mxu0 %v4204
        %4305 = vmatprep.subr.bf16.mxu0 %v4209
        %4306 = vmatpush1.bf16.msra.mxu0 %v4208
        %4307 = vmatprep.subr.bf16.mxu0 %v4213
        %4308 = vmatpush1.bf16.msra.mxu0 %v4212
        %4309 = vmatprep.subr.bf16.mxu0 %v4277
        %4310 = vmatpush1.bf16.msra.mxu0 %v4274
        %4311 = vmatprep.subr.bf16.mxu0 0
        %4312 = vmatpush1.bf16.msra.mxu0 0
        %4313 = vmatprep.subr.bf16.mxu0 0
        %4314 = vmatpush1.bf16.msra.mxu0 0
        %4315 = vmatprep.subr.bf16.mxu0 0
        %4316 = vmatpush1.bf16.msra.mxu0 0
        %4317 = vmatprep.mubr.bf16.mxu0 %v4270
        %4318 = vmatmul.mubr.bf16.gmra.mrb[0].mxu0 %v3966
        %v4319 = vpop.f32.mrb[0].mxu0
        %v4320 = vadd.f32 0.0, %v4319
        %v4321 = vpop.f32.mrb[0].mxu0
        %v4322 = vadd.f32 0.0, %v4321
        %v4323 = vpop.f32.mrb[0].mxu0
        %v4324 = vpop.f32.mrb[0].mxu0
        %4325 = vdwg.mxu0
        %4326 = vmatprep.subr.bf16.mxu0 %v4171
        %4327 = vmatpush1.bf16.msra.mxu0 %v4170
        %4328 = vmatprep.subr.bf16.mxu0 %v4175
        %4329 = vmatpush1.bf16.msra.mxu0 %v4174
        %4330 = vmatprep.subr.bf16.mxu0 %v4179
        %4331 = vmatpush1.bf16.msra.mxu0 %v4178
        %4332 = vmatprep.subr.bf16.mxu0 %v4183
        %4333 = vmatpush1.bf16.msra.mxu0 %v4182
        %4334 = vmatprep.subr.bf16.mxu0 %v4187
        %4335 = vmatpush1.bf16.msra.mxu0 %v4186
        %4336 = vmatprep.subr.bf16.mxu0 %v4191
        %4337 = vmatpush1.bf16.msra.mxu0 %v4190
        %4338 = vmatprep.subr.bf16.mxu0 %v4195
        %4339 = vmatpush1.bf16.msra.mxu0 %v4194
        %4340 = vmatprep.subr.bf16.mxu0 %v4199
        %4341 = vmatpush1.bf16.msra.mxu0 %v4198
        %4342 = vmatprep.subr.bf16.mxu0 %v4203
        %4343 = vmatpush1.bf16.msra.mxu0 %v4202
        %4344 = vmatprep.subr.bf16.mxu0 %v4207
        %4345 = vmatpush1.bf16.msra.mxu0 %v4206
        %4346 = vmatprep.subr.bf16.mxu0 %v4211
        %4347 = vmatpush1.bf16.msra.mxu0 %v4210
        %4348 = vmatprep.subr.bf16.mxu0 %v4215
        %4349 = vmatpush1.bf16.msra.mxu0 %v4214
        %4350 = vmatprep.subr.bf16.mxu0 %v4283
        %4351 = vmatpush1.bf16.msra.mxu0 %v4280
        %4352 = vmatprep.subr.bf16.mxu0 0
        %4353 = vmatpush1.bf16.msra.mxu0 0
        %4354 = vmatprep.subr.bf16.mxu0 0
        %4355 = vmatpush1.bf16.msra.mxu0 0
        %4356 = vmatprep.subr.bf16.mxu0 0
        %4357 = vmatpush1.bf16.msra.mxu0 0
        %4358 = vmatprep.mubr.bf16.mxu0 %v4270
        %4359 = vmatmul.mubr.bf16.gmra.mrb[0].mxu0 %v3966
        %v4360 = vpop.f32.mrb[0].mxu0
        %v4361 = vadd.f32 0.0, %v4360
        %v4362 = vpop.f32.mrb[0].mxu0
        %v4363 = vadd.f32 0.0, %v4362
        %v4364 = vpop.f32.mrb[0].mxu0
        %v4365 = vpop.f32.mrb[0].mxu0
        %4366 = vdwg.mxu0
        %v4371 = vcombine.low %v4320, %v4322
        %v4372 = vcombine.low %v4361, %v4363
        %v4374 = vunpack.c.l.s4 1966171168
        %v4375 = vunpack.c.0.s8 %v4374
        %v4376 = vlaneseq
        %v4377 = vshrl.u32 %v4376, 7
        %v4378 = vsub.s32 %v4375, %v4377
        %v4379 = vrot.slane %v4371, %v4378
        %v4381 = vunpack.c.l.s4 1966171168
        %v4382 = vunpack.c.0.s8 %v4381
        %v4383 = vlaneseq
        %v4384 = vshrl.u32 %v4383, 7
        %v4385 = vsub.s32 %v4382, %v4384
        %v4386 = vrot.slane %v4372, %v4385
        %v4387 = vcombine.low %v4379, %v4386
        %v4389 = vunpack.c.l.s4 1966171168
        %v4390 = vunpack.c.0.s8 %v4389
        %v4391 = vlaneseq
        %v4392 = vshrl.u32 %v4391, 7
        %v4393 = vsub.s32 %v4390, %v4392
        %v4394 = vrot.slane %v4387, %v4393
        %v4396 = vadd.f32 %v3957, %v4394
        %s4397 = scalar_lea.vmem %s5, 400
        %v4398 = vld [vmem:[%s4397] sm:$0xff]
        %v4399 = vld [vmem:[%s4397 + $0x8] sm:$0xff]
        %v4400 = vld [vmem:[%s4397 + $0x10] sm:$0xff]
        %v4401 = vld [vmem:[%s4397 + $0x18] sm:$0xff]
        %v4402 = vld [vmem:[%s4397 + $0x20] sm:$0xff]
        %v4403 = vld [vmem:[%s4397 + $0x28] sm:$0xff]
        %v4404 = vld [vmem:[%s4397 + $0x30] sm:$0xff]
        %v4405 = vld [vmem:[%s4397 + $0x38] sm:$0xff]
        %v4406 = vld [vmem:[%s4397 + $0x40] sm:$0xff]
        %v4407 = vld [vmem:[%s4397 + $0x48] sm:$0xff]
        %v4408 = vld [vmem:[%s4397 + $0x50] sm:$0xff]
        %v4409 = vld [vmem:[%s4397 + $0x58] sm:$0xff]
        %v4410 = vld [vmem:[%s4397 + $0x60] sm:$0xff]
        %v4411 = vld [vmem:[%s4397 + $0x68] sm:$0xff]
        %v4412 = vld [vmem:[%s4397 + $0x70] sm:$0xff]
        %v4413 = vld [vmem:[%s4397 + $0x78] sm:$0xff]
        %v4414 = vld [vmem:[%s4397 + $0x80] sm:$0xff]
        %v4415 = vld [vmem:[%s4397 + $0x88] sm:$0xff]
        %v4416 = vld [vmem:[%s4397 + $0x90] sm:$0xff]
        %v4417 = vld [vmem:[%s4397 + $0x98] sm:$0xff]
        %v4418 = vld [vmem:[%s4397 + $0xa0] sm:$0xff]
        %v4419 = vld [vmem:[%s4397 + $0xa8] sm:$0xff]
        %v4420 = vld [vmem:[%s4397 + $0xb0] sm:$0xff]
        %v4421 = vld [vmem:[%s4397 + $0xb8] sm:$0xff]
        %v4422 = vld [vmem:[%s4397 + $0xc0] sm:$0xff]
        %v4423 = vld [vmem:[%s4397 + $0xc8] sm:$0xff]
        %v4424 = vld [vmem:[%s4397 + $0xd0] sm:$0xff]
        %v4425 = vld [vmem:[%s4397 + $0xd8] sm:$0xff]
        %v4426 = vld [vmem:[%s4397 + $0xe0] sm:$0xff]
        %v4427 = vld [vmem:[%s4397 + $0xe8] sm:$0xff]
        %v4428 = vld [vmem:[%s4397 + $0xf0] sm:$0xff]
        %v4429 = vld [vmem:[%s4397 + $0xf8] sm:$0xff]
        %v4430 = vld [vmem:[%s4397 + $0x100] sm:$0xff]
        %v4431 = vld [vmem:[%s4397 + $0x108] sm:$0xff]
        %v4432 = vld [vmem:[%s4397 + $0x110] sm:$0xff]
        %v4433 = vld [vmem:[%s4397 + $0x118] sm:$0xff]
        %v4434 = vld [vmem:[%s4397 + $0x120] sm:$0xff]
        %v4435 = vld [vmem:[%s4397 + $0x128] sm:$0xff]
        %v4436 = vld [vmem:[%s4397 + $0x130] sm:$0xff]
        %v4437 = vld [vmem:[%s4397 + $0x138] sm:$0xff]
        %v4438 = vld [vmem:[%s4397 + $0x140] sm:$0xff]
        %v4439 = vld [vmem:[%s4397 + $0x148] sm:$0xff]
        %v4440 = vld [vmem:[%s4397 + $0x150] sm:$0xff]
        %v4441 = vld [vmem:[%s4397 + $0x158] sm:$0xff]
        %v4442 = vld [vmem:[%s4397 + $0x160] sm:$0xff]
        %v4443 = vld [vmem:[%s4397 + $0x168] sm:$0xff]
        %v4444 = vld [vmem:[%s4397 + $0x170] sm:$0xff]
        %v4445 = vld [vmem:[%s4397 + $0x178] sm:$0xff]
        %v4446 = vld [vmem:[%s4397 + $0x180] sm:$0xff]
        %v4447 = vld [vmem:[%s4397 + $0x188] sm:$0xff]
        %v4450 = vrot.slane %v3966, 1
        %v4451 = vrot.slane %v3967, 1
        %v4503 = vunpack.c.l.b16 %v4398
        %v4504 = vunpack.c.h.b16 %v4398
        %v4505 = vunpack.c.l.b16 %v4399
        %v4506 = vunpack.c.h.b16 %v4399
        %v4507 = vunpack.c.l.b16 %v4400
        %v4508 = vunpack.c.h.b16 %v4400
        %v4509 = vunpack.c.l.b16 %v4401
        %v4510 = vunpack.c.h.b16 %v4401
        %v4511 = vunpack.c.l.b16 %v4402
        %v4512 = vunpack.c.h.b16 %v4402
        %v4513 = vunpack.c.l.b16 %v4403
        %v4514 = vunpack.c.h.b16 %v4403
        %v4515 = vunpack.c.l.b16 %v4404
        %v4516 = vunpack.c.h.b16 %v4404
        %v4517 = vunpack.c.l.b16 %v4405
        %v4518 = vunpack.c.h.b16 %v4405
        %v4519 = vunpack.c.l.b16 %v4406
        %v4520 = vunpack.c.h.b16 %v4406
        %v4521 = vunpack.c.l.b16 %v4407
        %v4522 = vunpack.c.h.b16 %v4407
        %v4523 = vunpack.c.l.b16 %v4408
        %v4524 = vunpack.c.h.b16 %v4408
        %v4525 = vunpack.c.l.b16 %v4409
        %v4526 = vunpack.c.h.b16 %v4409
        %v4527 = vunpack.c.l.b16 %v4410
        %v4528 = vunpack.c.h.b16 %v4410
        %v4529 = vunpack.c.l.b16 %v4411
        %v4530 = vunpack.c.h.b16 %v4411
        %v4531 = vunpack.c.l.b16 %v4412
        %v4532 = vunpack.c.h.b16 %v4412
        %v4533 = vunpack.c.l.b16 %v4413
        %v4534 = vunpack.c.h.b16 %v4413
        %v4535 = vunpack.c.l.b16 %v4414
        %v4536 = vunpack.c.h.b16 %v4414
        %v4537 = vunpack.c.l.b16 %v4415
        %v4538 = vunpack.c.h.b16 %v4415
        %v4539 = vunpack.c.l.b16 %v4416
        %v4540 = vunpack.c.h.b16 %v4416
        %v4541 = vunpack.c.l.b16 %v4417
        %v4542 = vunpack.c.h.b16 %v4417
        %v4543 = vunpack.c.l.b16 %v4418
        %v4544 = vunpack.c.h.b16 %v4418
        %v4545 = vunpack.c.l.b16 %v4419
        %v4546 = vunpack.c.h.b16 %v4419
        %v4547 = vunpack.c.l.b16 %v4420
        %v4548 = vunpack.c.h.b16 %v4420
        %v4549 = vunpack.c.l.b16 %v4421
        %v4550 = vunpack.c.h.b16 %v4421
        %v4551 = vunpack.c.l.b16 %v4422
        %v4552 = vunpack.c.h.b16 %v4422
        %v4553 = vunpack.c.l.b16 %v4423
        %v4554 = vunpack.c.h.b16 %v4423
        %v4555 = vunpack.c.l.b16 %v4424
        %v4556 = vunpack.c.h.b16 %v4424
        %v4557 = vunpack.c.l.b16 %v4425
        %v4558 = vunpack.c.h.b16 %v4425
        %v4559 = vunpack.c.l.b16 %v4426
        %v4560 = vunpack.c.h.b16 %v4426
        %v4561 = vunpack.c.l.b16 %v4427
        %v4562 = vunpack.c.h.b16 %v4427
        %v4563 = vunpack.c.l.b16 %v4428
        %v4564 = vunpack.c.h.b16 %v4428
        %v4565 = vunpack.c.l.b16 %v4429
        %v4566 = vunpack.c.h.b16 %v4429
        %v4567 = vunpack.c.l.b16 %v4430
        %v4568 = vunpack.c.h.b16 %v4430
        %v4569 = vunpack.c.l.b16 %v4431
        %v4570 = vunpack.c.h.b16 %v4431
        %v4571 = vunpack.c.l.b16 %v4432
        %v4572 = vunpack.c.h.b16 %v4432
        %v4573 = vunpack.c.l.b16 %v4433
        %v4574 = vunpack.c.h.b16 %v4433
        %v4575 = vunpack.c.l.b16 %v4434
        %v4576 = vunpack.c.h.b16 %v4434
        %v4577 = vunpack.c.l.b16 %v4435
        %v4578 = vunpack.c.h.b16 %v4435
        %v4579 = vunpack.c.l.b16 %v4436
        %v4580 = vunpack.c.h.b16 %v4436
        %v4581 = vunpack.c.l.b16 %v4437
        %v4582 = vunpack.c.h.b16 %v4437
        %v4583 = vunpack.c.l.b16 %v4438
        %v4584 = vunpack.c.h.b16 %v4438
        %v4585 = vunpack.c.l.b16 %v4439
        %v4586 = vunpack.c.h.b16 %v4439
        %v4587 = vunpack.c.l.b16 %v4440
        %v4588 = vunpack.c.h.b16 %v4440
        %v4589 = vunpack.c.l.b16 %v4441
        %v4590 = vunpack.c.h.b16 %v4441
        %v4591 = vunpack.c.l.b16 %v4442
        %v4592 = vunpack.c.h.b16 %v4442
        %v4593 = vunpack.c.l.b16 %v4443
        %v4594 = vunpack.c.h.b16 %v4443
        %v4595 = vunpack.c.l.b16 %v4444
        %v4596 = vunpack.c.h.b16 %v4444
        %v4597 = vunpack.c.l.b16 %v4445
        %v4598 = vunpack.c.h.b16 %v4445
        %v4599 = vunpack.c.l.b16 %v4446
        %v4600 = vunpack.c.h.b16 %v4446
        %v4601 = vunpack.c.l.b16 %v4447
        %v4602 = vunpack.c.h.b16 %v4447
        %v4603 = vpack.c.b16 %v4507, %v4503
        %v4604 = vpack.c.b16 %v4508, %v4504
        %v4605 = vpack.c.b16 %v4509, %v4505
        %v4606 = vpack.c.b16 %v4510, %v4506
        %v4607 = vpack.c.b16 %v4515, %v4511
        %v4608 = vpack.c.b16 %v4516, %v4512
        %v4609 = vpack.c.b16 %v4517, %v4513
        %v4610 = vpack.c.b16 %v4518, %v4514
        %v4611 = vpack.c.b16 %v4523, %v4519
        %v4612 = vpack.c.b16 %v4524, %v4520
        %v4613 = vpack.c.b16 %v4525, %v4521
        %v4614 = vpack.c.b16 %v4526, %v4522
        %v4615 = vpack.c.b16 %v4531, %v4527
        %v4616 = vpack.c.b16 %v4532, %v4528
        %v4617 = vpack.c.b16 %v4533, %v4529
        %v4618 = vpack.c.b16 %v4534, %v4530
        %v4619 = vpack.c.b16 %v4539, %v4535
        %v4620 = vpack.c.b16 %v4540, %v4536
        %v4621 = vpack.c.b16 %v4541, %v4537
        %v4622 = vpack.c.b16 %v4542, %v4538
        %v4623 = vpack.c.b16 %v4547, %v4543
        %v4624 = vpack.c.b16 %v4548, %v4544
        %v4625 = vpack.c.b16 %v4549, %v4545
        %v4626 = vpack.c.b16 %v4550, %v4546
        %v4627 = vpack.c.b16 %v4555, %v4551
        %v4628 = vpack.c.b16 %v4556, %v4552
        %v4629 = vpack.c.b16 %v4557, %v4553
        %v4630 = vpack.c.b16 %v4558, %v4554
        %v4631 = vpack.c.b16 %v4563, %v4559
        %v4632 = vpack.c.b16 %v4564, %v4560
        %v4633 = vpack.c.b16 %v4565, %v4561
        %v4634 = vpack.c.b16 %v4566, %v4562
        %v4635 = vpack.c.b16 %v4571, %v4567
        %v4636 = vpack.c.b16 %v4572, %v4568
        %v4637 = vpack.c.b16 %v4573, %v4569
        %v4638 = vpack.c.b16 %v4574, %v4570
        %v4639 = vpack.c.b16 %v4579, %v4575
        %v4640 = vpack.c.b16 %v4580, %v4576
        %v4641 = vpack.c.b16 %v4581, %v4577
        %v4642 = vpack.c.b16 %v4582, %v4578
        %v4643 = vpack.c.b16 %v4587, %v4583
        %v4644 = vpack.c.b16 %v4588, %v4584
        %v4645 = vpack.c.b16 %v4589, %v4585
        %v4646 = vpack.c.b16 %v4590, %v4586
        %v4647 = vpack.c.b16 %v4595, %v4591
        %v4648 = vpack.c.b16 %v4596, %v4592
        %v4649 = vpack.c.b16 %v4597, %v4593
        %v4650 = vpack.c.b16 %v4598, %v4594
        %v4651 = vpack.c.b16 %v4599, %v4599
        %v4652 = vpack.c.b16 %v4600, %v4600
        %v4653 = vpack.c.b16 %v4601, %v4601
        %v4654 = vpack.c.b16 %v4602, %v4602
        %v4704 = vsel %vm4268, %v4451, 0
        %v4707 = vsel %vm4272, %v4651, 0
        %v4710 = vsel %vm4272, %v4652, 0
        %v4713 = vsel %vm4272, %v4653, 0
        %v4716 = vsel %vm4272, %v4654, 0
        %4718 = vmatprep.subr.bf16.mxu0 %v4604
        %4719 = vmatpush1.bf16.msra.mxu0 %v4603
        %4720 = vmatprep.subr.bf16.mxu0 %v4608
        %4721 = vmatpush1.bf16.msra.mxu0 %v4607
        %4722 = vmatprep.subr.bf16.mxu0 %v4612
        %4723 = vmatpush1.bf16.msra.mxu0 %v4611
        %4724 = vmatprep.subr.bf16.mxu0 %v4616
        %4725 = vmatpush1.bf16.msra.mxu0 %v4615
        %4726 = vmatprep.subr.bf16.mxu0 %v4620
        %4727 = vmatpush1.bf16.msra.mxu0 %v4619
        %4728 = vmatprep.subr.bf16.mxu0 %v4624
        %4729 = vmatpush1.bf16.msra.mxu0 %v4623
        %4730 = vmatprep.subr.bf16.mxu0 %v4628
        %4731 = vmatpush1.bf16.msra.mxu0 %v4627
        %4732 = vmatprep.subr.bf16.mxu0 %v4632
        %4733 = vmatpush1.bf16.msra.mxu0 %v4631
        %4734 = vmatprep.subr.bf16.mxu0 %v4636
        %4735 = vmatpush1.bf16.msra.mxu0 %v4635
        %4736 = vmatprep.subr.bf16.mxu0 %v4640
        %4737 = vmatpush1.bf16.msra.mxu0 %v4639
        %4738 = vmatprep.subr.bf16.mxu0 %v4644
        %4739 = vmatpush1.bf16.msra.mxu0 %v4643
        %4740 = vmatprep.subr.bf16.mxu0 %v4648
        %4741 = vmatpush1.bf16.msra.mxu0 %v4647
        %4742 = vmatprep.subr.bf16.mxu0 %v4710
        %4743 = vmatpush1.bf16.msra.mxu0 %v4707
        %4744 = vmatprep.subr.bf16.mxu0 0
        %4745 = vmatpush1.bf16.msra.mxu0 0
        %4746 = vmatprep.subr.bf16.mxu0 0
        %4747 = vmatpush1.bf16.msra.mxu0 0
        %4748 = vmatprep.subr.bf16.mxu0 0
        %4749 = vmatpush1.bf16.msra.mxu0 0
        %4750 = vmatprep.mubr.bf16.mxu0 %v4704
        %4751 = vmatmul.mubr.bf16.gmra.mrb[0].mxu0 %v4450
        %v4752 = vpop.f32.mrb[0].mxu0
        %v4753 = vadd.f32 0.0, %v4752
        %v4754 = vpop.f32.mrb[0].mxu0
        %v4755 = vadd.f32 0.0, %v4754
        %v4756 = vpop.f32.mrb[0].mxu0
        %v4757 = vpop.f32.mrb[0].mxu0
        %4758 = vdwg.mxu0
        %4759 = vmatprep.subr.bf16.mxu0 %v4606
        %4760 = vmatpush1.bf16.msra.mxu0 %v4605
        %4761 = vmatprep.subr.bf16.mxu0 %v4610
        %4762 = vmatpush1.bf16.msra.mxu0 %v4609
        %4763 = vmatprep.subr.bf16.mxu0 %v4614
        %4764 = vmatpush1.bf16.msra.mxu0 %v4613
        %4765 = vmatprep.subr.bf16.mxu0 %v4618
        %4766 = vmatpush1.bf16.msra.mxu0 %v4617
        %4767 = vmatprep.subr.bf16.mxu0 %v4622
        %4768 = vmatpush1.bf16.msra.mxu0 %v4621
        %4769 = vmatprep.subr.bf16.mxu0 %v4626
        %4770 = vmatpush1.bf16.msra.mxu0 %v4625
        %4771 = vmatprep.subr.bf16.mxu0 %v4630
        %4772 = vmatpush1.bf16.msra.mxu0 %v4629
        %4773 = vmatprep.subr.bf16.mxu0 %v4634
        %4774 = vmatpush1.bf16.msra.mxu0 %v4633
        %4775 = vmatprep.subr.bf16.mxu0 %v4638
        %4776 = vmatpush1.bf16.msra.mxu0 %v4637
        %4777 = vmatprep.subr.bf16.mxu0 %v4642
        %4778 = vmatpush1.bf16.msra.mxu0 %v4641
        %4779 = vmatprep.subr.bf16.mxu0 %v4646
        %4780 = vmatpush1.bf16.msra.mxu0 %v4645
        %4781 = vmatprep.subr.bf16.mxu0 %v4650
        %4782 = vmatpush1.bf16.msra.mxu0 %v4649
        %4783 = vmatprep.subr.bf16.mxu0 %v4716
        %4784 = vmatpush1.bf16.msra.mxu0 %v4713
        %4785 = vmatprep.subr.bf16.mxu0 0
        %4786 = vmatpush1.bf16.msra.mxu0 0
        %4787 = vmatprep.subr.bf16.mxu0 0
        %4788 = vmatpush1.bf16.msra.mxu0 0
        %4789 = vmatprep.subr.bf16.mxu0 0
        %4790 = vmatpush1.bf16.msra.mxu0 0
        %4791 = vmatprep.mubr.bf16.mxu0 %v4704
        %4792 = vmatmul.mubr.bf16.gmra.mrb[0].mxu0 %v4450
        %v4793 = vpop.f32.mrb[0].mxu0
        %v4794 = vadd.f32 0.0, %v4793
        %v4795 = vpop.f32.mrb[0].mxu0
        %v4796 = vadd.f32 0.0, %v4795
        %v4797 = vpop.f32.mrb[0].mxu0
        %v4798 = vpop.f32.mrb[0].mxu0
        %4799 = vdwg.mxu0
        %v4804 = vcombine.low %v4753, %v4755
        %v4805 = vcombine.low %v4794, %v4796
        %v4807 = vunpack.c.l.s4 1966171168
        %v4808 = vunpack.c.0.s8 %v4807
        %v4809 = vlaneseq
        %v4810 = vshrl.u32 %v4809, 7
        %v4811 = vsub.s32 %v4808, %v4810
        %v4812 = vrot.slane %v4804, %v4811
        %v4814 = vunpack.c.l.s4 1966171168
        %v4815 = vunpack.c.0.s8 %v4814
        %v4816 = vlaneseq
        %v4817 = vshrl.u32 %v4816, 7
        %v4818 = vsub.s32 %v4815, %v4817
        %v4819 = vrot.slane %v4805, %v4818
        %v4820 = vcombine.low %v4812, %v4819
        %v4822 = vunpack.c.l.s4 1966171168
        %v4823 = vunpack.c.0.s8 %v4822
        %v4824 = vlaneseq
        %v4825 = vshrl.u32 %v4824, 7
        %v4826 = vsub.s32 %v4823, %v4825
        %v4827 = vrot.slane %v4820, %v4826
        %v4829 = vadd.f32 %v4396, %v4827
        %s4830 = scalar_lea.vmem %s5, 800
        %v4831 = vld [vmem:[%s4830] sm:$0xff]
        %v4832 = vld [vmem:[%s4830 + $0x8] sm:$0xff]
        %v4833 = vld [vmem:[%s4830 + $0x10] sm:$0xff]
        %v4834 = vld [vmem:[%s4830 + $0x18] sm:$0xff]
        %v4835 = vld [vmem:[%s4830 + $0x20] sm:$0xff]
        %v4836 = vld [vmem:[%s4830 + $0x28] sm:$0xff]
        %v4837 = vld [vmem:[%s4830 + $0x30] sm:$0xff]
        %v4838 = vld [vmem:[%s4830 + $0x38] sm:$0xff]
        %v4839 = vld [vmem:[%s4830 + $0x40] sm:$0xff]
        %v4840 = vld [vmem:[%s4830 + $0x48] sm:$0xff]
        %v4841 = vld [vmem:[%s4830 + $0x50] sm:$0xff]
        %v4842 = vld [vmem:[%s4830 + $0x58] sm:$0xff]
        %v4843 = vld [vmem:[%s4830 + $0x60] sm:$0xff]
        %v4844 = vld [vmem:[%s4830 + $0x68] sm:$0xff]
        %v4845 = vld [vmem:[%s4830 + $0x70] sm:$0xff]
        %v4846 = vld [vmem:[%s4830 + $0x78] sm:$0xff]
        %v4847 = vld [vmem:[%s4830 + $0x80] sm:$0xff]
        %v4848 = vld [vmem:[%s4830 + $0x88] sm:$0xff]
        %v4849 = vld [vmem:[%s4830 + $0x90] sm:$0xff]
        %v4850 = vld [vmem:[%s4830 + $0x98] sm:$0xff]
        %v4851 = vld [vmem:[%s4830 + $0xa0] sm:$0xff]
        %v4852 = vld [vmem:[%s4830 + $0xa8] sm:$0xff]
        %v4853 = vld [vmem:[%s4830 + $0xb0] sm:$0xff]
        %v4854 = vld [vmem:[%s4830 + $0xb8] sm:$0xff]
        %v4855 = vld [vmem:[%s4830 + $0xc0] sm:$0xff]
        %v4856 = vld [vmem:[%s4830 + $0xc8] sm:$0xff]
        %v4857 = vld [vmem:[%s4830 + $0xd0] sm:$0xff]
        %v4858 = vld [vmem:[%s4830 + $0xd8] sm:$0xff]
        %v4859 = vld [vmem:[%s4830 + $0xe0] sm:$0xff]
        %v4860 = vld [vmem:[%s4830 + $0xe8] sm:$0xff]
        %v4861 = vld [vmem:[%s4830 + $0xf0] sm:$0xff]
        %v4862 = vld [vmem:[%s4830 + $0xf8] sm:$0xff]
        %v4863 = vld [vmem:[%s4830 + $0x100] sm:$0xff]
        %v4864 = vld [vmem:[%s4830 + $0x108] sm:$0xff]
        %v4865 = vld [vmem:[%s4830 + $0x110] sm:$0xff]
        %v4866 = vld [vmem:[%s4830 + $0x118] sm:$0xff]
        %v4867 = vld [vmem:[%s4830 + $0x120] sm:$0xff]
        %v4868 = vld [vmem:[%s4830 + $0x128] sm:$0xff]
        %v4869 = vld [vmem:[%s4830 + $0x130] sm:$0xff]
        %v4870 = vld [vmem:[%s4830 + $0x138] sm:$0xff]
        %v4871 = vld [vmem:[%s4830 + $0x140] sm:$0xff]
        %v4872 = vld [vmem:[%s4830 + $0x148] sm:$0xff]
        %v4873 = vld [vmem:[%s4830 + $0x150] sm:$0xff]
        %v4874 = vld [vmem:[%s4830 + $0x158] sm:$0xff]
        %v4875 = vld [vmem:[%s4830 + $0x160] sm:$0xff]
        %v4876 = vld [vmem:[%s4830 + $0x168] sm:$0xff]
        %v4877 = vld [vmem:[%s4830 + $0x170] sm:$0xff]
        %v4878 = vld [vmem:[%s4830 + $0x178] sm:$0xff]
        %v4879 = vld [vmem:[%s4830 + $0x180] sm:$0xff]
        %v4880 = vld [vmem:[%s4830 + $0x188] sm:$0xff]
        %v4881 = vrot.slane %v3966, 2
        %v4882 = vrot.slane %v3967, 2
        %v4934 = vunpack.c.l.b16 %v4831
        %v4935 = vunpack.c.h.b16 %v4831
        %v4936 = vunpack.c.l.b16 %v4832
        %v4937 = vunpack.c.h.b16 %v4832
        %v4938 = vunpack.c.l.b16 %v4833
        %v4939 = vunpack.c.h.b16 %v4833
        %v4940 = vunpack.c.l.b16 %v4834
        %v4941 = vunpack.c.h.b16 %v4834
        %v4942 = vunpack.c.l.b16 %v4835
        %v4943 = vunpack.c.h.b16 %v4835
        %v4944 = vunpack.c.l.b16 %v4836
        %v4945 = vunpack.c.h.b16 %v4836
        %v4946 = vunpack.c.l.b16 %v4837
        %v4947 = vunpack.c.h.b16 %v4837
        %v4948 = vunpack.c.l.b16 %v4838
        %v4949 = vunpack.c.h.b16 %v4838
        %v4950 = vunpack.c.l.b16 %v4839
        %v4951 = vunpack.c.h.b16 %v4839
        %v4952 = vunpack.c.l.b16 %v4840
        %v4953 = vunpack.c.h.b16 %v4840
        %v4954 = vunpack.c.l.b16 %v4841
        %v4955 = vunpack.c.h.b16 %v4841
        %v4956 = vunpack.c.l.b16 %v4842
        %v4957 = vunpack.c.h.b16 %v4842
        %v4958 = vunpack.c.l.b16 %v4843
        %v4959 = vunpack.c.h.b16 %v4843
        %v4960 = vunpack.c.l.b16 %v4844
        %v4961 = vunpack.c.h.b16 %v4844
        %v4962 = vunpack.c.l.b16 %v4845
        %v4963 = vunpack.c.h.b16 %v4845
        %v4964 = vunpack.c.l.b16 %v4846
        %v4965 = vunpack.c.h.b16 %v4846
        %v4966 = vunpack.c.l.b16 %v4847
        %v4967 = vunpack.c.h.b16 %v4847
        %v4968 = vunpack.c.l.b16 %v4848
        %v4969 = vunpack.c.h.b16 %v4848
        %v4970 = vunpack.c.l.b16 %v4849
        %v4971 = vunpack.c.h.b16 %v4849
        %v4972 = vunpack.c.l.b16 %v4850
        %v4973 = vunpack.c.h.b16 %v4850
        %v4974 = vunpack.c.l.b16 %v4851
        %v4975 = vunpack.c.h.b16 %v4851
        %v4976 = vunpack.c.l.b16 %v4852
        %v4977 = vunpack.c.h.b16 %v4852
        %v4978 = vunpack.c.l.b16 %v4853
        %v4979 = vunpack.c.h.b16 %v4853
        %v4980 = vunpack.c.l.b16 %v4854
        %v4981 = vunpack.c.h.b16 %v4854
        %v4982 = vunpack.c.l.b16 %v4855
        %v4983 = vunpack.c.h.b16 %v4855
        %v4984 = vunpack.c.l.b16 %v4856
        %v4985 = vunpack.c.h.b16 %v4856
        %v4986 = vunpack.c.l.b16 %v4857
        %v4987 = vunpack.c.h.b16 %v4857
        %v4988 = vunpack.c.l.b16 %v4858
        %v4989 = vunpack.c.h.b16 %v4858
        %v4990 = vunpack.c.l.b16 %v4859
        %v4991 = vunpack.c.h.b16 %v4859
        %v4992 = vunpack.c.l.b16 %v4860
        %v4993 = vunpack.c.h.b16 %v4860
        %v4994 = vunpack.c.l.b16 %v4861
        %v4995 = vunpack.c.h.b16 %v4861
        %v4996 = vunpack.c.l.b16 %v4862
        %v4997 = vunpack.c.h.b16 %v4862
        %v4998 = vunpack.c.l.b16 %v4863
        %v4999 = vunpack.c.h.b16 %v4863
        %v5000 = vunpack.c.l.b16 %v4864
        %v5001 = vunpack.c.h.b16 %v4864
        %v5002 = vunpack.c.l.b16 %v4865
        %v5003 = vunpack.c.h.b16 %v4865
        %v5004 = vunpack.c.l.b16 %v4866
        %v5005 = vunpack.c.h.b16 %v4866
        %v5006 = vunpack.c.l.b16 %v4867
        %v5007 = vunpack.c.h.b16 %v4867
        %v5008 = vunpack.c.l.b16 %v4868
        %v5009 = vunpack.c.h.b16 %v4868
        %v5010 = vunpack.c.l.b16 %v4869
        %v5011 = vunpack.c.h.b16 %v4869
        %v5012 = vunpack.c.l.b16 %v4870
        %v5013 = vunpack.c.h.b16 %v4870
        %v5014 = vunpack.c.l.b16 %v4871
        %v5015 = vunpack.c.h.b16 %v4871
        %v5016 = vunpack.c.l.b16 %v4872
        %v5017 = vunpack.c.h.b16 %v4872
        %v5018 = vunpack.c.l.b16 %v4873
        %v5019 = vunpack.c.h.b16 %v4873
        %v5020 = vunpack.c.l.b16 %v4874
        %v5021 = vunpack.c.h.b16 %v4874
        %v5022 = vunpack.c.l.b16 %v4875
        %v5023 = vunpack.c.h.b16 %v4875
        %v5024 = vunpack.c.l.b16 %v4876
        %v5025 = vunpack.c.h.b16 %v4876
        %v5026 = vunpack.c.l.b16 %v4877
        %v5027 = vunpack.c.h.b16 %v4877
        %v5028 = vunpack.c.l.b16 %v4878
        %v5029 = vunpack.c.h.b16 %v4878
        %v5030 = vunpack.c.l.b16 %v4879
        %v5031 = vunpack.c.h.b16 %v4879
        %v5032 = vunpack.c.l.b16 %v4880
        %v5033 = vunpack.c.h.b16 %v4880
        %v5034 = vpack.c.b16 %v4938, %v4934
        %v5035 = vpack.c.b16 %v4939, %v4935
        %v5036 = vpack.c.b16 %v4940, %v4936
        %v5037 = vpack.c.b16 %v4941, %v4937
        %v5038 = vpack.c.b16 %v4946, %v4942
        %v5039 = vpack.c.b16 %v4947, %v4943
        %v5040 = vpack.c.b16 %v4948, %v4944
        %v5041 = vpack.c.b16 %v4949, %v4945
        %v5042 = vpack.c.b16 %v4954, %v4950
        %v5043 = vpack.c.b16 %v4955, %v4951
        %v5044 = vpack.c.b16 %v4956, %v4952
        %v5045 = vpack.c.b16 %v4957, %v4953
        %v5046 = vpack.c.b16 %v4962, %v4958
        %v5047 = vpack.c.b16 %v4963, %v4959
        %v5048 = vpack.c.b16 %v4964, %v4960
        %v5049 = vpack.c.b16 %v4965, %v4961
        %v5050 = vpack.c.b16 %v4970, %v4966
        %v5051 = vpack.c.b16 %v4971, %v4967
        %v5052 = vpack.c.b16 %v4972, %v4968
        %v5053 = vpack.c.b16 %v4973, %v4969
        %v5054 = vpack.c.b16 %v4978, %v4974
        %v5055 = vpack.c.b16 %v4979, %v4975
        %v5056 = vpack.c.b16 %v4980, %v4976
        %v5057 = vpack.c.b16 %v4981, %v4977
        %v5058 = vpack.c.b16 %v4986, %v4982
        %v5059 = vpack.c.b16 %v4987, %v4983
        %v5060 = vpack.c.b16 %v4988, %v4984
        %v5061 = vpack.c.b16 %v4989, %v4985
        %v5062 = vpack.c.b16 %v4994, %v4990
        %v5063 = vpack.c.b16 %v4995, %v4991
        %v5064 = vpack.c.b16 %v4996, %v4992
        %v5065 = vpack.c.b16 %v4997, %v4993
        %v5066 = vpack.c.b16 %v5002, %v4998
        %v5067 = vpack.c.b16 %v5003, %v4999
        %v5068 = vpack.c.b16 %v5004, %v5000
        %v5069 = vpack.c.b16 %v5005, %v5001
        %v5070 = vpack.c.b16 %v5010, %v5006
        %v5071 = vpack.c.b16 %v5011, %v5007
        %v5072 = vpack.c.b16 %v5012, %v5008
        %v5073 = vpack.c.b16 %v5013, %v5009
        %v5074 = vpack.c.b16 %v5018, %v5014
        %v5075 = vpack.c.b16 %v5019, %v5015
        %v5076 = vpack.c.b16 %v5020, %v5016
        %v5077 = vpack.c.b16 %v5021, %v5017
        %v5078 = vpack.c.b16 %v5026, %v5022
        %v5079 = vpack.c.b16 %v5027, %v5023
        %v5080 = vpack.c.b16 %v5028, %v5024
        %v5081 = vpack.c.b16 %v5029, %v5025
        %v5082 = vpack.c.b16 %v5030, %v5030
        %v5083 = vpack.c.b16 %v5031, %v5031
        %v5084 = vpack.c.b16 %v5032, %v5032
        %v5085 = vpack.c.b16 %v5033, %v5033
        %v5135 = vsel %vm4268, %v4882, 0
        %v5138 = vsel %vm4272, %v5082, 0
        %v5141 = vsel %vm4272, %v5083, 0
        %v5144 = vsel %vm4272, %v5084, 0
        %v5147 = vsel %vm4272, %v5085, 0
        %5149 = vmatprep.subr.bf16.mxu0 %v5035
        %5150 = vmatpush1.bf16.msra.mxu0 %v5034
        %5151 = vmatprep.subr.bf16.mxu0 %v5039
        %5152 = vmatpush1.bf16.msra.mxu0 %v5038
        %5153 = vmatprep.subr.bf16.mxu0 %v5043
        %5154 = vmatpush1.bf16.msra.mxu0 %v5042
        %5155 = vmatprep.subr.bf16.mxu0 %v5047
        %5156 = vmatpush1.bf16.msra.mxu0 %v5046
        %5157 = vmatprep.subr.bf16.mxu0 %v5051
        %5158 = vmatpush1.bf16.msra.mxu0 %v5050
        %5159 = vmatprep.subr.bf16.mxu0 %v5055
        %5160 = vmatpush1.bf16.msra.mxu0 %v5054
        %5161 = vmatprep.subr.bf16.mxu0 %v5059
        %5162 = vmatpush1.bf16.msra.mxu0 %v5058
        %5163 = vmatprep.subr.bf16.mxu0 %v5063
        %5164 = vmatpush1.bf16.msra.mxu0 %v5062
        %5165 = vmatprep.subr.bf16.mxu0 %v5067
        %5166 = vmatpush1.bf16.msra.mxu0 %v5066
        %5167 = vmatprep.subr.bf16.mxu0 %v5071
        %5168 = vmatpush1.bf16.msra.mxu0 %v5070
        %5169 = vmatprep.subr.bf16.mxu0 %v5075
        %5170 = vmatpush1.bf16.msra.mxu0 %v5074
        %5171 = vmatprep.subr.bf16.mxu0 %v5079
        %5172 = vmatpush1.bf16.msra.mxu0 %v5078
        %5173 = vmatprep.subr.bf16.mxu0 %v5141
        %5174 = vmatpush1.bf16.msra.mxu0 %v5138
        %5175 = vmatprep.subr.bf16.mxu0 0
        %5176 = vmatpush1.bf16.msra.mxu0 0
        %5177 = vmatprep.subr.bf16.mxu0 0
        %5178 = vmatpush1.bf16.msra.mxu0 0
        %5179 = vmatprep.subr.bf16.mxu0 0
        %5180 = vmatpush1.bf16.msra.mxu0 0
        %5181 = vmatprep.mubr.bf16.mxu0 %v5135
        %5182 = vmatmul.mubr.bf16.gmra.mrb[0].mxu0 %v4881
        %v5183 = vpop.f32.mrb[0].mxu0
        %v5184 = vadd.f32 0.0, %v5183
        %v5185 = vpop.f32.mrb[0].mxu0
        %v5186 = vadd.f32 0.0, %v5185
        %v5187 = vpop.f32.mrb[0].mxu0
        %v5188 = vpop.f32.mrb[0].mxu0
        %5189 = vdwg.mxu0
        %5190 = vmatprep.subr.bf16.mxu0 %v5037
        %5191 = vmatpush1.bf16.msra.mxu0 %v5036
        %5192 = vmatprep.subr.bf16.mxu0 %v5041
        %5193 = vmatpush1.bf16.msra.mxu0 %v5040
        %5194 = vmatprep.subr.bf16.mxu0 %v5045
        %5195 = vmatpush1.bf16.msra.mxu0 %v5044
        %5196 = vmatprep.subr.bf16.mxu0 %v5049
        %5197 = vmatpush1.bf16.msra.mxu0 %v5048
        %5198 = vmatprep.subr.bf16.mxu0 %v5053
        %5199 = vmatpush1.bf16.msra.mxu0 %v5052
        %5200 = vmatprep.subr.bf16.mxu0 %v5057
        %5201 = vmatpush1.bf16.msra.mxu0 %v5056
        %5202 = vmatprep.subr.bf16.mxu0 %v5061
        %5203 = vmatpush1.bf16.msra.mxu0 %v5060
        %5204 = vmatprep.subr.bf16.mxu0 %v5065
        %5205 = vmatpush1.bf16.msra.mxu0 %v5064
        %5206 = vmatprep.subr.bf16.mxu0 %v5069
        %5207 = vmatpush1.bf16.msra.mxu0 %v5068
        %5208 = vmatprep.subr.bf16.mxu0 %v5073
        %5209 = vmatpush1.bf16.msra.mxu0 %v5072
        %5210 = vmatprep.subr.bf16.mxu0 %v5077
        %5211 = vmatpush1.bf16.msra.mxu0 %v5076
        %5212 = vmatprep.subr.bf16.mxu0 %v5081
        %5213 = vmatpush1.bf16.msra.mxu0 %v5080
        %5214 = vmatprep.subr.bf16.mxu0 %v5147
        %5215 = vmatpush1.bf16.msra.mxu0 %v5144
        %5216 = vmatprep.subr.bf16.mxu0 0
        %5217 = vmatpush1.bf16.msra.mxu0 0
        %5218 = vmatprep.subr.bf16.mxu0 0
        %5219 = vmatpush1.bf16.msra.mxu0 0
        %5220 = vmatprep.subr.bf16.mxu0 0
        %5221 = vmatpush1.bf16.msra.mxu0 0
        %5222 = vmatprep.mubr.bf16.mxu0 %v5135
        %5223 = vmatmul.mubr.bf16.gmra.mrb[0].mxu0 %v4881
        %v5224 = vpop.f32.mrb[0].mxu0
        %v5225 = vadd.f32 0.0, %v5224
        %v5226 = vpop.f32.mrb[0].mxu0
        %v5227 = vadd.f32 0.0, %v5226
        %v5228 = vpop.f32.mrb[0].mxu0
        %v5229 = vpop.f32.mrb[0].mxu0
        %5230 = vdwg.mxu0
        %v5235 = vcombine.low %v5184, %v5186
        %v5236 = vcombine.low %v5225, %v5227
        %v5238 = vunpack.c.l.s4 1966171168
        %v5239 = vunpack.c.0.s8 %v5238
        %v5240 = vlaneseq
        %v5241 = vshrl.u32 %v5240, 7
        %v5242 = vsub.s32 %v5239, %v5241
        %v5243 = vrot.slane %v5235, %v5242
        %v5245 = vunpack.c.l.s4 1966171168
        %v5246 = vunpack.c.0.s8 %v5245
        %v5247 = vlaneseq
        %v5248 = vshrl.u32 %v5247, 7
        %v5249 = vsub.s32 %v5246, %v5248
        %v5250 = vrot.slane %v5236, %v5249
        %v5251 = vcombine.low %v5243, %v5250
        %v5253 = vunpack.c.l.s4 1966171168
        %v5254 = vunpack.c.0.s8 %v5253
        %v5255 = vlaneseq
        %v5256 = vshrl.u32 %v5255, 7
        %v5257 = vsub.s32 %v5254, %v5256
        %v5258 = vrot.slane %v5251, %v5257
        %v5260 = vadd.f32 %v4829, %v5258
        %s5261 = scalar_lea.vmem %s5, 1200
        %v5262 = vld [vmem:[%s5261] sm:$0xff]
        %v5263 = vld [vmem:[%s5261 + $0x8] sm:$0xff]
        %v5264 = vld [vmem:[%s5261 + $0x10] sm:$0xff]
        %v5265 = vld [vmem:[%s5261 + $0x18] sm:$0xff]
        %v5266 = vld [vmem:[%s5261 + $0x20] sm:$0xff]
        %v5267 = vld [vmem:[%s5261 + $0x28] sm:$0xff]
        %v5268 = vld [vmem:[%s5261 + $0x30] sm:$0xff]
        %v5269 = vld [vmem:[%s5261 + $0x38] sm:$0xff]
        %v5270 = vld [vmem:[%s5261 + $0x40] sm:$0xff]
        %v5271 = vld [vmem:[%s5261 + $0x48] sm:$0xff]
        %v5272 = vld [vmem:[%s5261 + $0x50] sm:$0xff]
        %v5273 = vld [vmem:[%s5261 + $0x58] sm:$0xff]
        %v5274 = vld [vmem:[%s5261 + $0x60] sm:$0xff]
        %v5275 = vld [vmem:[%s5261 + $0x68] sm:$0xff]
        %v5276 = vld [vmem:[%s5261 + $0x70] sm:$0xff]
        %v5277 = vld [vmem:[%s5261 + $0x78] sm:$0xff]
        %v5278 = vld [vmem:[%s5261 + $0x80] sm:$0xff]
        %v5279 = vld [vmem:[%s5261 + $0x88] sm:$0xff]
        %v5280 = vld [vmem:[%s5261 + $0x90] sm:$0xff]
        %v5281 = vld [vmem:[%s5261 + $0x98] sm:$0xff]
        %v5282 = vld [vmem:[%s5261 + $0xa0] sm:$0xff]
        %v5283 = vld [vmem:[%s5261 + $0xa8] sm:$0xff]
        %v5284 = vld [vmem:[%s5261 + $0xb0] sm:$0xff]
        %v5285 = vld [vmem:[%s5261 + $0xb8] sm:$0xff]
        %v5286 = vld [vmem:[%s5261 + $0xc0] sm:$0xff]
        %v5287 = vld [vmem:[%s5261 + $0xc8] sm:$0xff]
        %v5288 = vld [vmem:[%s5261 + $0xd0] sm:$0xff]
        %v5289 = vld [vmem:[%s5261 + $0xd8] sm:$0xff]
        %v5290 = vld [vmem:[%s5261 + $0xe0] sm:$0xff]
        %v5291 = vld [vmem:[%s5261 + $0xe8] sm:$0xff]
        %v5292 = vld [vmem:[%s5261 + $0xf0] sm:$0xff]
        %v5293 = vld [vmem:[%s5261 + $0xf8] sm:$0xff]
        %v5294 = vld [vmem:[%s5261 + $0x100] sm:$0xff]
        %v5295 = vld [vmem:[%s5261 + $0x108] sm:$0xff]
        %v5296 = vld [vmem:[%s5261 + $0x110] sm:$0xff]
        %v5297 = vld [vmem:[%s5261 + $0x118] sm:$0xff]
        %v5298 = vld [vmem:[%s5261 + $0x120] sm:$0xff]
        %v5299 = vld [vmem:[%s5261 + $0x128] sm:$0xff]
        %v5300 = vld [vmem:[%s5261 + $0x130] sm:$0xff]
        %v5301 = vld [vmem:[%s5261 + $0x138] sm:$0xff]
        %v5302 = vld [vmem:[%s5261 + $0x140] sm:$0xff]
        %v5303 = vld [vmem:[%s5261 + $0x148] sm:$0xff]
        %v5304 = vld [vmem:[%s5261 + $0x150] sm:$0xff]
        %v5305 = vld [vmem:[%s5261 + $0x158] sm:$0xff]
        %v5306 = vld [vmem:[%s5261 + $0x160] sm:$0xff]
        %v5307 = vld [vmem:[%s5261 + $0x168] sm:$0xff]
        %v5308 = vld [vmem:[%s5261 + $0x170] sm:$0xff]
        %v5309 = vld [vmem:[%s5261 + $0x178] sm:$0xff]
        %v5310 = vld [vmem:[%s5261 + $0x180] sm:$0xff]
        %v5311 = vld [vmem:[%s5261 + $0x188] sm:$0xff]
        %v5312 = vrot.slane %v3966, 3
        %v5313 = vrot.slane %v3967, 3
        %v5365 = vunpack.c.l.b16 %v5262
        %v5366 = vunpack.c.h.b16 %v5262
        %v5367 = vunpack.c.l.b16 %v5263
        %v5368 = vunpack.c.h.b16 %v5263
        %v5369 = vunpack.c.l.b16 %v5264
        %v5370 = vunpack.c.h.b16 %v5264
        %v5371 = vunpack.c.l.b16 %v5265
        %v5372 = vunpack.c.h.b16 %v5265
        %v5373 = vunpack.c.l.b16 %v5266
        %v5374 = vunpack.c.h.b16 %v5266
        %v5375 = vunpack.c.l.b16 %v5267
        %v5376 = vunpack.c.h.b16 %v5267
        %v5377 = vunpack.c.l.b16 %v5268
        %v5378 = vunpack.c.h.b16 %v5268
        %v5379 = vunpack.c.l.b16 %v5269
        %v5380 = vunpack.c.h.b16 %v5269
        %v5381 = vunpack.c.l.b16 %v5270
        %v5382 = vunpack.c.h.b16 %v5270
        %v5383 = vunpack.c.l.b16 %v5271
        %v5384 = vunpack.c.h.b16 %v5271
        %v5385 = vunpack.c.l.b16 %v5272
        %v5386 = vunpack.c.h.b16 %v5272
        %v5387 = vunpack.c.l.b16 %v5273
        %v5388 = vunpack.c.h.b16 %v5273
        %v5389 = vunpack.c.l.b16 %v5274
        %v5390 = vunpack.c.h.b16 %v5274
        %v5391 = vunpack.c.l.b16 %v5275
        %v5392 = vunpack.c.h.b16 %v5275
        %v5393 = vunpack.c.l.b16 %v5276
        %v5394 = vunpack.c.h.b16 %v5276
        %v5395 = vunpack.c.l.b16 %v5277
        %v5396 = vunpack.c.h.b16 %v5277
        %v5397 = vunpack.c.l.b16 %v5278
        %v5398 = vunpack.c.h.b16 %v5278
        %v5399 = vunpack.c.l.b16 %v5279
        %v5400 = vunpack.c.h.b16 %v5279
        %v5401 = vunpack.c.l.b16 %v5280
        %v5402 = vunpack.c.h.b16 %v5280
        %v5403 = vunpack.c.l.b16 %v5281
        %v5404 = vunpack.c.h.b16 %v5281
        %v5405 = vunpack.c.l.b16 %v5282
        %v5406 = vunpack.c.h.b16 %v5282
        %v5407 = vunpack.c.l.b16 %v5283
        %v5408 = vunpack.c.h.b16 %v5283
        %v5409 = vunpack.c.l.b16 %v5284
        %v5410 = vunpack.c.h.b16 %v5284
        %v5411 = vunpack.c.l.b16 %v5285
        %v5412 = vunpack.c.h.b16 %v5285
        %v5413 = vunpack.c.l.b16 %v5286
        %v5414 = vunpack.c.h.b16 %v5286
        %v5415 = vunpack.c.l.b16 %v5287
        %v5416 = vunpack.c.h.b16 %v5287
        %v5417 = vunpack.c.l.b16 %v5288
        %v5418 = vunpack.c.h.b16 %v5288
        %v5419 = vunpack.c.l.b16 %v5289
        %v5420 = vunpack.c.h.b16 %v5289
        %v5421 = vunpack.c.l.b16 %v5290
        %v5422 = vunpack.c.h.b16 %v5290
        %v5423 = vunpack.c.l.b16 %v5291
        %v5424 = vunpack.c.h.b16 %v5291
        %v5425 = vunpack.c.l.b16 %v5292
        %v5426 = vunpack.c.h.b16 %v5292
        %v5427 = vunpack.c.l.b16 %v5293
        %v5428 = vunpack.c.h.b16 %v5293
        %v5429 = vunpack.c.l.b16 %v5294
        %v5430 = vunpack.c.h.b16 %v5294
        %v5431 = vunpack.c.l.b16 %v5295
        %v5432 = vunpack.c.h.b16 %v5295
        %v5433 = vunpack.c.l.b16 %v5296
        %v5434 = vunpack.c.h.b16 %v5296
        %v5435 = vunpack.c.l.b16 %v5297
        %v5436 = vunpack.c.h.b16 %v5297
        %v5437 = vunpack.c.l.b16 %v5298
        %v5438 = vunpack.c.h.b16 %v5298
        %v5439 = vunpack.c.l.b16 %v5299
        %v5440 = vunpack.c.h.b16 %v5299
        %v5441 = vunpack.c.l.b16 %v5300
        %v5442 = vunpack.c.h.b16 %v5300
        %v5443 = vunpack.c.l.b16 %v5301
        %v5444 = vunpack.c.h.b16 %v5301
        %v5445 = vunpack.c.l.b16 %v5302
        %v5446 = vunpack.c.h.b16 %v5302
        %v5447 = vunpack.c.l.b16 %v5303
        %v5448 = vunpack.c.h.b16 %v5303
        %v5449 = vunpack.c.l.b16 %v5304
        %v5450 = vunpack.c.h.b16 %v5304
        %v5451 = vunpack.c.l.b16 %v5305
        %v5452 = vunpack.c.h.b16 %v5305
        %v5453 = vunpack.c.l.b16 %v5306
        %v5454 = vunpack.c.h.b16 %v5306
        %v5455 = vunpack.c.l.b16 %v5307
        %v5456 = vunpack.c.h.b16 %v5307
        %v5457 = vunpack.c.l.b16 %v5308
        %v5458 = vunpack.c.h.b16 %v5308
        %v5459 = vunpack.c.l.b16 %v5309
        %v5460 = vunpack.c.h.b16 %v5309
        %v5461 = vunpack.c.l.b16 %v5310
        %v5462 = vunpack.c.h.b16 %v5310
        %v5463 = vunpack.c.l.b16 %v5311
        %v5464 = vunpack.c.h.b16 %v5311
        %v5465 = vpack.c.b16 %v5369, %v5365
        %v5466 = vpack.c.b16 %v5370, %v5366
        %v5467 = vpack.c.b16 %v5371, %v5367
        %v5468 = vpack.c.b16 %v5372, %v5368
        %v5469 = vpack.c.b16 %v5377, %v5373
        %v5470 = vpack.c.b16 %v5378, %v5374
        %v5471 = vpack.c.b16 %v5379, %v5375
        %v5472 = vpack.c.b16 %v5380, %v5376
        %v5473 = vpack.c.b16 %v5385, %v5381
        %v5474 = vpack.c.b16 %v5386, %v5382
        %v5475 = vpack.c.b16 %v5387, %v5383
        %v5476 = vpack.c.b16 %v5388, %v5384
        %v5477 = vpack.c.b16 %v5393, %v5389
        %v5478 = vpack.c.b16 %v5394, %v5390
        %v5479 = vpack.c.b16 %v5395, %v5391
        %v5480 = vpack.c.b16 %v5396, %v5392
        %v5481 = vpack.c.b16 %v5401, %v5397
        %v5482 = vpack.c.b16 %v5402, %v5398
        %v5483 = vpack.c.b16 %v5403, %v5399
        %v5484 = vpack.c.b16 %v5404, %v5400
        %v5485 = vpack.c.b16 %v5409, %v5405
        %v5486 = vpack.c.b16 %v5410, %v5406
        %v5487 = vpack.c.b16 %v5411, %v5407
        %v5488 = vpack.c.b16 %v5412, %v5408
        %v5489 = vpack.c.b16 %v5417, %v5413
        %v5490 = vpack.c.b16 %v5418, %v5414
        %v5491 = vpack.c.b16 %v5419, %v5415
        %v5492 = vpack.c.b16 %v5420, %v5416
        %v5493 = vpack.c.b16 %v5425, %v5421
        %v5494 = vpack.c.b16 %v5426, %v5422
        %v5495 = vpack.c.b16 %v5427, %v5423
        %v5496 = vpack.c.b16 %v5428, %v5424
        %v5497 = vpack.c.b16 %v5433, %v5429
        %v5498 = vpack.c.b16 %v5434, %v5430
        %v5499 = vpack.c.b16 %v5435, %v5431
        %v5500 = vpack.c.b16 %v5436, %v5432
        %v5501 = vpack.c.b16 %v5441, %v5437
        %v5502 = vpack.c.b16 %v5442, %v5438
        %v5503 = vpack.c.b16 %v5443, %v5439
        %v5504 = vpack.c.b16 %v5444, %v5440
        %v5505 = vpack.c.b16 %v5449, %v5445
        %v5506 = vpack.c.b16 %v5450, %v5446
        %v5507 = vpack.c.b16 %v5451, %v5447
        %v5508 = vpack.c.b16 %v5452, %v5448
        %v5509 = vpack.c.b16 %v5457, %v5453
        %v5510 = vpack.c.b16 %v5458, %v5454
        %v5511 = vpack.c.b16 %v5459, %v5455
        %v5512 = vpack.c.b16 %v5460, %v5456
        %v5513 = vpack.c.b16 %v5461, %v5461
        %v5514 = vpack.c.b16 %v5462, %v5462
        %v5515 = vpack.c.b16 %v5463, %v5463
        %v5516 = vpack.c.b16 %v5464, %v5464
        %v5566 = vsel %vm4268, %v5313, 0
        %v5569 = vsel %vm4272, %v5513, 0
        %v5572 = vsel %vm4272, %v5514, 0
        %v5575 = vsel %vm4272, %v5515, 0
        %v5578 = vsel %vm4272, %v5516, 0
        %5580 = vmatprep.subr.bf16.mxu0 %v5466
        %5581 = vmatpush1.bf16.msra.mxu0 %v5465
        %5582 = vmatprep.subr.bf16.mxu0 %v5470
        %5583 = vmatpush1.bf16.msra.mxu0 %v5469
        %5584 = vmatprep.subr.bf16.mxu0 %v5474
        %5585 = vmatpush1.bf16.msra.mxu0 %v5473
        %5586 = vmatprep.subr.bf16.mxu0 %v5478
        %5587 = vmatpush1.bf16.msra.mxu0 %v5477
        %5588 = vmatprep.subr.bf16.mxu0 %v5482
        %5589 = vmatpush1.bf16.msra.mxu0 %v5481
        %5590 = vmatprep.subr.bf16.mxu0 %v5486
        %5591 = vmatpush1.bf16.msra.mxu0 %v5485
        %5592 = vmatprep.subr.bf16.mxu0 %v5490
        %5593 = vmatpush1.bf16.msra.mxu0 %v5489
        %5594 = vmatprep.subr.bf16.mxu0 %v5494
        %5595 = vmatpush1.bf16.msra.mxu0 %v5493
        %5596 = vmatprep.subr.bf16.mxu0 %v5498
        %5597 = vmatpush1.bf16.msra.mxu0 %v5497
        %5598 = vmatprep.subr.bf16.mxu0 %v5502
        %5599 = vmatpush1.bf16.msra.mxu0 %v5501
        %5600 = vmatprep.subr.bf16.mxu0 %v5506
        %5601 = vmatpush1.bf16.msra.mxu0 %v5505
        %5602 = vmatprep.subr.bf16.mxu0 %v5510
        %5603 = vmatpush1.bf16.msra.mxu0 %v5509
        %5604 = vmatprep.subr.bf16.mxu0 %v5572
        %5605 = vmatpush1.bf16.msra.mxu0 %v5569
        %5606 = vmatprep.subr.bf16.mxu0 0
        %5607 = vmatpush1.bf16.msra.mxu0 0
        %5608 = vmatprep.subr.bf16.mxu0 0
        %5609 = vmatpush1.bf16.msra.mxu0 0
        %5610 = vmatprep.subr.bf16.mxu0 0
        %5611 = vmatpush1.bf16.msra.mxu0 0
        %5612 = vmatprep.mubr.bf16.mxu0 %v5566
        %5613 = vmatmul.mubr.bf16.gmra.mrb[0].mxu0 %v5312
        %v5614 = vpop.f32.mrb[0].mxu0
        %v5615 = vadd.f32 0.0, %v5614
        %v5616 = vpop.f32.mrb[0].mxu0
        %v5617 = vadd.f32 0.0, %v5616
        %v5618 = vpop.f32.mrb[0].mxu0
        %v5619 = vpop.f32.mrb[0].mxu0
        %5620 = vdwg.mxu0
        %5621 = vmatprep.subr.bf16.mxu0 %v5468
        %5622 = vmatpush1.bf16.msra.mxu0 %v5467
        %5623 = vmatprep.subr.bf16.mxu0 %v5472
        %5624 = vmatpush1.bf16.msra.mxu0 %v5471
        %5625 = vmatprep.subr.bf16.mxu0 %v5476
        %5626 = vmatpush1.bf16.msra.mxu0 %v5475
        %5627 = vmatprep.subr.bf16.mxu0 %v5480
        %5628 = vmatpush1.bf16.msra.mxu0 %v5479
        %5629 = vmatprep.subr.bf16.mxu0 %v5484
        %5630 = vmatpush1.bf16.msra.mxu0 %v5483
        %5631 = vmatprep.subr.bf16.mxu0 %v5488
        %5632 = vmatpush1.bf16.msra.mxu0 %v5487
        %5633 = vmatprep.subr.bf16.mxu0 %v5492
        %5634 = vmatpush1.bf16.msra.mxu0 %v5491
        %5635 = vmatprep.subr.bf16.mxu0 %v5496
        %5636 = vmatpush1.bf16.msra.mxu0 %v5495
        %5637 = vmatprep.subr.bf16.mxu0 %v5500
        %5638 = vmatpush1.bf16.msra.mxu0 %v5499
        %5639 = vmatprep.subr.bf16.mxu0 %v5504
        %5640 = vmatpush1.bf16.msra.mxu0 %v5503
        %5641 = vmatprep.subr.bf16.mxu0 %v5508
        %5642 = vmatpush1.bf16.msra.mxu0 %v5507
        %5643 = vmatprep.subr.bf16.mxu0 %v5512
        %5644 = vmatpush1.bf16.msra.mxu0 %v5511
        %5645 = vmatprep.subr.bf16.mxu0 %v5578
        %5646 = vmatpush1.bf16.msra.mxu0 %v5575
        %5647 = vmatprep.subr.bf16.mxu0 0
        %5648 = vmatpush1.bf16.msra.mxu0 0
        %5649 = vmatprep.subr.bf16.mxu0 0
        %5650 = vmatpush1.bf16.msra.mxu0 0
        %5651 = vmatprep.subr.bf16.mxu0 0
        %5652 = vmatpush1.bf16.msra.mxu0 0
        %5653 = vmatprep.mubr.bf16.mxu0 %v5566
        %5654 = vmatmul.mubr.bf16.gmra.mrb[0].mxu0 %v5312
        %v5655 = vpop.f32.mrb[0].mxu0
        %v5656 = vadd.f32 0.0, %v5655
        %v5657 = vpop.f32.mrb[0].mxu0
        %v5658 = vadd.f32 0.0, %v5657
        %v5659 = vpop.f32.mrb[0].mxu0
        %v5660 = vpop.f32.mrb[0].mxu0
        %5661 = vdwg.mxu0
        %v5666 = vcombine.low %v5615, %v5617
        %v5667 = vcombine.low %v5656, %v5658
        %v5669 = vunpack.c.l.s4 1966171168
        %v5670 = vunpack.c.0.s8 %v5669
        %v5671 = vlaneseq
        %v5672 = vshrl.u32 %v5671, 7
        %v5673 = vsub.s32 %v5670, %v5672
        %v5674 = vrot.slane %v5666, %v5673
        %v5676 = vunpack.c.l.s4 1966171168
        %v5677 = vunpack.c.0.s8 %v5676
        %v5678 = vlaneseq
        %v5679 = vshrl.u32 %v5678, 7
        %v5680 = vsub.s32 %v5677, %v5679
        %v5681 = vrot.slane %v5667, %v5680
        %v5682 = vcombine.low %v5674, %v5681
        %v5684 = vunpack.c.l.s4 1966171168
        %v5685 = vunpack.c.0.s8 %v5684
        %v5686 = vlaneseq
        %v5687 = vshrl.u32 %v5686, 7
        %v5688 = vsub.s32 %v5685, %v5687
        %v5689 = vrot.slane %v5682, %v5688
        %v5691 = vadd.f32 %v5260, %v5689
        %v5692 = vmax.f32 %v5691, 0.0
        %v5694 = vlaneseq
        %v5695 = vshrl.u32 %v5694, 7
        %v5696 = vsub.s32 0, %v5695
        %v5697 = vrot.slane %v5692, %v5696
        %v5698 = vlaneseq
        %v5699 = vshrl.u32 %v5698, 7
        %v5700 = vsub.s32 1, %v5699
        %v5701 = vrot.slane %v5692, %v5700
        %v5702 = vlaneseq
        %v5703 = vshrl.u32 %v5702, 7
        %v5704 = vsub.s32 2, %v5703
        %v5705 = vrot.slane %v5692, %v5704
        %v5706 = vlaneseq
        %v5707 = vshrl.u32 %v5706, 7
        %v5708 = vsub.s32 3, %v5707
        %v5709 = vrot.slane %v5692, %v5708
        %v5714 = vpack.c.bf16 %v5697, %v5697
        %v5715 = vpack.c.bf16 %v5701, %v5701
        %v5716 = vpack.c.bf16 %v5705, %v5705
        %v5717 = vpack.c.bf16 %v5709, %v5709
        %v5718 = vld [vmem:[%s7] sm:$0xf]
        %v5719 = vld [vmem:[%s7 + $0x4] sm:$0xf]
        %v5720 = vld [vmem:[%s7 + $0x8] sm:$0xf]
        %v5721 = vld [vmem:[%s7 + $0xc] sm:$0xf]
        %v5722 = vld [vmem:[%s7 + $0x10] sm:$0xf]
        %v5723 = vld [vmem:[%s7 + $0x14] sm:$0xf]
        %v5724 = vld [vmem:[%s7 + $0x18] sm:$0xf]
        %v5725 = vld [vmem:[%s7 + $0x1c] sm:$0xf]
        %v5726 = vld [vmem:[%s7 + $0x20] sm:$0xf]
        %v5727 = vld [vmem:[%s7 + $0x24] sm:$0xf]
        %v5728 = vld [vmem:[%s7 + $0x28] sm:$0xf]
        %v5729 = vld [vmem:[%s7 + $0x2c] sm:$0xf]
        %v5730 = vld [vmem:[%s7 + $0x30] sm:$0xf]
        %v5731 = vld [vmem:[%s7 + $0x34] sm:$0xf]
        %v5732 = vld [vmem:[%s7 + $0x38] sm:$0xf]
        %v5733 = vld [vmem:[%s7 + $0x3c] sm:$0xf]
        %v5734 = vld [vmem:[%s7 + $0x40] sm:$0xf]
        %v5735 = vld [vmem:[%s7 + $0x44] sm:$0xf]
        %v5736 = vld [vmem:[%s7 + $0x48] sm:$0xf]
        %v5737 = vld [vmem:[%s7 + $0x4c] sm:$0xf]
        %v5738 = vld [vmem:[%s7 + $0x50] sm:$0xf]
        %v5739 = vld [vmem:[%s7 + $0x54] sm:$0xf]
        %v5740 = vld [vmem:[%s7 + $0x58] sm:$0xf]
        %v5741 = vld [vmem:[%s7 + $0x5c] sm:$0xf]
        %v5742 = vld [vmem:[%s7 + $0x60] sm:$0xf]
        %v5743 = vld [vmem:[%s7 + $0x64] sm:$0xf]
        %v5744 = vld [vmem:[%s7 + $0x68] sm:$0xf]
        %v5745 = vld [vmem:[%s7 + $0x6c] sm:$0xf]
        %v5746 = vld [vmem:[%s7 + $0x70] sm:$0xf]
        %v5747 = vld [vmem:[%s7 + $0x74] sm:$0xf]
        %v5748 = vld [vmem:[%s7 + $0x78] sm:$0xf]
        %v5749 = vld [vmem:[%s7 + $0x7c] sm:$0xf]
        %v5750 = vld [vmem:[%s7 + $0x80] sm:$0xf]
        %v5751 = vld [vmem:[%s7 + $0x84] sm:$0xf]
        %v5752 = vld [vmem:[%s7 + $0x88] sm:$0xf]
        %v5753 = vld [vmem:[%s7 + $0x8c] sm:$0xf]
        %v5754 = vld [vmem:[%s7 + $0x90] sm:$0xf]
        %v5755 = vld [vmem:[%s7 + $0x94] sm:$0xf]
        %v5756 = vld [vmem:[%s7 + $0x98] sm:$0xf]
        %v5757 = vld [vmem:[%s7 + $0x9c] sm:$0xf]
        %v5758 = vld [vmem:[%s7 + $0xa0] sm:$0xf]
        %v5759 = vld [vmem:[%s7 + $0xa4] sm:$0xf]
        %v5760 = vld [vmem:[%s7 + $0xa8] sm:$0xf]
        %v5761 = vld [vmem:[%s7 + $0xac] sm:$0xf]
        %v5762 = vld [vmem:[%s7 + $0xb0] sm:$0xf]
        %v5763 = vld [vmem:[%s7 + $0xb4] sm:$0xf]
        %v5764 = vld [vmem:[%s7 + $0xb8] sm:$0xf]
        %v5765 = vld [vmem:[%s7 + $0xbc] sm:$0xf]
        %v5766 = vld [vmem:[%s7 + $0xc0] sm:$0xf]
        %v5767 = vld [vmem:[%s7 + $0xc4] sm:$0xf]
        %v5768 = vld [vmem:[%s7 + $0xc8] sm:$0xf]
        %v5769 = vld [vmem:[%s7 + $0xcc] sm:$0xf]
        %v5770 = vld [vmem:[%s7 + $0xd0] sm:$0xf]
        %v5771 = vld [vmem:[%s7 + $0xd4] sm:$0xf]
        %v5772 = vld [vmem:[%s7 + $0xd8] sm:$0xf]
        %v5773 = vld [vmem:[%s7 + $0xdc] sm:$0xf]
        %v5774 = vld [vmem:[%s7 + $0xe0] sm:$0xf]
        %v5775 = vld [vmem:[%s7 + $0xe4] sm:$0xf]
        %v5776 = vld [vmem:[%s7 + $0xe8] sm:$0xf]
        %v5777 = vld [vmem:[%s7 + $0xec] sm:$0xf]
        %v5778 = vld [vmem:[%s7 + $0xf0] sm:$0xf]
        %v5779 = vld [vmem:[%s7 + $0xf4] sm:$0xf]
        %v5780 = vld [vmem:[%s7 + $0xf8] sm:$0x3]
        %v5781 = vld [vmem:[%s8] sm:$0x1]
        %v5845 = vunpack.c.l.b16 %v5718
        %v5846 = vunpack.c.l.b16 %v5719
        %v5847 = vunpack.c.l.b16 %v5720
        %v5848 = vunpack.c.l.b16 %v5721
        %v5849 = vunpack.c.l.b16 %v5722
        %v5850 = vunpack.c.l.b16 %v5723
        %v5851 = vunpack.c.l.b16 %v5724
        %v5852 = vunpack.c.l.b16 %v5725
        %v5853 = vunpack.c.l.b16 %v5726
        %v5854 = vunpack.c.l.b16 %v5727
        %v5855 = vunpack.c.l.b16 %v5728
        %v5856 = vunpack.c.l.b16 %v5729
        %v5857 = vunpack.c.l.b16 %v5730
        %v5858 = vunpack.c.l.b16 %v5731
        %v5859 = vunpack.c.l.b16 %v5732
        %v5860 = vunpack.c.l.b16 %v5733
        %v5861 = vunpack.c.l.b16 %v5734
        %v5862 = vunpack.c.l.b16 %v5735
        %v5863 = vunpack.c.l.b16 %v5736
        %v5864 = vunpack.c.l.b16 %v5737
        %v5865 = vunpack.c.l.b16 %v5738
        %v5866 = vunpack.c.l.b16 %v5739
        %v5867 = vunpack.c.l.b16 %v5740
        %v5868 = vunpack.c.l.b16 %v5741
        %v5869 = vunpack.c.l.b16 %v5742
        %v5870 = vunpack.c.l.b16 %v5743
        %v5871 = vunpack.c.l.b16 %v5744
        %v5872 = vunpack.c.l.b16 %v5745
        %v5873 = vunpack.c.l.b16 %v5746
        %v5874 = vunpack.c.l.b16 %v5747
        %v5875 = vunpack.c.l.b16 %v5748
        %v5876 = vunpack.c.l.b16 %v5749
        %v5877 = vunpack.c.l.b16 %v5750
        %v5878 = vunpack.c.l.b16 %v5751
        %v5879 = vunpack.c.l.b16 %v5752
        %v5880 = vunpack.c.l.b16 %v5753
        %v5881 = vunpack.c.l.b16 %v5754
        %v5882 = vunpack.c.l.b16 %v5755
        %v5883 = vunpack.c.l.b16 %v5756
        %v5884 = vunpack.c.l.b16 %v5757
        %v5885 = vunpack.c.l.b16 %v5758
        %v5886 = vunpack.c.l.b16 %v5759
        %v5887 = vunpack.c.l.b16 %v5760
        %v5888 = vunpack.c.l.b16 %v5761
        %v5889 = vunpack.c.l.b16 %v5762
        %v5890 = vunpack.c.l.b16 %v5763
        %v5891 = vunpack.c.l.b16 %v5764
        %v5892 = vunpack.c.l.b16 %v5765
        %v5893 = vunpack.c.l.b16 %v5766
        %v5894 = vunpack.c.l.b16 %v5767
        %v5895 = vunpack.c.l.b16 %v5768
        %v5896 = vunpack.c.l.b16 %v5769
        %v5897 = vunpack.c.l.b16 %v5770
        %v5898 = vunpack.c.l.b16 %v5771
        %v5899 = vunpack.c.l.b16 %v5772
        %v5900 = vunpack.c.l.b16 %v5773
        %v5901 = vunpack.c.l.b16 %v5774
        %v5902 = vunpack.c.l.b16 %v5775
        %v5903 = vunpack.c.l.b16 %v5776
        %v5904 = vunpack.c.l.b16 %v5777
        %v5905 = vunpack.c.l.b16 %v5778
        %v5906 = vunpack.c.l.b16 %v5779
        %v5907 = vunpack.c.l.b16 %v5780
        %v5908 = vpack.c.b16 %v5846, %v5845
        %v5909 = vpack.c.b16 %v5848, %v5847
        %v5910 = vpack.c.b16 %v5850, %v5849
        %v5911 = vpack.c.b16 %v5852, %v5851
        %v5912 = vpack.c.b16 %v5854, %v5853
        %v5913 = vpack.c.b16 %v5856, %v5855
        %v5914 = vpack.c.b16 %v5858, %v5857
        %v5915 = vpack.c.b16 %v5860, %v5859
        %v5916 = vpack.c.b16 %v5862, %v5861
        %v5917 = vpack.c.b16 %v5864, %v5863
        %v5918 = vpack.c.b16 %v5866, %v5865
        %v5919 = vpack.c.b16 %v5868, %v5867
        %v5920 = vpack.c.b16 %v5870, %v5869
        %v5921 = vpack.c.b16 %v5872, %v5871
        %v5922 = vpack.c.b16 %v5874, %v5873
        %v5923 = vpack.c.b16 %v5876, %v5875
        %v5924 = vpack.c.b16 %v5878, %v5877
        %v5925 = vpack.c.b16 %v5880, %v5879
        %v5926 = vpack.c.b16 %v5882, %v5881
        %v5927 = vpack.c.b16 %v5884, %v5883
        %v5928 = vpack.c.b16 %v5886, %v5885
        %v5929 = vpack.c.b16 %v5888, %v5887
        %v5930 = vpack.c.b16 %v5890, %v5889
        %v5931 = vpack.c.b16 %v5892, %v5891
        %v5932 = vpack.c.b16 %v5894, %v5893
        %v5933 = vpack.c.b16 %v5896, %v5895
        %v5934 = vpack.c.b16 %v5898, %v5897
        %v5935 = vpack.c.b16 %v5900, %v5899
        %v5936 = vpack.c.b16 %v5902, %v5901
        %v5937 = vpack.c.b16 %v5904, %v5903
        %v5938 = vpack.c.b16 %v5906, %v5905
        %v5939 = vpack.c.b16 %v5907, %v5907
        %vm5971 = vcmask 949248
        %v5973 = vsel %vm5971, %v5717, 0
        %vm5975 = vcmask 1041408
        %v5977 = vsel %vm5975, %v5939, 0
        %5979 = vmatprep.subr.bf16.mxu0 0
        %5980 = vmatpush1.bf16.msra.mxu0 %v5908
        %5981 = vmatprep.subr.bf16.mxu0 0
        %5982 = vmatpush1.bf16.msra.mxu0 %v5909
        %5983 = vmatprep.subr.bf16.mxu0 0
        %5984 = vmatpush1.bf16.msra.mxu0 %v5910
        %5985 = vmatprep.subr.bf16.mxu0 0
        %5986 = vmatpush1.bf16.msra.mxu0 %v5911
        %5987 = vmatprep.subr.bf16.mxu0 0
        %5988 = vmatpush1.bf16.msra.mxu0 %v5912
        %5989 = vmatprep.subr.bf16.mxu0 0
        %5990 = vmatpush1.bf16.msra.mxu0 %v5913
        %5991 = vmatprep.subr.bf16.mxu0 0
        %5992 = vmatpush1.bf16.msra.mxu0 %v5914
        %5993 = vmatprep.subr.bf16.mxu0 0
        %5994 = vmatpush1.bf16.msra.mxu0 %v5915
        %5995 = vmatprep.subr.bf16.mxu0 0
        %5996 = vmatpush1.bf16.msra.mxu0 %v5916
        %5997 = vmatprep.subr.bf16.mxu0 0
        %5998 = vmatpush1.bf16.msra.mxu0 %v5917
        %5999 = vmatprep.subr.bf16.mxu0 0
        %6000 = vmatpush1.bf16.msra.mxu0 %v5918
        %6001 = vmatprep.subr.bf16.mxu0 0
        %6002 = vmatpush1.bf16.msra.mxu0 %v5919
        %6003 = vmatprep.subr.bf16.mxu0 0
        %6004 = vmatpush1.bf16.msra.mxu0 %v5920
        %6005 = vmatprep.subr.bf16.mxu0 0
        %6006 = vmatpush1.bf16.msra.mxu0 %v5921
        %6007 = vmatprep.subr.bf16.mxu0 0
        %6008 = vmatpush1.bf16.msra.mxu0 %v5922
        %6009 = vmatprep.subr.bf16.mxu0 0
        %6010 = vmatpush1.bf16.msra.mxu0 %v5923
        %6011 = vmatprep.mubr.bf16.mxu0 %v5715
        %6012 = vmatmul.mubr.bf16.gmra.mrb[0].mxu0 %v5714
        %v6013 = vpop.f32.mrb[0].mxu0
        %v6014 = vadd.f32 %v5781, %v6013
        %v6015 = vpop.f32.mrb[0].mxu0
        %v6016 = vpop.f32.mrb[0].mxu0
        %v6017 = vpop.f32.mrb[0].mxu0
        %6018 = vdwg.mxu0
        %6019 = vmatprep.subr.bf16.mxu0 0
        %6020 = vmatpush1.bf16.msra.mxu0 %v5924
        %6021 = vmatprep.subr.bf16.mxu0 0
        %6022 = vmatpush1.bf16.msra.mxu0 %v5925
        %6023 = vmatprep.subr.bf16.mxu0 0
        %6024 = vmatpush1.bf16.msra.mxu0 %v5926
        %6025 = vmatprep.subr.bf16.mxu0 0
        %6026 = vmatpush1.bf16.msra.mxu0 %v5927
        %6027 = vmatprep.subr.bf16.mxu0 0
        %6028 = vmatpush1.bf16.msra.mxu0 %v5928
        %6029 = vmatprep.subr.bf16.mxu0 0
        %6030 = vmatpush1.bf16.msra.mxu0 %v5929
        %6031 = vmatprep.subr.bf16.mxu0 0
        %6032 = vmatpush1.bf16.msra.mxu0 %v5930
        %6033 = vmatprep.subr.bf16.mxu0 0
        %6034 = vmatpush1.bf16.msra.mxu0 %v5931
        %6035 = vmatprep.subr.bf16.mxu0 0
        %6036 = vmatpush1.bf16.msra.mxu0 %v5932
        %6037 = vmatprep.subr.bf16.mxu0 0
        %6038 = vmatpush1.bf16.msra.mxu0 %v5933
        %6039 = vmatprep.subr.bf16.mxu0 0
        %6040 = vmatpush1.bf16.msra.mxu0 %v5934
        %6041 = vmatprep.subr.bf16.mxu0 0
        %6042 = vmatpush1.bf16.msra.mxu0 %v5935
        %6043 = vmatprep.subr.bf16.mxu0 0
        %6044 = vmatpush1.bf16.msra.mxu0 %v5936
        %6045 = vmatprep.subr.bf16.mxu0 0
        %6046 = vmatpush1.bf16.msra.mxu0 %v5937
        %6047 = vmatprep.subr.bf16.mxu0 0
        %6048 = vmatpush1.bf16.msra.mxu0 %v5938
        %6049 = vmatprep.subr.bf16.mxu0 0
        %6050 = vmatpush1.bf16.msra.mxu0 %v5977
        %6051 = vmatprep.mubr.bf16.mxu0 %v5973
        %6052 = vmatmul.mubr.bf16.gmra.mrb[0].mxu0 %v5716
        %v6053 = vpop.f32.mrb[0].mxu0
        %v6054 = vadd.f32 %v6014, %v6053
        %v6055 = vpop.f32.mrb[0].mxu0
        %v6056 = vpop.f32.mrb[0].mxu0
        %v6057 = vpop.f32.mrb[0].mxu0
        %6058 = vdwg.mxu0
        %vm6059 = vcmask 73728
        %v6060 = vsel %vm6059, %v6054, -inf
        %6061 = vmax.xlane.f32.xlu0 %v6060
        %v6062 = vpop.xlane.xlu0 %6061
        %v6063 = vsub.f32 %v6054, %v6062
        %v6064 = vmul.f32 %v6063, 1.442695
        %v6065 = vpow.pop %v6064
        %v6066 = vsel %vm6059, %v6065, 0.0
        %6067 = vadd.xlane.f32.xlu0 %v6066
        %v6068 = vpop.xlane.xlu0 %6067
        %v6069 = vlog2.pop %v6068
        %v6070 = vmul.f32 %v6069, 0.6931472
        %v6071 = vsub.f32 %v6063, %v6070
        %6072 = vst.msk [vmem:[%s324] sm:$0x1] %vm6059, %v6071
        %s6073 = sand.u32 %s225, 1
        %s6074 = scalar_lea.sflag [#allocation3], %s6073
        %s6075 = sand.u32 %s225, 1
        %s6076 = scalar_lea.vmem [#allocation2], %s6075
        // Predicated region
        $region57: #{net_s_forward.1} parent=55 // pred_check
          %p6077 = pneg %p235
        $region58: #{net_s_forward.1} parent=55 // pred_check_branch
          %6079 = sbr.rel (%p6077) target = $region60
        $region59: #{net_s_forward.1} parent=55 // pred_region
          %s6081 = ssub.s32 16, 16
          %6082 = vsyncadd %s6074, %s6081
          %s6083 = smul.addr %s23, 16
          %s6084 = scalar_lea.hbm %s9, %s6083
          %s6086 = sshll.u32 %s6076, 4
          %s6087 = int_to_ptr.vmem [resolvable:$true] %s6086
          %6089 = dma.vmem_to_hbm [thread:$0]  %s6087, 16, %s6084, %s6074
        $region60: #{net_s_forward.1} parent=55 // pred_fallthru
          _
      $region56: #{net_s_forward.1} parent=5 // pred_fallthru
        _
      %p6090 = scmp.le.s32.totalorder 2, %s18
      // Predicated region
      $region61: #{net_s_forward.1} parent=5 // pred_check
        %p6091 = pneg %p6090
      $region62: #{net_s_forward.1} parent=5 // pred_check_branch
        %6093 = sbr.rel (%p6091) target = $region64
      $region63: #{net_s_forward.1} parent=5 // pred_region
        %s6094 = ssub.s32 %s18, 2
        // Predicated region
        $region65: #{net_s_forward.1} parent=63 // pred_check
          %p6095 = pneg %p241
        $region66: #{net_s_forward.1} parent=63 // pred_check_branch
          %6097 = sbr.rel (%p6095) target = $region68
        $region67: #{net_s_forward.1} parent=63 // pred_region
          %s6098 = sand.u32 %s226, 1
          %s6099 = scalar_lea.sflag [#allocation3], %s6098
          %s6100 = sand.u32 %s226, 1
          %s6101 = scalar_lea.vmem [#allocation2], %s6100
          %6102 = dma.done %s6099, 16
        $region68: #{net_s_forward.1} parent=63 // pred_fallthru
          _
      $region64: #{net_s_forward.1} parent=5 // pred_fallthru
        _
    $region6: #{net_s_forward.1} parent=1 // loop_footer
      %s22 = sadd.s32 1, %s18
    $region7: #{net_s_forward.1} parent=1 // loop_footer_branch
      %17 = sbr.rel target = $region3
    $region8: #{net_s_forward.1} parent=1 // loop_exit
      _
    %6103 = vsyncpa [#allocation3], 1
    %s6104 = scalar_lea.sflag [#allocation3], 1
    %6105 = vsyncpa %s6104, 1

</llo_original>
